<compile_context>
chip_gen: v6e
topology: v6e:2x2x1
jax: 0.10.0
libtpu: 0.0.40
codegen_flags: <defaults>
</compile_context>

<pallas_src>
import math

import jax
import jax.numpy as jnp
import numpy as np
from jax.experimental import pallas as pl
from jax.experimental.pallas import tpu as pltpu


def _make_kernel(S, B, H, nhead, nlayers, n_chunks, neg_slope=0.01, eps=1e-5):
    """S = attention seq len (d0), B = batch (d1, the PE axis)."""
    hd = H // nhead
    N = S * B
    last_l = nlayers - 1
    last_c = n_chunks - 1
    f32 = jnp.float32

    def layer_norm(x, w, b):
        m = jnp.mean(x, axis=-1, keepdims=True)
        v = jnp.mean((x - m) ** 2, axis=-1, keepdims=True)
        return (x - m) * jax.lax.rsqrt(v + eps) * w + b

    def leaky_relu(x):
        return jnp.where(x >= 0, x, neg_slope * x)

    def bf16(x):
        return x.astype(jnp.bfloat16)

    def split_heads(t):  # (N, H) -> (nhead, N, hd) via static lane slices
        return jnp.stack([t[:, h * hd:(h + 1) * hd] for h in range(nhead)], axis=0)

    # batched-over-heads dot_general dimension numbers
    dn_score = (((2,), (2,)), ((0,), (0,)))  # (nh,N,hd) x (nh,N,hd) -> (nh,N,N)
    dn_ctx = (((2,), (1,)), ((0,), (0,)))    # (nh,N,N) x (nh,N,hd) -> (nh,N,hd)

    def kernel(x_ref, pe_ref, rowb_ref, colb_ref, win_ref, bin_ref,
               wqkv_ref, bqkv_ref, wo_ref, bo_ref,
               n1w_ref, n1b_ref, n2w_ref, n2b_ref, f2b_ref,
               f1w_ref, f1b_ref, f2w_ref,
               w1_ref, b1_ref, g1_ref, be1_ref,
               w2_ref, b2_ref, g2_ref, be2_ref, w3_ref, b3_ref,
               out_ref, h_scr, hmid_scr, acc_scr):
        l = pl.program_id(0)
        c = pl.program_id(1)

        # ---- very first grid step: input projection + positional encoding ----
        @pl.when(jnp.logical_and(l == 0, c == 0))
        def _():
            h0 = jnp.dot(bf16(x_ref[...]), win_ref[...],
                         preferred_element_type=f32) + bin_ref[...]
            h_scr[...] = h0 + pe_ref[...]

        # ---- attention sub-step (first chunk of every layer) ------------------
        @pl.when(c == 0)
        def _():
            h = h_scr[...]                                           # (N, H) f32
            # one packed QKV matmul; 1/sqrt(hd) folded into the Q columns
            qkv = jnp.dot(bf16(h), wqkv_ref[0],
                          preferred_element_type=f32) + bqkv_ref[0]  # (N, 3H)
            q = split_heads(qkv[:, 0:H])
            k = split_heads(qkv[:, H:2 * H])
            v = split_heads(qkv[:, 2 * H:3 * H])

            # block-diagonal mask built in-kernel from tiny batch-id vectors
            mask = jnp.where(rowb_ref[...] == colb_ref[...], 0.0, -1e9).astype(f32)

            s = jax.lax.dot_general(q, k, dn_score,
                                    preferred_element_type=f32)      # (nh,N,N)
            s = s + mask[None]
            s = s - jnp.max(s, axis=-1, keepdims=True)
            p = jnp.exp(s)
            p = p * pl.reciprocal(jnp.sum(p, axis=-1, keepdims=True), approx=True)
            ctx = jax.lax.dot_general(p, v, dn_ctx,
                                      preferred_element_type=f32)    # (nh,N,hd)

            # single out-projection: relayout heads back to (N, H), one matmul
            ctx_flat = jnp.concatenate([ctx[h] for h in range(nhead)], axis=-1)
            attn = jnp.dot(bf16(ctx_flat), wo_ref[0],
                           preferred_element_type=f32) + bo_ref[0]

            hmid_scr[...] = layer_norm(h + attn, n1w_ref[0], n1b_ref[0])
            acc_scr[...] = jnp.zeros_like(acc_scr)

        # ---- feed-forward column chunk (runs every sub-step) ------------------
        ffc = jnp.dot(bf16(hmid_scr[...]), f1w_ref[0],
                      preferred_element_type=f32) + f1b_ref[0]       # (N, Fc)
        ffc = jnp.maximum(ffc, 0.0)
        acc_scr[...] += jnp.dot(bf16(ffc), f2w_ref[0],
                                preferred_element_type=f32)          # (N, H)

        # ---- close the layer on its last chunk --------------------------------
        @pl.when(c == last_c)
        def _():
            h_scr[...] = layer_norm(hmid_scr[...] + acc_scr[...] + f2b_ref[0],
                                    n2w_ref[0], n2b_ref[0])

        # ---- very last grid step: fc_out head (lane-dense padded output) ------
        @pl.when(jnp.logical_and(l == last_l, c == last_c))
        def _():
            h = h_scr[...]
            y = jnp.dot(bf16(h), w1_ref[...],
                        preferred_element_type=f32) + b1_ref[...]
            y = leaky_relu(layer_norm(y, g1_ref[...], be1_ref[...]))
            y = jnp.dot(bf16(y), w2_ref[...],
                        preferred_element_type=f32) + b2_ref[...]
            y = leaky_relu(layer_norm(y, g2_ref[...], be2_ref[...]))
            y = jnp.dot(bf16(y), w3_ref[...],
                        preferred_element_type=f32) + b3_ref[...]
            out_ref[...] = jnp.tanh(y)

    return kernel


def transformer_policy_forward(state_seq, params, *, nhead, nlayers, ff_chunk=512):
    d0, d1, state_dim = state_seq.shape
    H = params["input_proj"][0].shape[1]
    hd = H // nhead
    action_dim = params["fc_out"][-2].shape[1]
    F = params["layers"][0][6].shape[1]               # dim_feedforward
    S, B = d0, d1
    N = S * B
    scale = 1.0 / math.sqrt(hd)
    bf = lambda a: a.astype(jnp.bfloat16)

    ff_chunk = min(ff_chunk, F)
    assert F % ff_chunk == 0, "dim_feedforward must be divisible by ff_chunk"
    n_chunks = F // ff_chunk
    a_pad = 128 * ((action_dim + 127) // 128)         # lane-dense output width

    # token-major flatten: row b*S + s  <->  state_seq[s, b, :]
    x_flat = jnp.transpose(state_seq, (1, 0, 2)).reshape(N, state_dim)

    # positional encoding indexed along axis 1 (exactly as the PyTorch module does)
    pe_tok = jnp.repeat(params["pe"][:d1], S, axis=0)                # (N, H)

    # tiny batch-id vectors; the (N,N) block-diagonal mask is built in-kernel
    tok_b = (jnp.arange(N, dtype=jnp.int32) // S).astype(jnp.float32)
    rowb = tok_b.reshape(N, 1)
    colb = tok_b.reshape(1, N)

    win, bin_ = params["input_proj"]

    # ---- stack per-layer weights along a leading layer axis ------------------
    sc = jnp.concatenate([jnp.full((H,), scale, jnp.float32),
                          jnp.ones((2 * H,), jnp.float32)])           # scale Q only
    wqkv_l, bqkv_l, wo_l, bo_l = [], [], [], []
    n1w_l, n1b_l, n2w_l, n2b_l = [], [], [], []
    f1w_l, f1b_l, f2w_l, f2b_l = [], [], [], []
    for (qkvw, qkvb, ow, ob, n1w, n1b, f1w, f1b, f2w, f2b, n2w, n2b) in params["layers"]:
        wqkv_l.append(qkvw * sc[None, :])
        bqkv_l.append(qkvb * sc[None, :])
        wo_l.append(ow); bo_l.append(ob)
        n1w_l.append(n1w); n1b_l.append(n1b)
        n2w_l.append(n2w); n2b_l.append(n2b)
        f1w_l.append(f1w); f1b_l.append(f1b)
        f2w_l.append(f2w); f2b_l.append(f2b)

    wqkv = bf(jnp.stack(wqkv_l)); bqkv = jnp.stack(bqkv_l)
    wo = bf(jnp.stack(wo_l));     bo = jnp.stack(bo_l)
    n1w = jnp.stack(n1w_l); n1b = jnp.stack(n1b_l)
    n2w = jnp.stack(n2w_l); n2b = jnp.stack(n2b_l)
    f1w = bf(jnp.stack(f1w_l)); f1b = jnp.stack(f1b_l)
    f2w = bf(jnp.stack(f2w_l)); f2b = jnp.stack(f2b_l)

    (w1, b1, g1, be1, w2, b2, g2, be2, w3, b3) = params["fc_out"]
    w3p = jnp.zeros((w3.shape[0], a_pad), jnp.float32).at[:, :action_dim].set(w3)
    b3p = jnp.zeros((1, a_pad), jnp.float32).at[:, :action_dim].set(b3)

    resident_inputs = [x_flat, pe_tok, rowb, colb, bf(win), bin_]
    layer_inputs = [wqkv, bqkv, wo, bo, n1w, n1b, n2w, n2b, f2b]
    chunk_inputs = [f1w, f1b, f2w]
    head_inputs = [bf(w1), b1, g1, be1, bf(w2), b2, g2, be2, bf(w3p), b3p]
    inputs = resident_inputs + layer_inputs + chunk_inputs + head_inputs

    def resident(arr):
        nd = arr.ndim
        return pl.BlockSpec(arr.shape, lambda l, c, nd=nd: (0,) * nd)

    def per_layer(arr):
        nrest = arr.ndim - 1
        return pl.BlockSpec((1,) + arr.shape[1:],
                            lambda l, c, nrest=nrest: (l,) + (0,) * nrest)

    f1w_spec = pl.BlockSpec((1, H, ff_chunk), lambda l, c: (l, 0, c))
    f1b_spec = pl.BlockSpec((1, 1, ff_chunk), lambda l, c: (l, 0, c))
    f2w_spec = pl.BlockSpec((1, ff_chunk, H), lambda l, c: (l, c, 0))

    in_specs = ([resident(a) for a in resident_inputs]
                + [per_layer(a) for a in layer_inputs]
                + [f1w_spec, f1b_spec, f2w_spec]
                + [resident(a) for a in head_inputs])

    kernel = _make_kernel(S, B, H, nhead, nlayers, n_chunks)
    out_pad = pl.pallas_call(
        kernel,
        out_shape=jax.ShapeDtypeStruct((N, a_pad), jnp.float32),
        grid_spec=pltpu.PrefetchScalarGridSpec(
            num_scalar_prefetch=0,
            grid=(nlayers, n_chunks),
            in_specs=in_specs,
            out_specs=pl.BlockSpec((N, a_pad), lambda l, c: (0, 0)),
            scratch_shapes=[pltpu.VMEM((N, H), jnp.float32),   # running activation
                            pltpu.VMEM((N, H), jnp.float32),   # post-attention/LN1
                            pltpu.VMEM((N, H), jnp.float32)]), # FFN accumulator
        compiler_params=pltpu.CompilerParams(
            dimension_semantics=("arbitrary", "arbitrary"),
            vmem_limit_bytes=32 * 1024 * 1024),   # ~2 MiB actual footprint; fits v5e/v6e/v7x
    )(*inputs)

    out_flat = out_pad[:, :action_dim]
    return jnp.transpose(out_flat.reshape(B, S, action_dim), (1, 0, 2))


def init_params(key, state_dim, action_dim, hidden_dim=128, nhead=4, nlayers=2,
                dim_feedforward=2048, max_len=100):
    keys = iter(jax.random.split(key, 64))

    def linear(in_dim, out_dim):
        bound = 1.0 / math.sqrt(in_dim)
        w = jax.random.uniform(next(keys), (in_dim, out_dim), jnp.float32, -bound, bound)
        b = jax.random.uniform(next(keys), (1, out_dim), jnp.float32, -bound, bound)
        return w, b

    def layernorm(dim):
        return jnp.ones((1, dim), jnp.float32), jnp.zeros((1, dim), jnp.float32)

    H = hidden_dim
    # sinusoidal positional encoding, identical to the PyTorch PositionalEncoding
    position = jnp.arange(max_len, dtype=jnp.float32)[:, None]
    div_term = jnp.exp(jnp.arange(0, H, 2, dtype=jnp.float32) *
                       (-(math.log(10000.0) / H)))
    pe = jnp.zeros((max_len, H), jnp.float32)
    pe = pe.at[:, 0::2].set(jnp.sin(position * div_term))
    pe = pe.at[:, 1::2].set(jnp.cos(position * div_term))

    params = {"pe": pe,
              "input_proj": list(linear(state_dim, H)),
              "layers": [],
              "fc_out": []}
    for _ in range(nlayers):
        qkv_w, qkv_b = linear(H, 3 * H)           # MHA in_proj (packed QKV)
        out_w, out_b = linear(H, H)               # MHA out_proj
        n1w, n1b = layernorm(H)
        f1w, f1b = linear(H, dim_feedforward)     # FFN linear1
        f2w, f2b = linear(dim_feedforward, H)     # FFN linear2
        n2w, n2b = layernorm(H)
        params["layers"].append([qkv_w, qkv_b, out_w, out_b, n1w, n1b,
                                 f1w, f1b, f2w, f2b, n2w, n2b])
    w1, b1 = linear(H, H)
    g1, be1 = layernorm(H)
    w2, b2 = linear(H, H // 2)
    g2, be2 = layernorm(H // 2)
    w3, b3 = linear(H // 2, action_dim)
    params["fc_out"] = [w1, b1, g1, be1, w2, b2, g2, be2, w3, b3]
    return params


def reference_forward(state_seq, params, *, nhead, nlayers):
    """Pure-JAX reference mirroring PyTorch eval semantics (and the kernel's
    bf16-weight / bf16-activation-input, f32-accumulate matmul numerics)."""
    d0, d1, _ = state_seq.shape
    H = params["input_proj"][0].shape[1]
    hd = H // nhead
    eps = 1e-5
    hi = jax.lax.Precision.HIGHEST
    bfc = lambda t: t.astype(jnp.bfloat16)

    def mm(a, w):    # bf16 inputs, f32 accumulation, like the kernel's MXU dots
        return jnp.einsum("...i,ij->...j", bfc(a), bfc(w),
                          preferred_element_type=jnp.float32)

    def ln(x, w, b):
        m = x.mean(-1, keepdims=True)
        v = ((x - m) ** 2).mean(-1, keepdims=True)
        return (x - m) * jax.lax.rsqrt(v + eps) * w[0] + b[0]

    w, b = params["input_proj"]
    x = mm(state_seq, w) + b[0]
    x = x + params["pe"][:d1][None, :, :]          # PE indexed along axis 1

    for (qkvw, qkvb, ow, ob, n1w, n1b, f1w, f1b, f2w, f2b, n2w, n2b) in params["layers"]:
        qkv = mm(x, qkvw) + qkvb[0]
        q, k, v = jnp.split(qkv, 3, axis=-1)

        def split_heads(t):                        # (d0, d1, H) -> (d1, h, d0, hd)
            return jnp.transpose(t.reshape(d0, d1, nhead, hd), (1, 2, 0, 3))

        qh, kh, vh = split_heads(q), split_heads(k), split_heads(v)
        s = jnp.einsum("bhqd,bhkd->bhqk", qh, kh, precision=hi) / math.sqrt(hd)
        p = jax.nn.softmax(s, axis=-1)
        ctx = jnp.einsum("bhqk,bhkd->bhqd", p, vh, precision=hi)
        ctx = jnp.transpose(ctx, (2, 0, 1, 3)).reshape(d0, d1, H)
        x = ln(x + (mm(ctx, ow) + ob[0]), n1w, n1b)
        ff = jax.nn.relu(mm(x, f1w) + f1b[0])
        x = ln(x + (mm(ff, f2w) + f2b[0]), n2w, n2b)

    (w1, b1, g1, be1, w2, b2, g2, be2, w3, b3) = params["fc_out"]
    y = ln(mm(x, w1) + b1[0], g1, be1)
    y = jnp.where(y >= 0, y, 0.01 * y)
    y = ln(mm(y, w2) + b2[0], g2, be2)
    y = jnp.where(y >= 0, y, 0.01 * y)
    return jnp.tanh(mm(y, w3) + b3[0])


if __name__ == "__main__":
    d0, d1 = 8, 2                 # (attention seq len, batch) -- batch_first=False
    state_dim, action_dim = 16, 4
    hidden_dim, nhead, nlayers = 128, 4, 2

    kp, kx = jax.random.split(jax.random.PRNGKey(0))
    params = init_params(kp, state_dim, action_dim, hidden_dim, nhead, nlayers)
    state_seq = jax.random.normal(kx, (d0, d1, state_dim), jnp.float32)

    out = transformer_policy_forward(state_seq, params, nhead=nhead, nlayers=nlayers)
    out = jax.block_until_ready(out)

    ref = reference_forward(state_seq, params, nhead=nhead, nlayers=nlayers)
    assert out.shape == (d0, d1, action_dim)
    # bf16 weights/activation-inputs + approximate softmax reciprocal => loosened
    # tolerance vs. an all-f32 path (reference mirrors the bf16 matmul inputs).
    np.testing.assert_allclose(np.asarray(out), np.asarray(ref), rtol=2e-2, atol=2e-2)
    print("KERNEL_OK")
</pallas_src>

<mosaic_0001>
module attributes {stable_mosaic.version = 11 : i64} {
  func.func @kernel(%arg0: i32, %arg1: i32, %arg2: memref<16x16xf32, #tpu.memory_space<vmem>>, %arg3: memref<16x128xf32, #tpu.memory_space<vmem>>, %arg4: memref<16x1xf32, #tpu.memory_space<vmem>>, %arg5: memref<1x16xf32, #tpu.memory_space<vmem>>, %arg6: memref<16x128xbf16, #tpu.memory_space<vmem>>, %arg7: memref<1x128xf32, #tpu.memory_space<vmem>>, %arg8: memref<1x128x384xbf16, #tpu.memory_space<vmem>>, %arg9: memref<1x1x384xf32, #tpu.memory_space<vmem>>, %arg10: memref<1x128x128xbf16, #tpu.memory_space<vmem>>, %arg11: memref<1x1x128xf32, #tpu.memory_space<vmem>>, %arg12: memref<1x1x128xf32, #tpu.memory_space<vmem>>, %arg13: memref<1x1x128xf32, #tpu.memory_space<vmem>>, %arg14: memref<1x1x128xf32, #tpu.memory_space<vmem>>, %arg15: memref<1x1x128xf32, #tpu.memory_space<vmem>>, %arg16: memref<1x1x128xf32, #tpu.memory_space<vmem>>, %arg17: memref<1x128x512xbf16, #tpu.memory_space<vmem>>, %arg18: memref<1x1x512xf32, #tpu.memory_space<vmem>>, %arg19: memref<1x512x128xbf16, #tpu.memory_space<vmem>>, %arg20: memref<128x128xbf16, #tpu.memory_space<vmem>>, %arg21: memref<1x128xf32, #tpu.memory_space<vmem>>, %arg22: memref<1x128xf32, #tpu.memory_space<vmem>>, %arg23: memref<1x128xf32, #tpu.memory_space<vmem>>, %arg24: memref<128x64xbf16, #tpu.memory_space<vmem>>, %arg25: memref<1x64xf32, #tpu.memory_space<vmem>>, %arg26: memref<1x64xf32, #tpu.memory_space<vmem>>, %arg27: memref<1x64xf32, #tpu.memory_space<vmem>>, %arg28: memref<64x128xbf16, #tpu.memory_space<vmem>>, %arg29: memref<1x128xf32, #tpu.memory_space<vmem>>, %arg30: memref<16x128xf32, #tpu.memory_space<vmem>>, %arg31: memref<16x128xf32, #tpu.memory_space<vmem>>, %arg32: memref<16x128xf32, #tpu.memory_space<vmem>>, %arg33: memref<16x128xf32, #tpu.memory_space<vmem>>) attributes {dimension_semantics = [#tpu.dimension_semantics<arbitrary>, #tpu.dimension_semantics<arbitrary>], iteration_bounds = array<i64: 2, 4>, scalar_prefetch = 0 : i64, scratch_operands = 3 : i64, tpu.core_type = #tpu.core_type<tc>, window_params = [{pipeline_mode = #tpu.pipeline_mode<synchronous>, transform_indices = @transform_0, window_bounds = array<i64: 16, 16>}, {pipeline_mode = #tpu.pipeline_mode<synchronous>, transform_indices = @transform_1, window_bounds = array<i64: 16, 128>}, {pipeline_mode = #tpu.pipeline_mode<synchronous>, transform_indices = @transform_2, window_bounds = array<i64: 16, 1>}, {pipeline_mode = #tpu.pipeline_mode<synchronous>, transform_indices = @transform_3, window_bounds = array<i64: 1, 16>}, {pipeline_mode = #tpu.pipeline_mode<synchronous>, transform_indices = @transform_4, window_bounds = array<i64: 16, 128>}, {pipeline_mode = #tpu.pipeline_mode<synchronous>, transform_indices = @transform_5, window_bounds = array<i64: 1, 128>}, {transform_indices = @transform_6, window_bounds = array<i64: 1, 128, 384>}, {transform_indices = @transform_7, window_bounds = array<i64: 1, 1, 384>}, {transform_indices = @transform_8, window_bounds = array<i64: 1, 128, 128>}, {transform_indices = @transform_9, window_bounds = array<i64: 1, 1, 128>}, {transform_indices = @transform_10, window_bounds = array<i64: 1, 1, 128>}, {transform_indices = @transform_11, window_bounds = array<i64: 1, 1, 128>}, {transform_indices = @transform_12, window_bounds = array<i64: 1, 1, 128>}, {transform_indices = @transform_13, window_bounds = array<i64: 1, 1, 128>}, {transform_indices = @transform_14, window_bounds = array<i64: 1, 1, 128>}, {transform_indices = @transform_15, window_bounds = array<i64: 1, 128, 512>}, {transform_indices = @transform_16, window_bounds = array<i64: 1, 1, 512>}, {transform_indices = @transform_17, window_bounds = array<i64: 1, 512, 128>}, {pipeline_mode = #tpu.pipeline_mode<synchronous>, transform_indices = @transform_18, window_bounds = array<i64: 128, 128>}, {pipeline_mode = #tpu.pipeline_mode<synchronous>, transform_indices = @transform_19, window_bounds = array<i64: 1, 128>}, {pipeline_mode = #tpu.pipeline_mode<synchronous>, transform_indices = @transform_20, window_bounds = array<i64: 1, 128>}, {pipeline_mode = #tpu.pipeline_mode<synchronous>, transform_indices = @transform_21, window_bounds = array<i64: 1, 128>}, {pipeline_mode = #tpu.pipeline_mode<synchronous>, transform_indices = @transform_22, window_bounds = array<i64: 128, 64>}, {pipeline_mode = #tpu.pipeline_mode<synchronous>, transform_indices = @transform_23, window_bounds = array<i64: 1, 64>}, {pipeline_mode = #tpu.pipeline_mode<synchronous>, transform_indices = @transform_24, window_bounds = array<i64: 1, 64>}, {pipeline_mode = #tpu.pipeline_mode<synchronous>, transform_indices = @transform_25, window_bounds = array<i64: 1, 64>}, {pipeline_mode = #tpu.pipeline_mode<synchronous>, transform_indices = @transform_26, window_bounds = array<i64: 64, 128>}, {pipeline_mode = #tpu.pipeline_mode<synchronous>, transform_indices = @transform_27, window_bounds = array<i64: 1, 128>}, {pipeline_mode = #tpu.pipeline_mode<synchronous>, transform_indices = @transform_28, window_bounds = array<i64: 16, 128>}]} {
    %c0_i32 = arith.constant 0 : i32
    %0 = arith.cmpi eq, %arg0, %c0_i32 : i32
    %c0_i32_0 = arith.constant 0 : i32
    %1 = arith.cmpi eq, %arg1, %c0_i32_0 : i32
    %2 = arith.andi %0, %1 : i1
    %3 = arith.extui %2 : i1 to i32
    %c0_i32_1 = arith.constant 0 : i32
    %4 = arith.cmpi ne, %3, %c0_i32_1 : i32
    scf.if %4 {
      %c0_23 = arith.constant 0 : index
      %c0_24 = arith.constant 0 : index
      %34 = vector.load %arg2[%c0_23, %c0_24] : memref<16x16xf32, #tpu.memory_space<vmem>>, vector<16x16xf32>
      %35 = arith.truncf %34 : vector<16x16xf32> to vector<16x16xbf16>
      %c0_25 = arith.constant 0 : index
      %c0_26 = arith.constant 0 : index
      %36 = vector.load %arg6[%c0_25, %c0_26] : memref<16x128xbf16, #tpu.memory_space<vmem>>, vector<16x128xbf16>
      %cst_27 = arith.constant dense<0.000000e+00> : vector<16x128xf32>
      %37 = tpu.matmul %35, %36, %cst_27 {dimension_numbers = #tpu.dot_dimension_numbers<[1], [0], [0], [1], [0, 0, 1, 1], [], []>} : vector<16x16xbf16>, vector<16x128xbf16>, vector<16x128xf32> -> vector<16x128xf32>
      %c0_28 = arith.constant 0 : index
      %c0_29 = arith.constant 0 : index
      %38 = vector.load %arg7[%c0_28, %c0_29] : memref<1x128xf32, #tpu.memory_space<vmem>>, vector<1x128xf32>
      %39 = vector.broadcast %38 : vector<1x128xf32> to vector<16x128xf32>
      %40 = arith.addf %37, %39 : vector<16x128xf32>
      %c0_30 = arith.constant 0 : index
      %c0_31 = arith.constant 0 : index
      %41 = vector.load %arg3[%c0_30, %c0_31] : memref<16x128xf32, #tpu.memory_space<vmem>>, vector<16x128xf32>
      %42 = arith.addf %40, %41 : vector<16x128xf32>
      %c0_32 = arith.constant 0 : index
      %c0_33 = arith.constant 0 : index
      %43 = vector.load %arg31[%c0_32, %c0_33] : memref<16x128xf32, #tpu.memory_space<vmem>>, vector<16x128xf32>
      tpu.vector_store %arg31[%c0_32, %c0_33], %42 {strides = array<i32>} : memref<16x128xf32, #tpu.memory_space<vmem>>, vector<16x128xf32>,
    } else {
    }
    %c0_i32_2 = arith.constant 0 : i32
    %5 = arith.cmpi eq, %arg1, %c0_i32_2 : i32
    %6 = arith.extui %5 : i1 to i32
    %c0_i32_3 = arith.constant 0 : i32
    %7 = arith.cmpi ne, %6, %c0_i32_3 : i32
    scf.if %7 {
      %c0_23 = arith.constant 0 : index
      %c0_24 = arith.constant 0 : index
      %34 = vector.load %arg31[%c0_23, %c0_24] : memref<16x128xf32, #tpu.memory_space<vmem>>, vector<16x128xf32>
      %35 = arith.truncf %34 : vector<16x128xf32> to vector<16x128xbf16>
      %c0_25 = arith.constant 0 : index
      %c0_26 = arith.constant 0 : index
      %c0_27 = arith.constant 0 : index
      %36 = vector.load %arg8[%c0_25, %c0_26, %c0_27] : memref<1x128x384xbf16, #tpu.memory_space<vmem>>, vector<1x128x384xbf16>
      %37 = vector.shape_cast %36 : vector<1x128x384xbf16> to vector<128x384xbf16>
      %cst_28 = arith.constant dense<0.000000e+00> : vector<16x384xf32>
      %38 = tpu.matmul %35, %37, %cst_28 {dimension_numbers = #tpu.dot_dimension_numbers<[1], [0], [0], [1], [0, 0, 1, 1], [], []>} : vector<16x128xbf16>, vector<128x384xbf16>, vector<16x384xf32> -> vector<16x384xf32>
      %c0_29 = arith.constant 0 : index
      %c0_30 = arith.constant 0 : index
      %c0_31 = arith.constant 0 : index
      %39 = vector.load %arg9[%c0_29, %c0_30, %c0_31] : memref<1x1x384xf32, #tpu.memory_space<vmem>>, vector<1x1x384xf32>
      %40 = vector.shape_cast %39 : vector<1x1x384xf32> to vector<1x384xf32>
      %41 = vector.broadcast %40 : vector<1x384xf32> to vector<16x384xf32>
      %42 = arith.addf %38, %41 : vector<16x384xf32>
      %43 = vector.extract_strided_slice %42 {offsets = [0, 0], sizes = [16, 128], strides = [1, 1]} : vector<16x384xf32> to vector<16x128xf32>
      %44 = vector.extract_strided_slice %43 {offsets = [0, 0], sizes = [16, 32], strides = [1, 1]} : vector<16x128xf32> to vector<16x32xf32>
      %45 = vector.extract_strided_slice %43 {offsets = [0, 32], sizes = [16, 32], strides = [1, 1]} : vector<16x128xf32> to vector<16x32xf32>
      %46 = vector.extract_strided_slice %43 {offsets = [0, 64], sizes = [16, 32], strides = [1, 1]} : vector<16x128xf32> to vector<16x32xf32>
      %47 = vector.extract_strided_slice %43 {offsets = [0, 96], sizes = [16, 32], strides = [1, 1]} : vector<16x128xf32> to vector<16x32xf32>
      %48 = vector.shape_cast %44 : vector<16x32xf32> to vector<1x16x32xf32>
      %49 = vector.shape_cast %45 : vector<16x32xf32> to vector<1x16x32xf32>
      %50 = vector.shape_cast %46 : vector<16x32xf32> to vector<1x16x32xf32>
      %51 = vector.shape_cast %47 : vector<16x32xf32> to vector<1x16x32xf32>
      %52 = tpu.concatenate %48, %49, %50, %51 in 0 : vector<1x16x32xf32>, vector<1x16x32xf32>, vector<1x16x32xf32>, vector<1x16x32xf32> -> vector<4x16x32xf32>
      %53 = vector.extract_strided_slice %42 {offsets = [0, 128], sizes = [16, 128], strides = [1, 1]} : vector<16x384xf32> to vector<16x128xf32>
      %54 = vector.extract_strided_slice %53 {offsets = [0, 0], sizes = [16, 32], strides = [1, 1]} : vector<16x128xf32> to vector<16x32xf32>
      %55 = vector.extract_strided_slice %53 {offsets = [0, 32], sizes = [16, 32], strides = [1, 1]} : vector<16x128xf32> to vector<16x32xf32>
      %56 = vector.extract_strided_slice %53 {offsets = [0, 64], sizes = [16, 32], strides = [1, 1]} : vector<16x128xf32> to vector<16x32xf32>
      %57 = vector.extract_strided_slice %53 {offsets = [0, 96], sizes = [16, 32], strides = [1, 1]} : vector<16x128xf32> to vector<16x32xf32>
      %58 = vector.shape_cast %54 : vector<16x32xf32> to vector<1x16x32xf32>
      %59 = vector.shape_cast %55 : vector<16x32xf32> to vector<1x16x32xf32>
      %60 = vector.shape_cast %56 : vector<16x32xf32> to vector<1x16x32xf32>
      %61 = vector.shape_cast %57 : vector<16x32xf32> to vector<1x16x32xf32>
      %62 = tpu.concatenate %58, %59, %60, %61 in 0 : vector<1x16x32xf32>, vector<1x16x32xf32>, vector<1x16x32xf32>, vector<1x16x32xf32> -> vector<4x16x32xf32>
      %63 = vector.extract_strided_slice %42 {offsets = [0, 256], sizes = [16, 128], strides = [1, 1]} : vector<16x384xf32> to vector<16x128xf32>
      %64 = vector.extract_strided_slice %63 {offsets = [0, 0], sizes = [16, 32], strides = [1, 1]} : vector<16x128xf32> to vector<16x32xf32>
      %65 = vector.extract_strided_slice %63 {offsets = [0, 32], sizes = [16, 32], strides = [1, 1]} : vector<16x128xf32> to vector<16x32xf32>
      %66 = vector.extract_strided_slice %63 {offsets = [0, 64], sizes = [16, 32], strides = [1, 1]} : vector<16x128xf32> to vector<16x32xf32>
      %67 = vector.extract_strided_slice %63 {offsets = [0, 96], sizes = [16, 32], strides = [1, 1]} : vector<16x128xf32> to vector<16x32xf32>
      %68 = vector.shape_cast %64 : vector<16x32xf32> to vector<1x16x32xf32>
      %69 = vector.shape_cast %65 : vector<16x32xf32> to vector<1x16x32xf32>
      %70 = vector.shape_cast %66 : vector<16x32xf32> to vector<1x16x32xf32>
      %71 = vector.shape_cast %67 : vector<16x32xf32> to vector<1x16x32xf32>
      %72 = tpu.concatenate %68, %69, %70, %71 in 0 : vector<1x16x32xf32>, vector<1x16x32xf32>, vector<1x16x32xf32>, vector<1x16x32xf32> -> vector<4x16x32xf32>
      %c0_32 = arith.constant 0 : index
      %c0_33 = arith.constant 0 : index
      %73 = vector.load %arg4[%c0_32, %c0_33] : memref<16x1xf32, #tpu.memory_space<vmem>>, vector<16x1xf32>
      %c0_34 = arith.constant 0 : index
      %c0_35 = arith.constant 0 : index
      %74 = vector.load %arg5[%c0_34, %c0_35] : memref<1x16xf32, #tpu.memory_space<vmem>>, vector<1x16xf32>
      %75 = vector.broadcast %73 : vector<16x1xf32> to vector<16x16xf32>
      %76 = vector.broadcast %74 : vector<1x16xf32> to vector<16x16xf32>
      %77 = arith.cmpf oeq, %75, %76 : vector<16x16xf32>
      %cst_36 = arith.constant 0.000000e+00 : f32
      %cst_37 = arith.constant -1.000000e+09 : f32
      %78 = vector.broadcast %cst_36 : f32 to vector<16x16xf32>
      %79 = vector.broadcast %cst_37 : f32 to vector<16x16xf32>
      %80 = arith.select %77, %78, %79 : vector<16x16xi1>, vector<16x16xf32>
      %cst_38 = arith.constant dense<0.000000e+00> : vector<4x16x16xf32>
      %81 = tpu.matmul %52, %62, %cst_38 {dimension_numbers = #tpu.dot_dimension_numbers<[2], [2], [1], [1], [0, 0, 0, 1, 1, 1], [0], [0]>} : vector<4x16x32xf32>, vector<4x16x32xf32>, vector<4x16x16xf32> -> vector<4x16x16xf32>
      %82 = vector.shape_cast %80 : vector<16x16xf32> to vector<1x16x16xf32>
      %83 = vector.broadcast %82 : vector<1x16x16xf32> to vector<4x16x16xf32>
      %84 = arith.addf %81, %83 : vector<4x16x16xf32>
      %cst_39 = arith.constant dense<0xFF800000> : vector<4x16xf32>
      %85 = vector.multi_reduction <maximumf>, %84, %cst_39 [2] : vector<4x16x16xf32> to vector<4x16xf32>
      %86 = vector.shape_cast %85 : vector<4x16xf32> to vector<4x16x1xf32>
      %87 = vector.broadcast %86 : vector<4x16x1xf32> to vector<4x16x16xf32>
      %88 = arith.subf %84, %87 : vector<4x16x16xf32>
      %89 = math.exp %88 : vector<4x16x16xf32>
      %cst_40 = arith.constant dense<0.000000e+00> : vector<4x16xf32>
      %90 = vector.multi_reduction <add>, %89, %cst_40 [2] : vector<4x16x16xf32> to vector<4x16xf32>
      %91 = vector.shape_cast %90 : vector<4x16xf32> to vector<4x16x1xf32>
      %92 = tpu.reciprocal %91 {approx = true} : vector<4x16x1xf32> -> vector<4x16x1xf32>
      %93 = vector.broadcast %92 : vector<4x16x1xf32> to vector<4x16x16xf32>
      %94 = arith.mulf %89, %93 : vector<4x16x16xf32>
      %cst_41 = arith.constant dense<0.000000e+00> : vector<4x16x32xf32>
      %95 = tpu.matmul %94, %72, %cst_41 {dimension_numbers = #tpu.dot_dimension_numbers<[2], [1], [1], [2], [0, 0, 0, 1, 1, 2], [0], [0]>} : vector<4x16x16xf32>, vector<4x16x32xf32>, vector<4x16x32xf32> -> vector<4x16x32xf32>
      %96 = vector.extract_strided_slice %95 {offsets = [0, 0, 0], sizes = [1, 16, 32], strides = [1, 1, 1]} : vector<4x16x32xf32> to vector<1x16x32xf32>
      %97 = vector.shape_cast %96 : vector<1x16x32xf32> to vector<16x32xf32>
      %98 = vector.extract_strided_slice %95 {offsets = [1, 0, 0], sizes = [1, 16, 32], strides = [1, 1, 1]} : vector<4x16x32xf32> to vector<1x16x32xf32>
      %99 = vector.shape_cast %98 : vector<1x16x32xf32> to vector<16x32xf32>
      %100 = vector.extract_strided_slice %95 {offsets = [2, 0, 0], sizes = [1, 16, 32], strides = [1, 1, 1]} : vector<4x16x32xf32> to vector<1x16x32xf32>
      %101 = vector.shape_cast %100 : vector<1x16x32xf32> to vector<16x32xf32>
      %102 = vector.extract_strided_slice %95 {offsets = [3, 0, 0], sizes = [1, 16, 32], strides = [1, 1, 1]} : vector<4x16x32xf32> to vector<1x16x32xf32>
      %103 = vector.shape_cast %102 : vector<1x16x32xf32> to vector<16x32xf32>
      %104 = tpu.concatenate %97, %99, %101, %103 in 1 : vector<16x32xf32>, vector<16x32xf32>, vector<16x32xf32>, vector<16x32xf32> -> vector<16x128xf32>
      %105 = arith.truncf %104 : vector<16x128xf32> to vector<16x128xbf16>
      %c0_42 = arith.constant 0 : index
      %c0_43 = arith.constant 0 : index
      %c0_44 = arith.constant 0 : index
      %106 = vector.load %arg10[%c0_42, %c0_43, %c0_44] : memref<1x128x128xbf16, #tpu.memory_space<vmem>>, vector<1x128x128xbf16>
      %107 = vector.shape_cast %106 : vector<1x128x128xbf16> to vector<128x128xbf16>
      %cst_45 = arith.constant dense<0.000000e+00> : vector<16x128xf32>
      %108 = tpu.matmul %105, %107, %cst_45 {dimension_numbers = #tpu.dot_dimension_numbers<[1], [0], [0], [1], [0, 0, 1, 1], [], []>} : vector<16x128xbf16>, vector<128x128xbf16>, vector<16x128xf32> -> vector<16x128xf32>
      %c0_46 = arith.constant 0 : index
      %c0_47 = arith.constant 0 : index
      %c0_48 = arith.constant 0 : index
      %109 = vector.load %arg11[%c0_46, %c0_47, %c0_48] : memref<1x1x128xf32, #tpu.memory_space<vmem>>, vector<1x1x128xf32>
      %110 = vector.shape_cast %109 : vector<1x1x128xf32> to vector<1x128xf32>
      %111 = vector.broadcast %110 : vector<1x128xf32> to vector<16x128xf32>
      %112 = arith.addf %108, %111 : vector<16x128xf32>
      %113 = arith.addf %34, %112 : vector<16x128xf32>
      %c0_49 = arith.constant 0 : index
      %c0_50 = arith.constant 0 : index
      %c0_51 = arith.constant 0 : index
      %114 = vector.load %arg12[%c0_49, %c0_50, %c0_51] : memref<1x1x128xf32, #tpu.memory_space<vmem>>, vector<1x1x128xf32>
      %115 = vector.shape_cast %114 : vector<1x1x128xf32> to vector<1x128xf32>
      %c0_52 = arith.constant 0 : index
      %c0_53 = arith.constant 0 : index
      %c0_54 = arith.constant 0 : index
      %116 = vector.load %arg13[%c0_52, %c0_53, %c0_54] : memref<1x1x128xf32, #tpu.memory_space<vmem>>, vector<1x1x128xf32>
      %117 = vector.shape_cast %116 : vector<1x1x128xf32> to vector<1x128xf32>
      %cst_55 = arith.constant dense<0.000000e+00> : vector<16xf32>
      %118 = vector.multi_reduction <add>, %113, %cst_55 [1] : vector<16x128xf32> to vector<16xf32>
      %119 = vector.shape_cast %118 : vector<16xf32> to vector<16x1xf32>
      %cst_56 = arith.constant 1.280000e+02 : f32
      %120 = vector.broadcast %cst_56 : f32 to vector<16x1xf32>
      %121 = arith.divf %119, %120 : vector<16x1xf32>
      %122 = vector.broadcast %121 : vector<16x1xf32> to vector<16x128xf32>
      %123 = arith.subf %113, %122 : vector<16x128xf32>
      %124 = arith.mulf %123, %123 : vector<16x128xf32>
      %cst_57 = arith.constant dense<0.000000e+00> : vector<16xf32>
      %125 = vector.multi_reduction <add>, %124, %cst_57 [1] : vector<16x128xf32> to vector<16xf32>
      %126 = vector.shape_cast %125 : vector<16xf32> to vector<16x1xf32>
      %cst_58 = arith.constant 1.280000e+02 : f32
      %127 = vector.broadcast %cst_58 : f32 to vector<16x1xf32>
      %128 = arith.divf %126, %127 : vector<16x1xf32>
      %129 = vector.broadcast %121 : vector<16x1xf32> to vector<16x128xf32>
      %130 = arith.subf %113, %129 : vector<16x128xf32>
      %cst_59 = arith.constant 9.99999974E-6 : f32
      %131 = vector.broadcast %cst_59 : f32 to vector<16x1xf32>
      %132 = arith.addf %128, %131 : vector<16x1xf32>
      %133 = math.rsqrt %132 : vector<16x1xf32>
      %134 = vector.broadcast %133 : vector<16x1xf32> to vector<16x128xf32>
      %135 = arith.mulf %130, %134 : vector<16x128xf32>
      %136 = vector.broadcast %115 : vector<1x128xf32> to vector<16x128xf32>
      %137 = arith.mulf %135, %136 : vector<16x128xf32>
      %138 = vector.broadcast %117 : vector<1x128xf32> to vector<16x128xf32>
      %139 = arith.addf %137, %138 : vector<16x128xf32>
      %c0_60 = arith.constant 0 : index
      %c0_61 = arith.constant 0 : index
      %140 = vector.load %arg32[%c0_60, %c0_61] : memref<16x128xf32, #tpu.memory_space<vmem>>, vector<16x128xf32>
      tpu.vector_store %arg32[%c0_60, %c0_61], %139 {strides = array<i32>} : memref<16x128xf32, #tpu.memory_space<vmem>>, vector<16x128xf32>,
      %cst_62 = arith.constant 0.000000e+00 : f32
      %141 = vector.broadcast %cst_62 : f32 to vector<16x128xf32>
      %c0_63 = arith.constant 0 : index
      %c0_64 = arith.constant 0 : index
      %142 = vector.load %arg33[%c0_63, %c0_64] : memref<16x128xf32, #tpu.memory_space<vmem>>, vector<16x128xf32>
      tpu.vector_store %arg33[%c0_63, %c0_64], %141 {strides = array<i32>} : memref<16x128xf32, #tpu.memory_space<vmem>>, vector<16x128xf32>,
    } else {
    }
    %c0 = arith.constant 0 : index
    %c0_4 = arith.constant 0 : index
    %8 = vector.load %arg32[%c0, %c0_4] : memref<16x128xf32, #tpu.memory_space<vmem>>, vector<16x128xf32>
    %9 = arith.truncf %8 : vector<16x128xf32> to vector<16x128xbf16>
    %c0_5 = arith.constant 0 : index
    %c0_6 = arith.constant 0 : index
    %c0_7 = arith.constant 0 : index
    %10 = vector.load %arg17[%c0_5, %c0_6, %c0_7] : memref<1x128x512xbf16, #tpu.memory_space<vmem>>, vector<1x128x512xbf16>
    %11 = vector.shape_cast %10 : vector<1x128x512xbf16> to vector<128x512xbf16>
    %cst = arith.constant dense<0.000000e+00> : vector<16x512xf32>
    %12 = tpu.matmul %9, %11, %cst {dimension_numbers = #tpu.dot_dimension_numbers<[1], [0], [0], [1], [0, 0, 1, 1], [], []>} : vector<16x128xbf16>, vector<128x512xbf16>, vector<16x512xf32> -> vector<16x512xf32>
    %c0_8 = arith.constant 0 : index
    %c0_9 = arith.constant 0 : index
    %c0_10 = arith.constant 0 : index
    %13 = vector.load %arg18[%c0_8, %c0_9, %c0_10] : memref<1x1x512xf32, #tpu.memory_space<vmem>>, vector<1x1x512xf32>
    %14 = vector.shape_cast %13 : vector<1x1x512xf32> to vector<1x512xf32>
    %15 = vector.broadcast %14 : vector<1x512xf32> to vector<16x512xf32>
    %16 = arith.addf %12, %15 : vector<16x512xf32>
    %cst_11 = arith.constant 0.000000e+00 : f32
    %17 = vector.broadcast %cst_11 : f32 to vector<16x512xf32>
    %18 = arith.maximumf %16, %17 : vector<16x512xf32>
    %c0_12 = arith.constant 0 : index
    %c0_13 = arith.constant 0 : index
    %19 = vector.load %arg33[%c0_12, %c0_13] : memref<16x128xf32, #tpu.memory_space<vmem>>, vector<16x128xf32>
    %20 = arith.truncf %18 : vector<16x512xf32> to vector<16x512xbf16>
    %c0_14 = arith.constant 0 : index
    %c0_15 = arith.constant 0 : index
    %c0_16 = arith.constant 0 : index
    %21 = vector.load %arg19[%c0_14, %c0_15, %c0_16] : memref<1x512x128xbf16, #tpu.memory_space<vmem>>, vector<1x512x128xbf16>
    %22 = vector.shape_cast %21 : vector<1x512x128xbf16> to vector<512x128xbf16>
    %cst_17 = arith.constant dense<0.000000e+00> : vector<16x128xf32>
    %23 = tpu.matmul %20, %22, %cst_17 {dimension_numbers = #tpu.dot_dimension_numbers<[1], [0], [0], [1], [0, 0, 1, 1], [], []>} : vector<16x512xbf16>, vector<512x128xbf16>, vector<16x128xf32> -> vector<16x128xf32>
    %24 = arith.addf %19, %23 : vector<16x128xf32>
    %c0_18 = arith.constant 0 : index
    %c0_19 = arith.constant 0 : index
    %25 = vector.load %arg33[%c0_18, %c0_19] : memref<16x128xf32, #tpu.memory_space<vmem>>, vector<16x128xf32>
    tpu.vector_store %arg33[%c0_18, %c0_19], %24 {strides = array<i32>} : memref<16x128xf32, #tpu.memory_space<vmem>>, vector<16x128xf32>,
    %c3_i32 = arith.constant 3 : i32
    %26 = arith.cmpi eq, %arg1, %c3_i32 : i32
    %27 = arith.extui %26 : i1 to i32
    %c0_i32_20 = arith.constant 0 : i32
    %28 = arith.cmpi ne, %27, %c0_i32_20 : i32
    scf.if %28 {
      %c0_23 = arith.constant 0 : index
      %c0_24 = arith.constant 0 : index
      %34 = vector.load %arg32[%c0_23, %c0_24] : memref<16x128xf32, #tpu.memory_space<vmem>>, vector<16x128xf32>
      %c0_25 = arith.constant 0 : index
      %c0_26 = arith.constant 0 : index
      %35 = vector.load %arg33[%c0_25, %c0_26] : memref<16x128xf32, #tpu.memory_space<vmem>>, vector<16x128xf32>
      %36 = arith.addf %34, %35 : vector<16x128xf32>
      %c0_27 = arith.constant 0 : index
      %c0_28 = arith.constant 0 : index
      %c0_29 = arith.constant 0 : index
      %37 = vector.load %arg16[%c0_27, %c0_28, %c0_29] : memref<1x1x128xf32, #tpu.memory_space<vmem>>, vector<1x1x128xf32>
      %38 = vector.shape_cast %37 : vector<1x1x128xf32> to vector<1x128xf32>
      %39 = vector.broadcast %38 : vector<1x128xf32> to vector<16x128xf32>
      %40 = arith.addf %36, %39 : vector<16x128xf32>
      %c0_30 = arith.constant 0 : index
      %c0_31 = arith.constant 0 : index
      %c0_32 = arith.constant 0 : index
      %41 = vector.load %arg14[%c0_30, %c0_31, %c0_32] : memref<1x1x128xf32, #tpu.memory_space<vmem>>, vector<1x1x128xf32>
      %42 = vector.shape_cast %41 : vector<1x1x128xf32> to vector<1x128xf32>
      %c0_33 = arith.constant 0 : index
      %c0_34 = arith.constant 0 : index
      %c0_35 = arith.constant 0 : index
      %43 = vector.load %arg15[%c0_33, %c0_34, %c0_35] : memref<1x1x128xf32, #tpu.memory_space<vmem>>, vector<1x1x128xf32>
      %44 = vector.shape_cast %43 : vector<1x1x128xf32> to vector<1x128xf32>
      %cst_36 = arith.constant dense<0.000000e+00> : vector<16xf32>
      %45 = vector.multi_reduction <add>, %40, %cst_36 [1] : vector<16x128xf32> to vector<16xf32>
      %46 = vector.shape_cast %45 : vector<16xf32> to vector<16x1xf32>
      %cst_37 = arith.constant 1.280000e+02 : f32
      %47 = vector.broadcast %cst_37 : f32 to vector<16x1xf32>
      %48 = arith.divf %46, %47 : vector<16x1xf32>
      %49 = vector.broadcast %48 : vector<16x1xf32> to vector<16x128xf32>
      %50 = arith.subf %40, %49 : vector<16x128xf32>
      %51 = arith.mulf %50, %50 : vector<16x128xf32>
      %cst_38 = arith.constant dense<0.000000e+00> : vector<16xf32>
      %52 = vector.multi_reduction <add>, %51, %cst_38 [1] : vector<16x128xf32> to vector<16xf32>
      %53 = vector.shape_cast %52 : vector<16xf32> to vector<16x1xf32>
      %cst_39 = arith.constant 1.280000e+02 : f32
      %54 = vector.broadcast %cst_39 : f32 to vector<16x1xf32>
      %55 = arith.divf %53, %54 : vector<16x1xf32>
      %56 = vector.broadcast %48 : vector<16x1xf32> to vector<16x128xf32>
      %57 = arith.subf %40, %56 : vector<16x128xf32>
      %cst_40 = arith.constant 9.99999974E-6 : f32
      %58 = vector.broadcast %cst_40 : f32 to vector<16x1xf32>
      %59 = arith.addf %55, %58 : vector<16x1xf32>
      %60 = math.rsqrt %59 : vector<16x1xf32>
      %61 = vector.broadcast %60 : vector<16x1xf32> to vector<16x128xf32>
      %62 = arith.mulf %57, %61 : vector<16x128xf32>
      %63 = vector.broadcast %42 : vector<1x128xf32> to vector<16x128xf32>
      %64 = arith.mulf %62, %63 : vector<16x128xf32>
      %65 = vector.broadcast %44 : vector<1x128xf32> to vector<16x128xf32>
      %66 = arith.addf %64, %65 : vector<16x128xf32>
      %c0_41 = arith.constant 0 : index
      %c0_42 = arith.constant 0 : index
      %67 = vector.load %arg31[%c0_41, %c0_42] : memref<16x128xf32, #tpu.memory_space<vmem>>, vector<16x128xf32>
      tpu.vector_store %arg31[%c0_41, %c0_42], %66 {strides = array<i32>} : memref<16x128xf32, #tpu.memory_space<vmem>>, vector<16x128xf32>,
    } else {
    }
    %c1_i32 = arith.constant 1 : i32
    %29 = arith.cmpi eq, %arg0, %c1_i32 : i32
    %c3_i32_21 = arith.constant 3 : i32
    %30 = arith.cmpi eq, %arg1, %c3_i32_21 : i32
    %31 = arith.andi %29, %30 : i1
    %32 = arith.extui %31 : i1 to i32
    %c0_i32_22 = arith.constant 0 : i32
    %33 = arith.cmpi ne, %32, %c0_i32_22 : i32
    scf.if %33 {
      %c0_23 = arith.constant 0 : index
      %c0_24 = arith.constant 0 : index
      %34 = vector.load %arg31[%c0_23, %c0_24] : memref<16x128xf32, #tpu.memory_space<vmem>>, vector<16x128xf32>
      %35 = arith.truncf %34 : vector<16x128xf32> to vector<16x128xbf16>
      %c0_25 = arith.constant 0 : index
      %c0_26 = arith.constant 0 : index
      %36 = vector.load %arg20[%c0_25, %c0_26] : memref<128x128xbf16, #tpu.memory_space<vmem>>, vector<128x128xbf16>
      %cst_27 = arith.constant dense<0.000000e+00> : vector<16x128xf32>
      %37 = tpu.matmul %35, %36, %cst_27 {dimension_numbers = #tpu.dot_dimension_numbers<[1], [0], [0], [1], [0, 0, 1, 1], [], []>} : vector<16x128xbf16>, vector<128x128xbf16>, vector<16x128xf32> -> vector<16x128xf32>
      %c0_28 = arith.constant 0 : index
      %c0_29 = arith.constant 0 : index
      %38 = vector.load %arg21[%c0_28, %c0_29] : memref<1x128xf32, #tpu.memory_space<vmem>>, vector<1x128xf32>
      %39 = vector.broadcast %38 : vector<1x128xf32> to vector<16x128xf32>
      %40 = arith.addf %37, %39 : vector<16x128xf32>
      %c0_30 = arith.constant 0 : index
      %c0_31 = arith.constant 0 : index
      %41 = vector.load %arg22[%c0_30, %c0_31] : memref<1x128xf32, #tpu.memory_space<vmem>>, vector<1x128xf32>
      %c0_32 = arith.constant 0 : index
      %c0_33 = arith.constant 0 : index
      %42 = vector.load %arg23[%c0_32, %c0_33] : memref<1x128xf32, #tpu.memory_space<vmem>>, vector<1x128xf32>
      %cst_34 = arith.constant dense<0.000000e+00> : vector<16xf32>
      %43 = vector.multi_reduction <add>, %40, %cst_34 [1] : vector<16x128xf32> to vector<16xf32>
      %44 = vector.shape_cast %43 : vector<16xf32> to vector<16x1xf32>
      %cst_35 = arith.constant 1.280000e+02 : f32
      %45 = vector.broadcast %cst_35 : f32 to vector<16x1xf32>
      %46 = arith.divf %44, %45 : vector<16x1xf32>
      %47 = vector.broadcast %46 : vector<16x1xf32> to vector<16x128xf32>
      %48 = arith.subf %40, %47 : vector<16x128xf32>
      %49 = arith.mulf %48, %48 : vector<16x128xf32>
      %cst_36 = arith.constant dense<0.000000e+00> : vector<16xf32>
      %50 = vector.multi_reduction <add>, %49, %cst_36 [1] : vector<16x128xf32> to vector<16xf32>
      %51 = vector.shape_cast %50 : vector<16xf32> to vector<16x1xf32>
      %cst_37 = arith.constant 1.280000e+02 : f32
      %52 = vector.broadcast %cst_37 : f32 to vector<16x1xf32>
      %53 = arith.divf %51, %52 : vector<16x1xf32>
      %54 = vector.broadcast %46 : vector<16x1xf32> to vector<16x128xf32>
      %55 = arith.subf %40, %54 : vector<16x128xf32>
      %cst_38 = arith.constant 9.99999974E-6 : f32
      %56 = vector.broadcast %cst_38 : f32 to vector<16x1xf32>
      %57 = arith.addf %53, %56 : vector<16x1xf32>
      %58 = math.rsqrt %57 : vector<16x1xf32>
      %59 = vector.broadcast %58 : vector<16x1xf32> to vector<16x128xf32>
      %60 = arith.mulf %55, %59 : vector<16x128xf32>
      %61 = vector.broadcast %41 : vector<1x128xf32> to vector<16x128xf32>
      %62 = arith.mulf %60, %61 : vector<16x128xf32>
      %63 = vector.broadcast %42 : vector<1x128xf32> to vector<16x128xf32>
      %64 = arith.addf %62, %63 : vector<16x128xf32>
      %cst_39 = arith.constant 0.000000e+00 : f32
      %65 = vector.broadcast %cst_39 : f32 to vector<16x128xf32>
      %66 = arith.cmpf oge, %64, %65 : vector<16x128xf32>
      %cst_40 = arith.constant 0.00999999977 : f32
      %67 = vector.broadcast %cst_40 : f32 to vector<16x128xf32>
      %68 = arith.mulf %67, %64 : vector<16x128xf32>
      %69 = arith.select %66, %64, %68 : vector<16x128xi1>, vector<16x128xf32>
      %70 = arith.truncf %69 : vector<16x128xf32> to vector<16x128xbf16>
      %c0_41 = arith.constant 0 : index
      %c0_42 = arith.constant 0 : index
      %71 = vector.load %arg24[%c0_41, %c0_42] : memref<128x64xbf16, #tpu.memory_space<vmem>>, vector<128x64xbf16>
      %cst_43 = arith.constant dense<0.000000e+00> : vector<16x64xf32>
      %72 = tpu.matmul %70, %71, %cst_43 {dimension_numbers = #tpu.dot_dimension_numbers<[1], [0], [0], [1], [0, 0, 1, 1], [], []>} : vector<16x128xbf16>, vector<128x64xbf16>, vector<16x64xf32> -> vector<16x64xf32>
      %c0_44 = arith.constant 0 : index
      %c0_45 = arith.constant 0 : index
      %73 = vector.load %arg25[%c0_44, %c0_45] : memref<1x64xf32, #tpu.memory_space<vmem>>, vector<1x64xf32>
      %74 = vector.broadcast %73 : vector<1x64xf32> to vector<16x64xf32>
      %75 = arith.addf %72, %74 : vector<16x64xf32>
      %c0_46 = arith.constant 0 : index
      %c0_47 = arith.constant 0 : index
      %76 = vector.load %arg26[%c0_46, %c0_47] : memref<1x64xf32, #tpu.memory_space<vmem>>, vector<1x64xf32>
      %c0_48 = arith.constant 0 : index
      %c0_49 = arith.constant 0 : index
      %77 = vector.load %arg27[%c0_48, %c0_49] : memref<1x64xf32, #tpu.memory_space<vmem>>, vector<1x64xf32>
      %cst_50 = arith.constant dense<0.000000e+00> : vector<16xf32>
      %78 = vector.multi_reduction <add>, %75, %cst_50 [1] : vector<16x64xf32> to vector<16xf32>
      %79 = vector.shape_cast %78 : vector<16xf32> to vector<16x1xf32>
      %cst_51 = arith.constant 6.400000e+01 : f32
      %80 = vector.broadcast %cst_51 : f32 to vector<16x1xf32>
      %81 = arith.divf %79, %80 : vector<16x1xf32>
      %82 = vector.broadcast %81 : vector<16x1xf32> to vector<16x64xf32>
      %83 = arith.subf %75, %82 : vector<16x64xf32>
      %84 = arith.mulf %83, %83 : vector<16x64xf32>
      %cst_52 = arith.constant dense<0.000000e+00> : vector<16xf32>
      %85 = vector.multi_reduction <add>, %84, %cst_52 [1] : vector<16x64xf32> to vector<16xf32>
      %86 = vector.shape_cast %85 : vector<16xf32> to vector<16x1xf32>
      %cst_53 = arith.constant 6.400000e+01 : f32
      %87 = vector.broadcast %cst_53 : f32 to vector<16x1xf32>
      %88 = arith.divf %86, %87 : vector<16x1xf32>
      %89 = vector.broadcast %81 : vector<16x1xf32> to vector<16x64xf32>
      %90 = arith.subf %75, %89 : vector<16x64xf32>
      %cst_54 = arith.constant 9.99999974E-6 : f32
      %91 = vector.broadcast %cst_54 : f32 to vector<16x1xf32>
      %92 = arith.addf %88, %91 : vector<16x1xf32>
      %93 = math.rsqrt %92 : vector<16x1xf32>
      %94 = vector.broadcast %93 : vector<16x1xf32> to vector<16x64xf32>
      %95 = arith.mulf %90, %94 : vector<16x64xf32>
      %96 = vector.broadcast %76 : vector<1x64xf32> to vector<16x64xf32>
      %97 = arith.mulf %95, %96 : vector<16x64xf32>
      %98 = vector.broadcast %77 : vector<1x64xf32> to vector<16x64xf32>
      %99 = arith.addf %97, %98 : vector<16x64xf32>
      %cst_55 = arith.constant 0.000000e+00 : f32
      %100 = vector.broadcast %cst_55 : f32 to vector<16x64xf32>
      %101 = arith.cmpf oge, %99, %100 : vector<16x64xf32>
      %cst_56 = arith.constant 0.00999999977 : f32
      %102 = vector.broadcast %cst_56 : f32 to vector<16x64xf32>
      %103 = arith.mulf %102, %99 : vector<16x64xf32>
      %104 = arith.select %101, %99, %103 : vector<16x64xi1>, vector<16x64xf32>
      %105 = arith.truncf %104 : vector<16x64xf32> to vector<16x64xbf16>
      %c0_57 = arith.constant 0 : index
      %c0_58 = arith.constant 0 : index
      %106 = vector.load %arg28[%c0_57, %c0_58] : memref<64x128xbf16, #tpu.memory_space<vmem>>, vector<64x128xbf16>
      %cst_59 = arith.constant dense<0.000000e+00> : vector<16x128xf32>
      %107 = tpu.matmul %105, %106, %cst_59 {dimension_numbers = #tpu.dot_dimension_numbers<[1], [0], [0], [1], [0, 0, 1, 1], [], []>} : vector<16x64xbf16>, vector<64x128xbf16>, vector<16x128xf32> -> vector<16x128xf32>
      %c0_60 = arith.constant 0 : index
      %c0_61 = arith.constant 0 : index
      %108 = vector.load %arg29[%c0_60, %c0_61] : memref<1x128xf32, #tpu.memory_space<vmem>>, vector<1x128xf32>
      %109 = vector.broadcast %108 : vector<1x128xf32> to vector<16x128xf32>
      %110 = arith.addf %107, %109 : vector<16x128xf32>
      %111 = math.tanh %110 : vector<16x128xf32>
      %c0_62 = arith.constant 0 : index
      %c0_63 = arith.constant 0 : index
      %112 = vector.load %arg30[%c0_62, %c0_63] : memref<16x128xf32, #tpu.memory_space<vmem>>, vector<16x128xf32>
      tpu.vector_store %arg30[%c0_62, %c0_63], %111 {strides = array<i32>} : memref<16x128xf32, #tpu.memory_space<vmem>>, vector<16x128xf32>,
    } else {
    }
    return
  }
  func.func @transform_0(%arg0: i32, %arg1: i32) -> (i32, i32) {
    %c0_i32 = arith.constant 0 : i32
    %c0_i32_0 = arith.constant 0 : i32
    %c0_i32_1 = arith.constant 0 : i32
    return %c0_i32, %c0_i32_0 : i32, i32
  }
  func.func @transform_1(%arg0: i32, %arg1: i32) -> (i32, i32) {
    %c0_i32 = arith.constant 0 : i32
    %c0_i32_0 = arith.constant 0 : i32
    %c0_i32_1 = arith.constant 0 : i32
    return %c0_i32, %c0_i32_0 : i32, i32
  }
  func.func @transform_2(%arg0: i32, %arg1: i32) -> (i32, i32) {
    %c0_i32 = arith.constant 0 : i32
    %c0_i32_0 = arith.constant 0 : i32
    %c0_i32_1 = arith.constant 0 : i32
    return %c0_i32, %c0_i32_0 : i32, i32
  }
  func.func @transform_3(%arg0: i32, %arg1: i32) -> (i32, i32) {
    %c0_i32 = arith.constant 0 : i32
    %c0_i32_0 = arith.constant 0 : i32
    %c0_i32_1 = arith.constant 0 : i32
    return %c0_i32, %c0_i32_0 : i32, i32
  }
  func.func @transform_4(%arg0: i32, %arg1: i32) -> (i32, i32) {
    %c0_i32 = arith.constant 0 : i32
    %c0_i32_0 = arith.constant 0 : i32
    %c0_i32_1 = arith.constant 0 : i32
    return %c0_i32, %c0_i32_0 : i32, i32
  }
  func.func @transform_5(%arg0: i32, %arg1: i32) -> (i32, i32) {
    %c0_i32 = arith.constant 0 : i32
    %c0_i32_0 = arith.constant 0 : i32
    %c0_i32_1 = arith.constant 0 : i32
    return %c0_i32, %c0_i32_0 : i32, i32
  }
  func.func @transform_6(%arg0: i32, %arg1: i32) -> (i32, i32, i32) {
    %c0_i32 = arith.constant 0 : i32
    %c0_i32_0 = arith.constant 0 : i32
    %c0_i32_1 = arith.constant 0 : i32
    return %arg0, %c0_i32, %c0_i32_0 : i32, i32, i32
  }
  func.func @transform_7(%arg0: i32, %arg1: i32) -> (i32, i32, i32) {
    %c0_i32 = arith.constant 0 : i32
    %c0_i32_0 = arith.constant 0 : i32
    %c0_i32_1 = arith.constant 0 : i32
    return %arg0, %c0_i32, %c0_i32_0 : i32, i32, i32
  }
  func.func @transform_8(%arg0: i32, %arg1: i32) -> (i32, i32, i32) {
    %c0_i32 = arith.constant 0 : i32
    %c0_i32_0 = arith.constant 0 : i32
    %c0_i32_1 = arith.constant 0 : i32
    return %arg0, %c0_i32, %c0_i32_0 : i32, i32, i32
  }
  func.func @transform_9(%arg0: i32, %arg1: i32) -> (i32, i32, i32) {
    %c0_i32 = arith.constant 0 : i32
    %c0_i32_0 = arith.constant 0 : i32
    %c0_i32_1 = arith.constant 0 : i32
    return %arg0, %c0_i32, %c0_i32_0 : i32, i32, i32
  }
  func.func @transform_10(%arg0: i32, %arg1: i32) -> (i32, i32, i32) {
    %c0_i32 = arith.constant 0 : i32
    %c0_i32_0 = arith.constant 0 : i32
    %c0_i32_1 = arith.constant 0 : i32
    return %arg0, %c0_i32, %c0_i32_0 : i32, i32, i32
  }
  func.func @transform_11(%arg0: i32, %arg1: i32) -> (i32, i32, i32) {
    %c0_i32 = arith.constant 0 : i32
    %c0_i32_0 = arith.constant 0 : i32
    %c0_i32_1 = arith.constant 0 : i32
    return %arg0, %c0_i32, %c0_i32_0 : i32, i32, i32
  }
  func.func @transform_12(%arg0: i32, %arg1: i32) -> (i32, i32, i32) {
    %c0_i32 = arith.constant 0 : i32
    %c0_i32_0 = arith.constant 0 : i32
    %c0_i32_1 = arith.constant 0 : i32
    return %arg0, %c0_i32, %c0_i32_0 : i32, i32, i32
  }
  func.func @transform_13(%arg0: i32, %arg1: i32) -> (i32, i32, i32) {
    %c0_i32 = arith.constant 0 : i32
    %c0_i32_0 = arith.constant 0 : i32
    %c0_i32_1 = arith.constant 0 : i32
    return %arg0, %c0_i32, %c0_i32_0 : i32, i32, i32
  }
  func.func @transform_14(%arg0: i32, %arg1: i32) -> (i32, i32, i32) {
    %c0_i32 = arith.constant 0 : i32
    %c0_i32_0 = arith.constant 0 : i32
    %c0_i32_1 = arith.constant 0 : i32
    return %arg0, %c0_i32, %c0_i32_0 : i32, i32, i32
  }
  func.func @transform_15(%arg0: i32, %arg1: i32) -> (i32, i32, i32) {
    %c0_i32 = arith.constant 0 : i32
    %c0_i32_0 = arith.constant 0 : i32
    return %arg0, %c0_i32, %arg1 : i32, i32, i32
  }
  func.func @transform_16(%arg0: i32, %arg1: i32) -> (i32, i32, i32) {
    %c0_i32 = arith.constant 0 : i32
    %c0_i32_0 = arith.constant 0 : i32
    return %arg0, %c0_i32, %arg1 : i32, i32, i32
  }
  func.func @transform_17(%arg0: i32, %arg1: i32) -> (i32, i32, i32) {
    %c0_i32 = arith.constant 0 : i32
    %c0_i32_0 = arith.constant 0 : i32
    return %arg0, %arg1, %c0_i32 : i32, i32, i32
  }
  func.func @transform_18(%arg0: i32, %arg1: i32) -> (i32, i32) {
    %c0_i32 = arith.constant 0 : i32
    %c0_i32_0 = arith.constant 0 : i32
    %c0_i32_1 = arith.constant 0 : i32
    return %c0_i32, %c0_i32_0 : i32, i32
  }
  func.func @transform_19(%arg0: i32, %arg1: i32) -> (i32, i32) {
    %c0_i32 = arith.constant 0 : i32
    %c0_i32_0 = arith.constant 0 : i32
    %c0_i32_1 = arith.constant 0 : i32
    return %c0_i32, %c0_i32_0 : i32, i32
  }
  func.func @transform_20(%arg0: i32, %arg1: i32) -> (i32, i32) {
    %c0_i32 = arith.constant 0 : i32
    %c0_i32_0 = arith.constant 0 : i32
    %c0_i32_1 = arith.constant 0 : i32
    return %c0_i32, %c0_i32_0 : i32, i32
  }
  func.func @transform_21(%arg0: i32, %arg1: i32) -> (i32, i32) {
    %c0_i32 = arith.constant 0 : i32
    %c0_i32_0 = arith.constant 0 : i32
    %c0_i32_1 = arith.constant 0 : i32
    return %c0_i32, %c0_i32_0 : i32, i32
  }
  func.func @transform_22(%arg0: i32, %arg1: i32) -> (i32, i32) {
    %c0_i32 = arith.constant 0 : i32
    %c0_i32_0 = arith.constant 0 : i32
    %c0_i32_1 = arith.constant 0 : i32
    return %c0_i32, %c0_i32_0 : i32, i32
  }
  func.func @transform_23(%arg0: i32, %arg1: i32) -> (i32, i32) {
    %c0_i32 = arith.constant 0 : i32
    %c0_i32_0 = arith.constant 0 : i32
    %c0_i32_1 = arith.constant 0 : i32
    return %c0_i32, %c0_i32_0 : i32, i32
  }
  func.func @transform_24(%arg0: i32, %arg1: i32) -> (i32, i32) {
    %c0_i32 = arith.constant 0 : i32
    %c0_i32_0 = arith.constant 0 : i32
    %c0_i32_1 = arith.constant 0 : i32
    return %c0_i32, %c0_i32_0 : i32, i32
  }
  func.func @transform_25(%arg0: i32, %arg1: i32) -> (i32, i32) {
    %c0_i32 = arith.constant 0 : i32
    %c0_i32_0 = arith.constant 0 : i32
    %c0_i32_1 = arith.constant 0 : i32
    return %c0_i32, %c0_i32_0 : i32, i32
  }
  func.func @transform_26(%arg0: i32, %arg1: i32) -> (i32, i32) {
    %c0_i32 = arith.constant 0 : i32
    %c0_i32_0 = arith.constant 0 : i32
    %c0_i32_1 = arith.constant 0 : i32
    return %c0_i32, %c0_i32_0 : i32, i32
  }
  func.func @transform_27(%arg0: i32, %arg1: i32) -> (i32, i32) {
    %c0_i32 = arith.constant 0 : i32
    %c0_i32_0 = arith.constant 0 : i32
    %c0_i32_1 = arith.constant 0 : i32
    return %c0_i32, %c0_i32_0 : i32, i32
  }
  func.func @transform_28(%arg0: i32, %arg1: i32) -> (i32, i32) {
    %c0_i32 = arith.constant 0 : i32
    %c0_i32_0 = arith.constant 0 : i32
    %c0_i32_1 = arith.constant 0 : i32
    return %c0_i32, %c0_i32_0 : i32, i32
  }
}

</mosaic_0001>

<llo_original>
// kernel: tpu_custom_call.1
$region0: #{tpu_custom_call.1}
  #allocation0 [shape = 'u32[]', space=smem, size = 0x4, offset = 0x4, fixed_abs, tag = 'smem constant byte address 0x4 - core index']
  #allocation1 [shape = 'u32[144,128]{1,0:T(1,128)}', space=vmem, size = 0x12000, scoped, tag = 'internal scratch']
  #allocation2 [shape = 'f32[16,128]{1,0:T(8,128)}', space=vmem, size = 0x2000, scoped, tag = 'scratch operand']
  #allocation3 [shape = 'f32[16,128]{1,0:T(8,128)}', space=vmem, size = 0x2000, scoped, tag = 'scratch operand']
  #allocation4 [shape = 'f32[16,128]{1,0:T(8,128)}', space=vmem, size = 0x2000, scoped, tag = 'scratch operand']
  %s0 = inlined_call_operand.hbm [shape: f32[16,16], index: 0, kind: input, shape index: {}]
  %s1 = inlined_call_operand.hbm [shape: f32[16,128], index: 1, kind: input, shape index: {}]
  %s2 = inlined_call_operand.vmem [shape: f32[16,1], index: 2, kind: input, shape index: {}]
  %s3 = inlined_call_operand.hbm [shape: f32[1,16], index: 3, kind: input, shape index: {}]
  %s4 = inlined_call_operand.hbm [shape: bf16[16,128], index: 4, kind: input, shape index: {}]
  %s5 = inlined_call_operand.hbm [shape: f32[1,128], index: 5, kind: input, shape index: {}]
  %s6 = inlined_call_operand.hbm [shape: bf16[2,128,384], index: 6, kind: input, shape index: {}]
  %s7 = inlined_call_operand.hbm [shape: f32[2,1,384], index: 7, kind: input, shape index: {}]
  %s8 = inlined_call_operand.hbm [shape: bf16[2,128,128], index: 8, kind: input, shape index: {}]
  %s9 = inlined_call_operand.hbm [shape: f32[2,1,128], index: 9, kind: input, shape index: {}]
  %s10 = inlined_call_operand.hbm [shape: f32[2,1,128], index: 10, kind: input, shape index: {}]
  %s11 = inlined_call_operand.hbm [shape: f32[2,1,128], index: 11, kind: input, shape index: {}]
  %s12 = inlined_call_operand.hbm [shape: f32[2,1,128], index: 12, kind: input, shape index: {}]
  %s13 = inlined_call_operand.hbm [shape: f32[2,1,128], index: 13, kind: input, shape index: {}]
  %s14 = inlined_call_operand.hbm [shape: f32[2,1,128], index: 14, kind: input, shape index: {}]
  %s15 = inlined_call_operand.hbm [shape: bf16[2,128,2048], index: 15, kind: input, shape index: {}]
  %s16 = inlined_call_operand.vmem [shape: f32[2,1,2048], index: 16, kind: input, shape index: {}]
  %s17 = inlined_call_operand.hbm [shape: bf16[2,2048,128], index: 17, kind: input, shape index: {}]
  %s18 = inlined_call_operand.vmem [shape: bf16[128,128], index: 18, kind: input, shape index: {}]
  %s19 = inlined_call_operand.hbm [shape: f32[1,128], index: 19, kind: input, shape index: {}]
  %s20 = inlined_call_operand.hbm [shape: f32[1,128], index: 20, kind: input, shape index: {}]
  %s21 = inlined_call_operand.hbm [shape: f32[1,128], index: 21, kind: input, shape index: {}]
  %s22 = inlined_call_operand.vmem [shape: bf16[128,64], index: 22, kind: input, shape index: {}]
  %s23 = inlined_call_operand.hbm [shape: f32[1,64], index: 23, kind: input, shape index: {}]
  %s24 = inlined_call_operand.hbm [shape: f32[1,64], index: 24, kind: input, shape index: {}]
  %s25 = inlined_call_operand.hbm [shape: f32[1,64], index: 25, kind: input, shape index: {}]
  %s26 = inlined_call_operand.vmem [shape: bf16[64,128], index: 26, kind: input, shape index: {}]
  %s27 = inlined_call_operand.vmem [shape: f32[1,128], index: 27, kind: input, shape index: {}]
  %s28 = inlined_call_operand.hbm [shape: f32[16,128], index: 28, kind: output, shape index: {}]
  %s29 = sld [smem:[#allocation0]]
  $region249: #{tpu_custom_call.1} parent=0
    _
  %s31 = ssub.s32 1, %s29
  %s32 = scalar_select 0, %s31, %s29
  $region1: #{tpu_custom_call.1} parent=0
    #allocation5 [shape = 'u8[8192]{0}', space=vmem, size = 0x2000, scoped, tag = 'input window, operand 0, single buffered']
    #allocation6 [shape = 's32[2]{0}', space=sflag, size = 0x8, scoped, tag = 'scoped memory for tpu_custom_call.1']
    #allocation7 [shape = 's32[2]{0}', space=sflag, size = 0x8, scoped, tag = 'scoped memory for tpu_custom_call.1']
    #allocation8 [shape = 'u8[8192]{0}', space=vmem, size = 0x2000, scoped, tag = 'input window, operand 1, single buffered']
    #allocation9 [shape = 's32[1]{0}', space=sflag, size = 0x4, scoped, tag = 'scoped memory for tpu_custom_call.1']
    #allocation10 [shape = 'u8[512]{0}', space=vmem, size = 0x400, scoped, tag = 'input window, operand 3, single buffered']
    #allocation11 [shape = 'u8[4096]{0}', space=vmem, size = 0x1000, scoped, tag = 'input window, operand 4, single buffered']
    #allocation12 [shape = 's32[1]{0}', space=sflag, size = 0x4, scoped, tag = 'scoped memory for tpu_custom_call.1']
    #allocation13 [shape = 'u8[512]{0}', space=vmem, size = 0x400, scoped, tag = 'input window, operand 5, single buffered']
    #allocation14 [shape = 'u8[196608]{0}', space=vmem, size = 0x30000, scoped, tag = 'input window, operand 6']
    #allocation15 [shape = 's32[2]{0}', space=sflag, size = 0x8, scoped, tag = 'scoped memory for tpu_custom_call.1']
    #allocation16 [shape = 'u8[3072]{0}', space=vmem, size = 0xc00, scoped, tag = 'input window, operand 7']
    #allocation17 [shape = 'u8[65536]{0}', space=vmem, size = 0x10000, scoped, tag = 'input window, operand 8']
    #allocation18 [shape = 's32[2]{0}', space=sflag, size = 0x8, scoped, tag = 'scoped memory for tpu_custom_call.1']
    #allocation19 [shape = 'u8[1024]{0}', space=vmem, size = 0x400, scoped, tag = 'input window, operand 9']
    #allocation20 [shape = 'u8[1024]{0}', space=vmem, size = 0x400, scoped, tag = 'input window, operand 10']
    #allocation21 [shape = 's32[2]{0}', space=sflag, size = 0x8, scoped, tag = 'scoped memory for tpu_custom_call.1']
    #allocation22 [shape = 'u8[1024]{0}', space=vmem, size = 0x400, scoped, tag = 'input window, operand 11']
    #allocation23 [shape = 'u8[1024]{0}', space=vmem, size = 0x400, scoped, tag = 'input window, operand 12']
    #allocation24 [shape = 's32[2]{0}', space=sflag, size = 0x8, scoped, tag = 'scoped memory for tpu_custom_call.1']
    #allocation25 [shape = 'u8[1024]{0}', space=vmem, size = 0x400, scoped, tag = 'input window, operand 13']
    #allocation26 [shape = 'u8[1024]{0}', space=vmem, size = 0x400, scoped, tag = 'input window, operand 14']
    #allocation27 [shape = 's32[2]{0}', space=sflag, size = 0x8, scoped, tag = 'scoped memory for tpu_custom_call.1']
    #allocation28 [shape = 'u8[262144]{0}', space=vmem, size = 0x40000, scoped, tag = 'input window, operand 15']
    #allocation29 [shape = 'u8[262144]{0}', space=vmem, size = 0x40000, scoped, tag = 'input window, operand 17']
    #allocation30 [shape = 's32[2]{0}', space=sflag, size = 0x8, scoped, tag = 'scoped memory for tpu_custom_call.1']
    #allocation31 [shape = 'u8[512]{0}', space=vmem, size = 0x400, scoped, tag = 'input window, operand 19, single buffered']
    #allocation32 [shape = 'u8[512]{0}', space=vmem, size = 0x400, scoped, tag = 'input window, operand 20, single buffered']
    #allocation33 [shape = 's32[1]{0}', space=sflag, size = 0x4, scoped, tag = 'scoped memory for tpu_custom_call.1']
    #allocation34 [shape = 'u8[512]{0}', space=vmem, size = 0x400, scoped, tag = 'input window, operand 21, single buffered']
    #allocation35 [shape = 'u8[512]{0}', space=vmem, size = 0x400, scoped, tag = 'input window, operand 23, single buffered']
    #allocation36 [shape = 's32[1]{0}', space=sflag, size = 0x4, scoped, tag = 'scoped memory for tpu_custom_call.1']
    #allocation37 [shape = 'u8[512]{0}', space=vmem, size = 0x400, scoped, tag = 'input window, operand 24, single buffered']
    #allocation38 [shape = 'u8[512]{0}', space=vmem, size = 0x400, scoped, tag = 'input window, operand 25, single buffered']
    #allocation39 [shape = 's32[1]{0}', space=sflag, size = 0x4, scoped, tag = 'scoped memory for tpu_custom_call.1']
    #allocation40 [shape = 'u8[8192]{0}', space=vmem, size = 0x2000, scoped, tag = 'output window, operand 0, single buffered']
    %33 = vsyncpa [#allocation6], 0
    %34 = vsyncpa [#allocation9], 0
    %35 = vsyncpa [#allocation12], 0
    %36 = vsyncpa [#allocation15], 0
    %s37 = scalar_lea.sflag [#allocation15], 1
    %38 = vsyncpa %s37, 0
    %39 = vsyncpa [#allocation18], 0
    %s40 = scalar_lea.sflag [#allocation18], 1
    %41 = vsyncpa %s40, 0
    %42 = vsyncpa [#allocation21], 0
    %s43 = scalar_lea.sflag [#allocation21], 1
    %44 = vsyncpa %s43, 0
    %45 = vsyncpa [#allocation24], 0
    %s46 = scalar_lea.sflag [#allocation24], 1
    %47 = vsyncpa %s46, 0
    %48 = vsyncpa [#allocation27], 0
    %s49 = scalar_lea.sflag [#allocation27], 1
    %50 = vsyncpa %s49, 0
    %51 = vsyncpa [#allocation30], 0
    %s52 = scalar_lea.sflag [#allocation30], 1
    %53 = vsyncpa %s52, 0
    %54 = vsyncpa [#allocation33], 0
    %55 = vsyncpa [#allocation36], 0
    %56 = vsyncpa [#allocation39], 0
    %57 = vsyncpa [#allocation7], 0
    loop: start=0, step=1, limit=10
    $region2: #{tpu_custom_call.1} parent=1 // loop_pre_header
      _
    $region3: #{tpu_custom_call.1} parent=1 // loop_header
      %s59 = sphi 0, %s63
      %p60 = scmp.ge.s32.totalorder %s59, 10
      %s66 = sphi 0, %s78
      %s67 = sphi 0, %s74
      %s68 = sphi 0, %s66
      %s69 = sphi 0, %s67
      %s70 = sphi 0, %s68
      %s71 = sphi 0, %s69
      %s79 = sphi 0, %s79
      %s81 = sphi 0, %s79
      %s82 = sphi 0, %s81
      %s96 = sphi 0, %s82
      %s100 = sphi 0, %s100
      %s102 = sphi 0, %s100
      %s103 = sphi 0, %s102
      %s117 = sphi 0, %s103
      %s121 = sphi 0, %s121
      %s123 = sphi 0, %s121
      %s124 = sphi 0, %s123
      %s138 = sphi 0, %s124
      %s142 = sphi 0, %s142
      %s144 = sphi 0, %s142
      %s145 = sphi 0, %s144
      %s159 = sphi 0, %s145
      %s163 = sphi 0, %s163
      %s165 = sphi 0, %s163
      %s166 = sphi 0, %s165
      %s180 = sphi 0, %s166
      %s184 = sphi 0, %s184
      %s186 = sphi 0, %s184
      %s187 = sphi 0, %s186
      %s201 = sphi 0, %s187
      %s207 = sphi 0, %s209
      %s210 = sphi 0, %s207
      %s211 = sphi 0, %s210
      %s227 = sphi 0, %s211
      %s233 = sphi 0, %s235
      %s236 = sphi 0, %s233
      %s237 = sphi 0, %s236
      %s253 = sphi 0, %s237
      %s259 = sphi 0, %s261
      %s262 = sphi 0, %s259
      %s263 = sphi 0, %s262
      %s279 = sphi 0, %s263
      %s285 = sphi 0, %s287
      %s288 = sphi 0, %s285
      %s289 = sphi 0, %s288
      %s305 = sphi 0, %s289
      %s311 = sphi 0, %s313
      %s314 = sphi 0, %s311
      %s315 = sphi 0, %s314
      %s331 = sphi 0, %s315
      %s337 = sphi 0, %s339
      %s340 = sphi 0, %s337
      %s341 = sphi 0, %s340
      %s357 = sphi 0, %s341
      %s363 = sphi 0, %s365
      %s366 = sphi 0, %s363
      %s367 = sphi 0, %s366
      %s383 = sphi 0, %s367
      %s389 = sphi 0, %s391
      %s392 = sphi 0, %s389
      %s393 = sphi 0, %s392
      %s409 = sphi 0, %s393
      %s415 = sphi 0, %s417
      %s418 = sphi 0, %s415
      %s419 = sphi 0, %s418
      %s435 = sphi 0, %s419
      %s443 = sphi 0, %s445
      %s446 = sphi 0, %s443
      %s447 = sphi 0, %s446
      %s463 = sphi 0, %s447
      %s471 = sphi 0, %s473
      %s474 = sphi 0, %s471
      %s475 = sphi 0, %s474
      %s491 = sphi 0, %s475
      %s499 = sphi 0, %s501
      %s502 = sphi 0, %s499
      %s503 = sphi 0, %s502
      %s519 = sphi 0, %s503
      %s523 = sphi 0, %s523
      %s525 = sphi 0, %s523
      %s526 = sphi 0, %s525
      %s540 = sphi 0, %s526
      %s544 = sphi 0, %s544
      %s546 = sphi 0, %s544
      %s547 = sphi 0, %s546
      %s561 = sphi 0, %s547
      %s565 = sphi 0, %s565
      %s567 = sphi 0, %s565
      %s568 = sphi 0, %s567
      %s582 = sphi 0, %s568
      %s586 = sphi 0, %s586
      %s588 = sphi 0, %s586
      %s589 = sphi 0, %s588
      %s603 = sphi 0, %s589
      %s607 = sphi 0, %s607
      %s609 = sphi 0, %s607
      %s610 = sphi 0, %s609
      %s624 = sphi 0, %s610
      %s628 = sphi 0, %s628
      %s630 = sphi 0, %s628
      %s631 = sphi 0, %s630
      %s645 = sphi 0, %s631
      %s649 = sphi 0, %s649
      %s651 = sphi 0, %s649
      %s652 = sphi 0, %s651
      %s666 = sphi 0, %s652
      %s670 = sphi 0, %s670
      %s672 = sphi 0, %s670
      %s673 = sphi 0, %s672
      %s687 = sphi 0, %s673
      %s691 = sphi 0, %s691
      %s693 = sphi 0, %s691
      %s694 = sphi 0, %s693
      %s708 = sphi 0, %s694
      %s712 = sphi 0, %s712
      %s714 = sphi 0, %s712
      %s715 = sphi 0, %s714
      %s729 = sphi 0, %s715
      %s733 = sphi 0, %s733
      %s735 = sphi 0, %s733
      %s736 = sphi 0, %s735
      %s750 = sphi 0, %s736
    $region4: #{tpu_custom_call.1} parent=1 // loop_header_branch
      %62 = sbr.rel (%p60) target = $region8
    $region5: #{tpu_custom_call.1} parent=1 // loop_body
      %s64 = ssub.s32 %s59, 1
      %s65 = ssub.s32 %s59, 2
      %s72 = sadd.s32 1, %s67
      %p73 = scmp.ge.s32.totalorder %s72, 4
      %s74 = scalar_select %p73, 0, %s72
      %s75 = sadd.s32 1, %s66
      %s76 = scalar_select %p73, %s75, %s66
      %p77 = scmp.ge.s32.totalorder %s76, 2
      %s78 = scalar_select %p77, 0, %s76
      %s80 = sadd.s32 %s79, 1
      %p83 = scmp.eq.s32.totalorder %s59, 7
      %p84 = scmp.ne.s32.totalorder %s79, %s81
      %p85 = scmp.eq.s32.totalorder %s59, 0
      %p86 = por %p84, %p85
      %p87 = scmp.ne.s32.totalorder %s79, %s81
      %p88 = scmp.eq.s32.totalorder %s64, 7
      %p89 = por %p87, %p88
      %p90 = scmp.ne.s32.totalorder %s81, %s82
      %p91 = scmp.eq.s32.totalorder %s64, 0
      %p92 = por %p90, %p91
      %p93 = scmp.ne.s32.totalorder %s81, %s82
      %p94 = scmp.eq.s32.totalorder %s65, 7
      %p95 = por %p93, %p94
      %p97 = scmp.ne.s32.totalorder %s82, %s96
      %p98 = scmp.eq.s32.totalorder %s65, 0
      %p99 = por %p97, %p98
      %s101 = sadd.s32 %s100, 1
      %p104 = scmp.eq.s32.totalorder %s59, 7
      %p105 = scmp.ne.s32.totalorder %s100, %s102
      %p106 = scmp.eq.s32.totalorder %s59, 0
      %p107 = por %p105, %p106
      %p108 = scmp.ne.s32.totalorder %s100, %s102
      %p109 = scmp.eq.s32.totalorder %s64, 7
      %p110 = por %p108, %p109
      %p111 = scmp.ne.s32.totalorder %s102, %s103
      %p112 = scmp.eq.s32.totalorder %s64, 0
      %p113 = por %p111, %p112
      %p114 = scmp.ne.s32.totalorder %s102, %s103
      %p115 = scmp.eq.s32.totalorder %s65, 7
      %p116 = por %p114, %p115
      %p118 = scmp.ne.s32.totalorder %s103, %s117
      %p119 = scmp.eq.s32.totalorder %s65, 0
      %p120 = por %p118, %p119
      %s122 = sadd.s32 %s121, 1
      %p125 = scmp.eq.s32.totalorder %s59, 7
      %p126 = scmp.ne.s32.totalorder %s121, %s123
      %p127 = scmp.eq.s32.totalorder %s59, 0
      %p128 = por %p126, %p127
      %p129 = scmp.ne.s32.totalorder %s121, %s123
      %p130 = scmp.eq.s32.totalorder %s64, 7
      %p131 = por %p129, %p130
      %p132 = scmp.ne.s32.totalorder %s123, %s124
      %p133 = scmp.eq.s32.totalorder %s64, 0
      %p134 = por %p132, %p133
      %p135 = scmp.ne.s32.totalorder %s123, %s124
      %p136 = scmp.eq.s32.totalorder %s65, 7
      %p137 = por %p135, %p136
      %p139 = scmp.ne.s32.totalorder %s124, %s138
      %p140 = scmp.eq.s32.totalorder %s65, 0
      %p141 = por %p139, %p140
      %s143 = sadd.s32 %s142, 1
      %p146 = scmp.eq.s32.totalorder %s59, 7
      %p147 = scmp.ne.s32.totalorder %s142, %s144
      %p148 = scmp.eq.s32.totalorder %s59, 0
      %p149 = por %p147, %p148
      %p150 = scmp.ne.s32.totalorder %s142, %s144
      %p151 = scmp.eq.s32.totalorder %s64, 7
      %p152 = por %p150, %p151
      %p153 = scmp.ne.s32.totalorder %s144, %s145
      %p154 = scmp.eq.s32.totalorder %s64, 0
      %p155 = por %p153, %p154
      %p156 = scmp.ne.s32.totalorder %s144, %s145
      %p157 = scmp.eq.s32.totalorder %s65, 7
      %p158 = por %p156, %p157
      %p160 = scmp.ne.s32.totalorder %s145, %s159
      %p161 = scmp.eq.s32.totalorder %s65, 0
      %p162 = por %p160, %p161
      %s164 = sadd.s32 %s163, 1
      %p167 = scmp.eq.s32.totalorder %s59, 7
      %p168 = scmp.ne.s32.totalorder %s163, %s165
      %p169 = scmp.eq.s32.totalorder %s59, 0
      %p170 = por %p168, %p169
      %p171 = scmp.ne.s32.totalorder %s163, %s165
      %p172 = scmp.eq.s32.totalorder %s64, 7
      %p173 = por %p171, %p172
      %p174 = scmp.ne.s32.totalorder %s165, %s166
      %p175 = scmp.eq.s32.totalorder %s64, 0
      %p176 = por %p174, %p175
      %p177 = scmp.ne.s32.totalorder %s165, %s166
      %p178 = scmp.eq.s32.totalorder %s65, 7
      %p179 = por %p177, %p178
      %p181 = scmp.ne.s32.totalorder %s166, %s180
      %p182 = scmp.eq.s32.totalorder %s65, 0
      %p183 = por %p181, %p182
      %s185 = sadd.s32 %s184, 1
      %p188 = scmp.eq.s32.totalorder %s59, 7
      %p189 = scmp.ne.s32.totalorder %s184, %s186
      %p190 = scmp.eq.s32.totalorder %s59, 0
      %p191 = por %p189, %p190
      %p192 = scmp.ne.s32.totalorder %s184, %s186
      %p193 = scmp.eq.s32.totalorder %s64, 7
      %p194 = por %p192, %p193
      %p195 = scmp.ne.s32.totalorder %s186, %s187
      %p196 = scmp.eq.s32.totalorder %s64, 0
      %p197 = por %p195, %p196
      %p198 = scmp.ne.s32.totalorder %s186, %s187
      %p199 = scmp.eq.s32.totalorder %s65, 7
      %p200 = por %p198, %p199
      %p202 = scmp.ne.s32.totalorder %s187, %s201
      %p203 = scmp.eq.s32.totalorder %s65, 0
      %p204 = por %p202, %p203
      %s205 = ssub.s32 %s66, %s78
      %p206 = scmp.eq.s32.totalorder %s205, 0
      %s208 = sadd.s32 %s207, 1
      %s209 = scalar_select %p206, %s207, %s208
      %p212 = pneg %p206
      %p213 = scmp.eq.s32.totalorder %s59, 7
      %p214 = por %p212, %p213
      %p215 = scmp.ne.s32.totalorder %s207, %s210
      %p216 = scmp.eq.s32.totalorder %s59, 0
      %p217 = por %p215, %p216
      %p218 = scmp.ne.s32.totalorder %s207, %s210
      %p219 = scmp.eq.s32.totalorder %s64, 7
      %p220 = por %p218, %p219
      %p221 = scmp.ne.s32.totalorder %s210, %s211
      %p222 = scmp.eq.s32.totalorder %s64, 0
      %p223 = por %p221, %p222
      %p224 = scmp.ne.s32.totalorder %s210, %s211
      %p225 = scmp.eq.s32.totalorder %s65, 7
      %p226 = por %p224, %p225
      %p228 = scmp.ne.s32.totalorder %s211, %s227
      %p229 = scmp.eq.s32.totalorder %s65, 0
      %p230 = por %p228, %p229
      %s231 = ssub.s32 %s66, %s78
      %p232 = scmp.eq.s32.totalorder %s231, 0
      %s234 = sadd.s32 %s233, 1
      %s235 = scalar_select %p232, %s233, %s234
      %p238 = pneg %p232
      %p239 = scmp.eq.s32.totalorder %s59, 7
      %p240 = por %p238, %p239
      %p241 = scmp.ne.s32.totalorder %s233, %s236
      %p242 = scmp.eq.s32.totalorder %s59, 0
      %p243 = por %p241, %p242
      %p244 = scmp.ne.s32.totalorder %s233, %s236
      %p245 = scmp.eq.s32.totalorder %s64, 7
      %p246 = por %p244, %p245
      %p247 = scmp.ne.s32.totalorder %s236, %s237
      %p248 = scmp.eq.s32.totalorder %s64, 0
      %p249 = por %p247, %p248
      %p250 = scmp.ne.s32.totalorder %s236, %s237
      %p251 = scmp.eq.s32.totalorder %s65, 7
      %p252 = por %p250, %p251
      %p254 = scmp.ne.s32.totalorder %s237, %s253
      %p255 = scmp.eq.s32.totalorder %s65, 0
      %p256 = por %p254, %p255
      %s257 = ssub.s32 %s66, %s78
      %p258 = scmp.eq.s32.totalorder %s257, 0
      %s260 = sadd.s32 %s259, 1
      %s261 = scalar_select %p258, %s259, %s260
      %p264 = pneg %p258
      %p265 = scmp.eq.s32.totalorder %s59, 7
      %p266 = por %p264, %p265
      %p267 = scmp.ne.s32.totalorder %s259, %s262
      %p268 = scmp.eq.s32.totalorder %s59, 0
      %p269 = por %p267, %p268
      %p270 = scmp.ne.s32.totalorder %s259, %s262
      %p271 = scmp.eq.s32.totalorder %s64, 7
      %p272 = por %p270, %p271
      %p273 = scmp.ne.s32.totalorder %s262, %s263
      %p274 = scmp.eq.s32.totalorder %s64, 0
      %p275 = por %p273, %p274
      %p276 = scmp.ne.s32.totalorder %s262, %s263
      %p277 = scmp.eq.s32.totalorder %s65, 7
      %p278 = por %p276, %p277
      %p280 = scmp.ne.s32.totalorder %s263, %s279
      %p281 = scmp.eq.s32.totalorder %s65, 0
      %p282 = por %p280, %p281
      %s283 = ssub.s32 %s66, %s78
      %p284 = scmp.eq.s32.totalorder %s283, 0
      %s286 = sadd.s32 %s285, 1
      %s287 = scalar_select %p284, %s285, %s286
      %p290 = pneg %p284
      %p291 = scmp.eq.s32.totalorder %s59, 7
      %p292 = por %p290, %p291
      %p293 = scmp.ne.s32.totalorder %s285, %s288
      %p294 = scmp.eq.s32.totalorder %s59, 0
      %p295 = por %p293, %p294
      %p296 = scmp.ne.s32.totalorder %s285, %s288
      %p297 = scmp.eq.s32.totalorder %s64, 7
      %p298 = por %p296, %p297
      %p299 = scmp.ne.s32.totalorder %s288, %s289
      %p300 = scmp.eq.s32.totalorder %s64, 0
      %p301 = por %p299, %p300
      %p302 = scmp.ne.s32.totalorder %s288, %s289
      %p303 = scmp.eq.s32.totalorder %s65, 7
      %p304 = por %p302, %p303
      %p306 = scmp.ne.s32.totalorder %s289, %s305
      %p307 = scmp.eq.s32.totalorder %s65, 0
      %p308 = por %p306, %p307
      %s309 = ssub.s32 %s66, %s78
      %p310 = scmp.eq.s32.totalorder %s309, 0
      %s312 = sadd.s32 %s311, 1
      %s313 = scalar_select %p310, %s311, %s312
      %p316 = pneg %p310
      %p317 = scmp.eq.s32.totalorder %s59, 7
      %p318 = por %p316, %p317
      %p319 = scmp.ne.s32.totalorder %s311, %s314
      %p320 = scmp.eq.s32.totalorder %s59, 0
      %p321 = por %p319, %p320
      %p322 = scmp.ne.s32.totalorder %s311, %s314
      %p323 = scmp.eq.s32.totalorder %s64, 7
      %p324 = por %p322, %p323
      %p325 = scmp.ne.s32.totalorder %s314, %s315
      %p326 = scmp.eq.s32.totalorder %s64, 0
      %p327 = por %p325, %p326
      %p328 = scmp.ne.s32.totalorder %s314, %s315
      %p329 = scmp.eq.s32.totalorder %s65, 7
      %p330 = por %p328, %p329
      %p332 = scmp.ne.s32.totalorder %s315, %s331
      %p333 = scmp.eq.s32.totalorder %s65, 0
      %p334 = por %p332, %p333
      %s335 = ssub.s32 %s66, %s78
      %p336 = scmp.eq.s32.totalorder %s335, 0
      %s338 = sadd.s32 %s337, 1
      %s339 = scalar_select %p336, %s337, %s338
      %p342 = pneg %p336
      %p343 = scmp.eq.s32.totalorder %s59, 7
      %p344 = por %p342, %p343
      %p345 = scmp.ne.s32.totalorder %s337, %s340
      %p346 = scmp.eq.s32.totalorder %s59, 0
      %p347 = por %p345, %p346
      %p348 = scmp.ne.s32.totalorder %s337, %s340
      %p349 = scmp.eq.s32.totalorder %s64, 7
      %p350 = por %p348, %p349
      %p351 = scmp.ne.s32.totalorder %s340, %s341
      %p352 = scmp.eq.s32.totalorder %s64, 0
      %p353 = por %p351, %p352
      %p354 = scmp.ne.s32.totalorder %s340, %s341
      %p355 = scmp.eq.s32.totalorder %s65, 7
      %p356 = por %p354, %p355
      %p358 = scmp.ne.s32.totalorder %s341, %s357
      %p359 = scmp.eq.s32.totalorder %s65, 0
      %p360 = por %p358, %p359
      %s361 = ssub.s32 %s66, %s78
      %p362 = scmp.eq.s32.totalorder %s361, 0
      %s364 = sadd.s32 %s363, 1
      %s365 = scalar_select %p362, %s363, %s364
      %p368 = pneg %p362
      %p369 = scmp.eq.s32.totalorder %s59, 7
      %p370 = por %p368, %p369
      %p371 = scmp.ne.s32.totalorder %s363, %s366
      %p372 = scmp.eq.s32.totalorder %s59, 0
      %p373 = por %p371, %p372
      %p374 = scmp.ne.s32.totalorder %s363, %s366
      %p375 = scmp.eq.s32.totalorder %s64, 7
      %p376 = por %p374, %p375
      %p377 = scmp.ne.s32.totalorder %s366, %s367
      %p378 = scmp.eq.s32.totalorder %s64, 0
      %p379 = por %p377, %p378
      %p380 = scmp.ne.s32.totalorder %s366, %s367
      %p381 = scmp.eq.s32.totalorder %s65, 7
      %p382 = por %p380, %p381
      %p384 = scmp.ne.s32.totalorder %s367, %s383
      %p385 = scmp.eq.s32.totalorder %s65, 0
      %p386 = por %p384, %p385
      %s387 = ssub.s32 %s66, %s78
      %p388 = scmp.eq.s32.totalorder %s387, 0
      %s390 = sadd.s32 %s389, 1
      %s391 = scalar_select %p388, %s389, %s390
      %p394 = pneg %p388
      %p395 = scmp.eq.s32.totalorder %s59, 7
      %p396 = por %p394, %p395
      %p397 = scmp.ne.s32.totalorder %s389, %s392
      %p398 = scmp.eq.s32.totalorder %s59, 0
      %p399 = por %p397, %p398
      %p400 = scmp.ne.s32.totalorder %s389, %s392
      %p401 = scmp.eq.s32.totalorder %s64, 7
      %p402 = por %p400, %p401
      %p403 = scmp.ne.s32.totalorder %s392, %s393
      %p404 = scmp.eq.s32.totalorder %s64, 0
      %p405 = por %p403, %p404
      %p406 = scmp.ne.s32.totalorder %s392, %s393
      %p407 = scmp.eq.s32.totalorder %s65, 7
      %p408 = por %p406, %p407
      %p410 = scmp.ne.s32.totalorder %s393, %s409
      %p411 = scmp.eq.s32.totalorder %s65, 0
      %p412 = por %p410, %p411
      %s413 = ssub.s32 %s66, %s78
      %p414 = scmp.eq.s32.totalorder %s413, 0
      %s416 = sadd.s32 %s415, 1
      %s417 = scalar_select %p414, %s415, %s416
      %p420 = pneg %p414
      %p421 = scmp.eq.s32.totalorder %s59, 7
      %p422 = por %p420, %p421
      %p423 = scmp.ne.s32.totalorder %s415, %s418
      %p424 = scmp.eq.s32.totalorder %s59, 0
      %p425 = por %p423, %p424
      %p426 = scmp.ne.s32.totalorder %s415, %s418
      %p427 = scmp.eq.s32.totalorder %s64, 7
      %p428 = por %p426, %p427
      %p429 = scmp.ne.s32.totalorder %s418, %s419
      %p430 = scmp.eq.s32.totalorder %s64, 0
      %p431 = por %p429, %p430
      %p432 = scmp.ne.s32.totalorder %s418, %s419
      %p433 = scmp.eq.s32.totalorder %s65, 7
      %p434 = por %p432, %p433
      %p436 = scmp.ne.s32.totalorder %s419, %s435
      %p437 = scmp.eq.s32.totalorder %s65, 0
      %p438 = por %p436, %p437
      %s439 = ssub.s32 %s66, %s78
      %s440 = ssub.s32 %s67, %s74
      %s441 = sor.u32 %s439, %s440
      %p442 = scmp.eq.s32.totalorder %s441, 0
      %s444 = sadd.s32 %s443, 1
      %s445 = scalar_select %p442, %s443, %s444
      %p448 = pneg %p442
      %p449 = scmp.eq.s32.totalorder %s59, 7
      %p450 = por %p448, %p449
      %p451 = scmp.ne.s32.totalorder %s443, %s446
      %p452 = scmp.eq.s32.totalorder %s59, 0
      %p453 = por %p451, %p452
      %p454 = scmp.ne.s32.totalorder %s443, %s446
      %p455 = scmp.eq.s32.totalorder %s64, 7
      %p456 = por %p454, %p455
      %p457 = scmp.ne.s32.totalorder %s446, %s447
      %p458 = scmp.eq.s32.totalorder %s64, 0
      %p459 = por %p457, %p458
      %p460 = scmp.ne.s32.totalorder %s446, %s447
      %p461 = scmp.eq.s32.totalorder %s65, 7
      %p462 = por %p460, %p461
      %p464 = scmp.ne.s32.totalorder %s447, %s463
      %p465 = scmp.eq.s32.totalorder %s65, 0
      %p466 = por %p464, %p465
      %s467 = ssub.s32 %s66, %s78
      %s468 = ssub.s32 %s67, %s74
      %s469 = sor.u32 %s467, %s468
      %p470 = scmp.eq.s32.totalorder %s469, 0
      %s472 = sadd.s32 %s471, 1
      %s473 = scalar_select %p470, %s471, %s472
      %p476 = pneg %p470
      %p477 = scmp.eq.s32.totalorder %s59, 7
      %p478 = por %p476, %p477
      %p479 = scmp.ne.s32.totalorder %s471, %s474
      %p480 = scmp.eq.s32.totalorder %s59, 0
      %p481 = por %p479, %p480
      %p482 = scmp.ne.s32.totalorder %s471, %s474
      %p483 = scmp.eq.s32.totalorder %s64, 7
      %p484 = por %p482, %p483
      %p485 = scmp.ne.s32.totalorder %s474, %s475
      %p486 = scmp.eq.s32.totalorder %s64, 0
      %p487 = por %p485, %p486
      %p488 = scmp.ne.s32.totalorder %s474, %s475
      %p489 = scmp.eq.s32.totalorder %s65, 7
      %p490 = por %p488, %p489
      %p492 = scmp.ne.s32.totalorder %s475, %s491
      %p493 = scmp.eq.s32.totalorder %s65, 0
      %p494 = por %p492, %p493
      %s495 = ssub.s32 %s66, %s78
      %s496 = ssub.s32 %s67, %s74
      %s497 = sor.u32 %s495, %s496
      %p498 = scmp.eq.s32.totalorder %s497, 0
      %s500 = sadd.s32 %s499, 1
      %s501 = scalar_select %p498, %s499, %s500
      %p504 = pneg %p498
      %p505 = scmp.eq.s32.totalorder %s59, 7
      %p506 = por %p504, %p505
      %p507 = scmp.ne.s32.totalorder %s499, %s502
      %p508 = scmp.eq.s32.totalorder %s59, 0
      %p509 = por %p507, %p508
      %p510 = scmp.ne.s32.totalorder %s499, %s502
      %p511 = scmp.eq.s32.totalorder %s64, 7
      %p512 = por %p510, %p511
      %p513 = scmp.ne.s32.totalorder %s502, %s503
      %p514 = scmp.eq.s32.totalorder %s64, 0
      %p515 = por %p513, %p514
      %p516 = scmp.ne.s32.totalorder %s502, %s503
      %p517 = scmp.eq.s32.totalorder %s65, 7
      %p518 = por %p516, %p517
      %p520 = scmp.ne.s32.totalorder %s503, %s519
      %p521 = scmp.eq.s32.totalorder %s65, 0
      %p522 = por %p520, %p521
      %s524 = sadd.s32 %s523, 1
      %p527 = scmp.eq.s32.totalorder %s59, 7
      %p528 = scmp.ne.s32.totalorder %s523, %s525
      %p529 = scmp.eq.s32.totalorder %s59, 0
      %p530 = por %p528, %p529
      %p531 = scmp.ne.s32.totalorder %s523, %s525
      %p532 = scmp.eq.s32.totalorder %s64, 7
      %p533 = por %p531, %p532
      %p534 = scmp.ne.s32.totalorder %s525, %s526
      %p535 = scmp.eq.s32.totalorder %s64, 0
      %p536 = por %p534, %p535
      %p537 = scmp.ne.s32.totalorder %s525, %s526
      %p538 = scmp.eq.s32.totalorder %s65, 7
      %p539 = por %p537, %p538
      %p541 = scmp.ne.s32.totalorder %s526, %s540
      %p542 = scmp.eq.s32.totalorder %s65, 0
      %p543 = por %p541, %p542
      %s545 = sadd.s32 %s544, 1
      %p548 = scmp.eq.s32.totalorder %s59, 7
      %p549 = scmp.ne.s32.totalorder %s544, %s546
      %p550 = scmp.eq.s32.totalorder %s59, 0
      %p551 = por %p549, %p550
      %p552 = scmp.ne.s32.totalorder %s544, %s546
      %p553 = scmp.eq.s32.totalorder %s64, 7
      %p554 = por %p552, %p553
      %p555 = scmp.ne.s32.totalorder %s546, %s547
      %p556 = scmp.eq.s32.totalorder %s64, 0
      %p557 = por %p555, %p556
      %p558 = scmp.ne.s32.totalorder %s546, %s547
      %p559 = scmp.eq.s32.totalorder %s65, 7
      %p560 = por %p558, %p559
      %p562 = scmp.ne.s32.totalorder %s547, %s561
      %p563 = scmp.eq.s32.totalorder %s65, 0
      %p564 = por %p562, %p563
      %s566 = sadd.s32 %s565, 1
      %p569 = scmp.eq.s32.totalorder %s59, 7
      %p570 = scmp.ne.s32.totalorder %s565, %s567
      %p571 = scmp.eq.s32.totalorder %s59, 0
      %p572 = por %p570, %p571
      %p573 = scmp.ne.s32.totalorder %s565, %s567
      %p574 = scmp.eq.s32.totalorder %s64, 7
      %p575 = por %p573, %p574
      %p576 = scmp.ne.s32.totalorder %s567, %s568
      %p577 = scmp.eq.s32.totalorder %s64, 0
      %p578 = por %p576, %p577
      %p579 = scmp.ne.s32.totalorder %s567, %s568
      %p580 = scmp.eq.s32.totalorder %s65, 7
      %p581 = por %p579, %p580
      %p583 = scmp.ne.s32.totalorder %s568, %s582
      %p584 = scmp.eq.s32.totalorder %s65, 0
      %p585 = por %p583, %p584
      %s587 = sadd.s32 %s586, 1
      %p590 = scmp.eq.s32.totalorder %s59, 7
      %p591 = scmp.ne.s32.totalorder %s586, %s588
      %p592 = scmp.eq.s32.totalorder %s59, 0
      %p593 = por %p591, %p592
      %p594 = scmp.ne.s32.totalorder %s586, %s588
      %p595 = scmp.eq.s32.totalorder %s64, 7
      %p596 = por %p594, %p595
      %p597 = scmp.ne.s32.totalorder %s588, %s589
      %p598 = scmp.eq.s32.totalorder %s64, 0
      %p599 = por %p597, %p598
      %p600 = scmp.ne.s32.totalorder %s588, %s589
      %p601 = scmp.eq.s32.totalorder %s65, 7
      %p602 = por %p600, %p601
      %p604 = scmp.ne.s32.totalorder %s589, %s603
      %p605 = scmp.eq.s32.totalorder %s65, 0
      %p606 = por %p604, %p605
      %s608 = sadd.s32 %s607, 1
      %p611 = scmp.eq.s32.totalorder %s59, 7
      %p612 = scmp.ne.s32.totalorder %s607, %s609
      %p613 = scmp.eq.s32.totalorder %s59, 0
      %p614 = por %p612, %p613
      %p615 = scmp.ne.s32.totalorder %s607, %s609
      %p616 = scmp.eq.s32.totalorder %s64, 7
      %p617 = por %p615, %p616
      %p618 = scmp.ne.s32.totalorder %s609, %s610
      %p619 = scmp.eq.s32.totalorder %s64, 0
      %p620 = por %p618, %p619
      %p621 = scmp.ne.s32.totalorder %s609, %s610
      %p622 = scmp.eq.s32.totalorder %s65, 7
      %p623 = por %p621, %p622
      %p625 = scmp.ne.s32.totalorder %s610, %s624
      %p626 = scmp.eq.s32.totalorder %s65, 0
      %p627 = por %p625, %p626
      %s629 = sadd.s32 %s628, 1
      %p632 = scmp.eq.s32.totalorder %s59, 7
      %p633 = scmp.ne.s32.totalorder %s628, %s630
      %p634 = scmp.eq.s32.totalorder %s59, 0
      %p635 = por %p633, %p634
      %p636 = scmp.ne.s32.totalorder %s628, %s630
      %p637 = scmp.eq.s32.totalorder %s64, 7
      %p638 = por %p636, %p637
      %p639 = scmp.ne.s32.totalorder %s630, %s631
      %p640 = scmp.eq.s32.totalorder %s64, 0
      %p641 = por %p639, %p640
      %p642 = scmp.ne.s32.totalorder %s630, %s631
      %p643 = scmp.eq.s32.totalorder %s65, 7
      %p644 = por %p642, %p643
      %p646 = scmp.ne.s32.totalorder %s631, %s645
      %p647 = scmp.eq.s32.totalorder %s65, 0
      %p648 = por %p646, %p647
      %s650 = sadd.s32 %s649, 1
      %p653 = scmp.eq.s32.totalorder %s59, 7
      %p654 = scmp.ne.s32.totalorder %s649, %s651
      %p655 = scmp.eq.s32.totalorder %s59, 0
      %p656 = por %p654, %p655
      %p657 = scmp.ne.s32.totalorder %s649, %s651
      %p658 = scmp.eq.s32.totalorder %s64, 7
      %p659 = por %p657, %p658
      %p660 = scmp.ne.s32.totalorder %s651, %s652
      %p661 = scmp.eq.s32.totalorder %s64, 0
      %p662 = por %p660, %p661
      %p663 = scmp.ne.s32.totalorder %s651, %s652
      %p664 = scmp.eq.s32.totalorder %s65, 7
      %p665 = por %p663, %p664
      %p667 = scmp.ne.s32.totalorder %s652, %s666
      %p668 = scmp.eq.s32.totalorder %s65, 0
      %p669 = por %p667, %p668
      %s671 = sadd.s32 %s670, 1
      %p674 = scmp.eq.s32.totalorder %s59, 7
      %p675 = scmp.ne.s32.totalorder %s670, %s672
      %p676 = scmp.eq.s32.totalorder %s59, 0
      %p677 = por %p675, %p676
      %p678 = scmp.ne.s32.totalorder %s670, %s672
      %p679 = scmp.eq.s32.totalorder %s64, 7
      %p680 = por %p678, %p679
      %p681 = scmp.ne.s32.totalorder %s672, %s673
      %p682 = scmp.eq.s32.totalorder %s64, 0
      %p683 = por %p681, %p682
      %p684 = scmp.ne.s32.totalorder %s672, %s673
      %p685 = scmp.eq.s32.totalorder %s65, 7
      %p686 = por %p684, %p685
      %p688 = scmp.ne.s32.totalorder %s673, %s687
      %p689 = scmp.eq.s32.totalorder %s65, 0
      %p690 = por %p688, %p689
      %s692 = sadd.s32 %s691, 1
      %p695 = scmp.eq.s32.totalorder %s59, 7
      %p696 = scmp.ne.s32.totalorder %s691, %s693
      %p697 = scmp.eq.s32.totalorder %s59, 0
      %p698 = por %p696, %p697
      %p699 = scmp.ne.s32.totalorder %s691, %s693
      %p700 = scmp.eq.s32.totalorder %s64, 7
      %p701 = por %p699, %p700
      %p702 = scmp.ne.s32.totalorder %s693, %s694
      %p703 = scmp.eq.s32.totalorder %s64, 0
      %p704 = por %p702, %p703
      %p705 = scmp.ne.s32.totalorder %s693, %s694
      %p706 = scmp.eq.s32.totalorder %s65, 7
      %p707 = por %p705, %p706
      %p709 = scmp.ne.s32.totalorder %s694, %s708
      %p710 = scmp.eq.s32.totalorder %s65, 0
      %p711 = por %p709, %p710
      %s713 = sadd.s32 %s712, 1
      %p716 = scmp.eq.s32.totalorder %s59, 7
      %p717 = scmp.ne.s32.totalorder %s712, %s714
      %p718 = scmp.eq.s32.totalorder %s59, 0
      %p719 = por %p717, %p718
      %p720 = scmp.ne.s32.totalorder %s712, %s714
      %p721 = scmp.eq.s32.totalorder %s64, 7
      %p722 = por %p720, %p721
      %p723 = scmp.ne.s32.totalorder %s714, %s715
      %p724 = scmp.eq.s32.totalorder %s64, 0
      %p725 = por %p723, %p724
      %p726 = scmp.ne.s32.totalorder %s714, %s715
      %p727 = scmp.eq.s32.totalorder %s65, 7
      %p728 = por %p726, %p727
      %p730 = scmp.ne.s32.totalorder %s715, %s729
      %p731 = scmp.eq.s32.totalorder %s65, 0
      %p732 = por %p730, %p731
      %s734 = sadd.s32 %s733, 1
      %p737 = scmp.eq.s32.totalorder %s59, 7
      %p738 = scmp.ne.s32.totalorder %s733, %s735
      %p739 = scmp.eq.s32.totalorder %s59, 0
      %p740 = por %p738, %p739
      %p741 = scmp.ne.s32.totalorder %s733, %s735
      %p742 = scmp.eq.s32.totalorder %s64, 7
      %p743 = por %p741, %p742
      %p744 = scmp.ne.s32.totalorder %s735, %s736
      %p745 = scmp.eq.s32.totalorder %s64, 0
      %p746 = por %p744, %p745
      %p747 = scmp.ne.s32.totalorder %s735, %s736
      %p748 = scmp.eq.s32.totalorder %s65, 7
      %p749 = por %p747, %p748
      %p751 = scmp.ne.s32.totalorder %s736, %s750
      %p752 = scmp.eq.s32.totalorder %s65, 0
      %p753 = por %p751, %p752
      %p754 = scmp.le.s32.totalorder 1, %s59
      %p755 = scmp.lt.s32.totalorder %s59, 9
      %p756 = pnand %p754, %p755
      %p757 = pneg %p756
      // Predicated region
      $region9: #{tpu_custom_call.1} parent=5 // pred_check
        _
      $region10: #{tpu_custom_call.1} parent=5 // pred_check_branch
        %759 = sbr.rel (%p756) target = $region12
      $region11: #{tpu_custom_call.1} parent=5 // pred_region
        %s760 = ssub.s32 %s59, 1
        // Predicated region
        $region13: #{tpu_custom_call.1} parent=11 // pred_check
          %p761 = pneg %p92
        $region14: #{tpu_custom_call.1} parent=11 // pred_check_branch
          %763 = sbr.rel (%p761) target = $region16
        $region15: #{tpu_custom_call.1} parent=11 // pred_region
          %s765 = ssub.s32 256, 256
          %766 = vsyncadd [#allocation6], %s765
          %s767 = sshll.u32 [#allocation5], 4
          %s768 = int_to_ptr.vmem [resolvable:$true] %s767
          %773 = dma.hbm_to_vmem [thread:$0]  %s0, 256, %s768, [#allocation6], 128, 128, 8
        $region16: #{tpu_custom_call.1} parent=11 // pred_fallthru
          _
        // Predicated region
        $region17: #{tpu_custom_call.1} parent=11 // pred_check
          %p774 = pneg %p113
        $region18: #{tpu_custom_call.1} parent=11 // pred_check_branch
          %776 = sbr.rel (%p774) target = $region20
        $region19: #{tpu_custom_call.1} parent=11 // pred_region
          %s778 = ssub.s32 256, 256
          %779 = vsyncadd [#allocation9], %s778
          %s780 = sshll.u32 [#allocation8], 4
          %s781 = int_to_ptr.vmem [resolvable:$true] %s780
          %786 = dma.hbm_to_vmem [thread:$0]  %s1, 256, %s781, [#allocation9], 128, 128, 8
        $region20: #{tpu_custom_call.1} parent=11 // pred_fallthru
          _
        // Predicated region
        $region21: #{tpu_custom_call.1} parent=11 // pred_check
          %p787 = pneg %p134
        $region22: #{tpu_custom_call.1} parent=11 // pred_check_branch
          %789 = sbr.rel (%p787) target = $region24
        $region23: #{tpu_custom_call.1} parent=11 // pred_region
          _
        $region24: #{tpu_custom_call.1} parent=11 // pred_fallthru
          _
        // Predicated region
        $region25: #{tpu_custom_call.1} parent=11 // pred_check
          %p790 = pneg %p155
        $region26: #{tpu_custom_call.1} parent=11 // pred_check_branch
          %792 = sbr.rel (%p790) target = $region28
        $region27: #{tpu_custom_call.1} parent=11 // pred_region
          %s794 = ssub.s32 16, 16
          %795 = vsyncadd [#allocation9], %s794
          %s797 = sshll.u32 [#allocation10], 4
          %s798 = int_to_ptr.vmem [resolvable:$true] %s797
          %800 = dma.hbm_to_vmem [thread:$0]  %s3, 16, %s798, [#allocation9]
        $region28: #{tpu_custom_call.1} parent=11 // pred_fallthru
          _
        // Predicated region
        $region29: #{tpu_custom_call.1} parent=11 // pred_check
          %p801 = pneg %p176
        $region30: #{tpu_custom_call.1} parent=11 // pred_check_branch
          %803 = sbr.rel (%p801) target = $region32
        $region31: #{tpu_custom_call.1} parent=11 // pred_region
          %s805 = ssub.s32 128, 128
          %806 = vsyncadd [#allocation12], %s805
          %s807 = sshll.u32 [#allocation11], 4
          %s808 = int_to_ptr.vmem [resolvable:$true] %s807
          %813 = dma.hbm_to_vmem [thread:$0]  %s4, 128, %s808, [#allocation12], 64, 64, 4
        $region32: #{tpu_custom_call.1} parent=11 // pred_fallthru
          _
        // Predicated region
        $region33: #{tpu_custom_call.1} parent=11 // pred_check
          %p814 = pneg %p197
        $region34: #{tpu_custom_call.1} parent=11 // pred_check_branch
          %816 = sbr.rel (%p814) target = $region36
        $region35: #{tpu_custom_call.1} parent=11 // pred_region
          %s818 = ssub.s32 16, 16
          %819 = vsyncadd [#allocation12], %s818
          %s821 = sshll.u32 [#allocation13], 4
          %s822 = int_to_ptr.vmem [resolvable:$true] %s821
          %824 = dma.hbm_to_vmem [thread:$0]  %s5, 16, %s822, [#allocation12]
        $region36: #{tpu_custom_call.1} parent=11 // pred_fallthru
          _
        // Predicated region
        $region37: #{tpu_custom_call.1} parent=11 // pred_check
          %p825 = pneg %p536
        $region38: #{tpu_custom_call.1} parent=11 // pred_check_branch
          %827 = sbr.rel (%p825) target = $region40
        $region39: #{tpu_custom_call.1} parent=11 // pred_region
          _
        $region40: #{tpu_custom_call.1} parent=11 // pred_fallthru
          _
        // Predicated region
        $region41: #{tpu_custom_call.1} parent=11 // pred_check
          %p828 = pneg %p557
        $region42: #{tpu_custom_call.1} parent=11 // pred_check_branch
          %830 = sbr.rel (%p828) target = $region44
        $region43: #{tpu_custom_call.1} parent=11 // pred_region
          %s832 = ssub.s32 16, 16
          %833 = vsyncadd [#allocation30], %s832
          %s835 = sshll.u32 [#allocation31], 4
          %s836 = int_to_ptr.vmem [resolvable:$true] %s835
          %838 = dma.hbm_to_vmem [thread:$0]  %s19, 16, %s836, [#allocation30]
        $region44: #{tpu_custom_call.1} parent=11 // pred_fallthru
          _
        // Predicated region
        $region45: #{tpu_custom_call.1} parent=11 // pred_check
          %p839 = pneg %p578
        $region46: #{tpu_custom_call.1} parent=11 // pred_check_branch
          %841 = sbr.rel (%p839) target = $region48
        $region47: #{tpu_custom_call.1} parent=11 // pred_region
          %s843 = ssub.s32 16, 16
          %844 = vsyncadd [#allocation33], %s843
          %s846 = sshll.u32 [#allocation32], 4
          %s847 = int_to_ptr.vmem [resolvable:$true] %s846
          %849 = dma.hbm_to_vmem [thread:$0]  %s20, 16, %s847, [#allocation33]
        $region48: #{tpu_custom_call.1} parent=11 // pred_fallthru
          _
        // Predicated region
        $region49: #{tpu_custom_call.1} parent=11 // pred_check
          %p850 = pneg %p599
        $region50: #{tpu_custom_call.1} parent=11 // pred_check_branch
          %852 = sbr.rel (%p850) target = $region52
        $region51: #{tpu_custom_call.1} parent=11 // pred_region
          %s854 = ssub.s32 16, 16
          %855 = vsyncadd [#allocation33], %s854
          %s857 = sshll.u32 [#allocation34], 4
          %s858 = int_to_ptr.vmem [resolvable:$true] %s857
          %860 = dma.hbm_to_vmem [thread:$0]  %s21, 16, %s858, [#allocation33]
        $region52: #{tpu_custom_call.1} parent=11 // pred_fallthru
          _
        // Predicated region
        $region53: #{tpu_custom_call.1} parent=11 // pred_check
          %p861 = pneg %p620
        $region54: #{tpu_custom_call.1} parent=11 // pred_check_branch
          %863 = sbr.rel (%p861) target = $region56
        $region55: #{tpu_custom_call.1} parent=11 // pred_region
          _
        $region56: #{tpu_custom_call.1} parent=11 // pred_fallthru
          _
        // Predicated region
        $region57: #{tpu_custom_call.1} parent=11 // pred_check
          %p864 = pneg %p641
        $region58: #{tpu_custom_call.1} parent=11 // pred_check_branch
          %866 = sbr.rel (%p864) target = $region60
        $region59: #{tpu_custom_call.1} parent=11 // pred_region
          %s868 = ssub.s32 16, 16
          %869 = vsyncadd [#allocation36], %s868
          %s871 = sshll.u32 [#allocation35], 4
          %s872 = int_to_ptr.vmem [resolvable:$true] %s871
          %874 = dma.hbm_to_vmem [thread:$0]  %s23, 16, %s872, [#allocation36]
        $region60: #{tpu_custom_call.1} parent=11 // pred_fallthru
          _
        // Predicated region
        $region61: #{tpu_custom_call.1} parent=11 // pred_check
          %p875 = pneg %p662
        $region62: #{tpu_custom_call.1} parent=11 // pred_check_branch
          %877 = sbr.rel (%p875) target = $region64
        $region63: #{tpu_custom_call.1} parent=11 // pred_region
          %s879 = ssub.s32 16, 16
          %880 = vsyncadd [#allocation36], %s879
          %s882 = sshll.u32 [#allocation37], 4
          %s883 = int_to_ptr.vmem [resolvable:$true] %s882
          %885 = dma.hbm_to_vmem [thread:$0]  %s24, 16, %s883, [#allocation36]
        $region64: #{tpu_custom_call.1} parent=11 // pred_fallthru
          _
        // Predicated region
        $region65: #{tpu_custom_call.1} parent=11 // pred_check
          %p886 = pneg %p683
        $region66: #{tpu_custom_call.1} parent=11 // pred_check_branch
          %888 = sbr.rel (%p886) target = $region68
        $region67: #{tpu_custom_call.1} parent=11 // pred_region
          %s890 = ssub.s32 16, 16
          %891 = vsyncadd [#allocation39], %s890
          %s893 = sshll.u32 [#allocation38], 4
          %s894 = int_to_ptr.vmem [resolvable:$true] %s893
          %896 = dma.hbm_to_vmem [thread:$0]  %s25, 16, %s894, [#allocation39]
        $region68: #{tpu_custom_call.1} parent=11 // pred_fallthru
          _
        // Predicated region
        $region69: #{tpu_custom_call.1} parent=11 // pred_check
          %p897 = pneg %p704
        $region70: #{tpu_custom_call.1} parent=11 // pred_check_branch
          %899 = sbr.rel (%p897) target = $region72
        $region71: #{tpu_custom_call.1} parent=11 // pred_region
          _
        $region72: #{tpu_custom_call.1} parent=11 // pred_fallthru
          _
        // Predicated region
        $region73: #{tpu_custom_call.1} parent=11 // pred_check
          %p900 = pneg %p725
        $region74: #{tpu_custom_call.1} parent=11 // pred_check_branch
          %902 = sbr.rel (%p900) target = $region76
        $region75: #{tpu_custom_call.1} parent=11 // pred_region
          _
        $region76: #{tpu_custom_call.1} parent=11 // pred_fallthru
          _
      $region12: #{tpu_custom_call.1} parent=5 // pred_fallthru
        _
      %p903 = scmp.lt.s32.totalorder %s59, 8
      // Predicated region
      $region77: #{tpu_custom_call.1} parent=5 // pred_check
        %p904 = pneg %p903
      $region78: #{tpu_custom_call.1} parent=5 // pred_check_branch
        %906 = sbr.rel (%p904) target = $region80
      $region79: #{tpu_custom_call.1} parent=5 // pred_region
        // Predicated region
        $region81: #{tpu_custom_call.1} parent=79 // pred_check
          %p907 = pneg %p217
        $region82: #{tpu_custom_call.1} parent=79 // pred_check_branch
          %909 = sbr.rel (%p907) target = $region84
        $region83: #{tpu_custom_call.1} parent=79 // pred_region
          %s910 = sand.u32 %s59, 1
          %s911 = scalar_lea.sflag [#allocation15], %s910
          %s912 = sand.u32 %s207, 1
          %s913 = smul.addr %s912, 192
          %s914 = scalar_lea.vmem [#allocation14], %s913
          %s916 = ssub.s32 3072, 3072
          %917 = vsyncadd %s911, %s916
          %s918 = smul.addr %s66, 48
          %s919 = smul.addr %s918, 64
          %s920 = scalar_lea.hbm %s6, %s919
          %s921 = sshll.u32 %s914, 4
          %s922 = int_to_ptr.vmem [resolvable:$true] %s921
          %927 = dma.hbm_to_vmem [thread:$0]  %s920, 3072, %s922, %s911, 192, 192, 12
        $region84: #{tpu_custom_call.1} parent=79 // pred_fallthru
          _
        // Predicated region
        $region85: #{tpu_custom_call.1} parent=79 // pred_check
          %p928 = pneg %p243
        $region86: #{tpu_custom_call.1} parent=79 // pred_check_branch
          %930 = sbr.rel (%p928) target = $region88
        $region87: #{tpu_custom_call.1} parent=79 // pred_region
          %s931 = sand.u32 %s59, 1
          %s932 = scalar_lea.sflag [#allocation15], %s931
          %s933 = sand.u32 %s233, 1
          %s934 = smul.addr %s933, 3
          %s935 = scalar_lea.vmem [#allocation16], %s934
          %s937 = ssub.s32 48, 48
          %938 = vsyncadd %s932, %s937
          %s939 = smul.addr %s66, 3
          %s940 = smul.addr %s939, 16
          %s941 = scalar_lea.hbm %s7, %s940
          %s943 = sshll.u32 %s935, 4
          %s944 = int_to_ptr.vmem [resolvable:$true] %s943
          %946 = dma.hbm_to_vmem [thread:$0]  %s941, 48, %s944, %s932
        $region88: #{tpu_custom_call.1} parent=79 // pred_fallthru
          _
        // Predicated region
        $region89: #{tpu_custom_call.1} parent=79 // pred_check
          %p947 = pneg %p269
        $region90: #{tpu_custom_call.1} parent=79 // pred_check_branch
          %949 = sbr.rel (%p947) target = $region92
        $region91: #{tpu_custom_call.1} parent=79 // pred_region
          %s950 = sand.u32 %s59, 1
          %s951 = scalar_lea.sflag [#allocation18], %s950
          %s952 = sand.u32 %s259, 1
          %s953 = smul.addr %s952, 64
          %s954 = scalar_lea.vmem [#allocation17], %s953
          %s956 = ssub.s32 1024, 1024
          %957 = vsyncadd %s951, %s956
          %s958 = smul.addr %s66, 16
          %s959 = smul.addr %s958, 64
          %s960 = scalar_lea.hbm %s8, %s959
          %s961 = sshll.u32 %s954, 4
          %s962 = int_to_ptr.vmem [resolvable:$true] %s961
          %967 = dma.hbm_to_vmem [thread:$0]  %s960, 1024, %s962, %s951, 64, 64, 4
        $region92: #{tpu_custom_call.1} parent=79 // pred_fallthru
          _
        // Predicated region
        $region93: #{tpu_custom_call.1} parent=79 // pred_check
          %p968 = pneg %p295
        $region94: #{tpu_custom_call.1} parent=79 // pred_check_branch
          %970 = sbr.rel (%p968) target = $region96
        $region95: #{tpu_custom_call.1} parent=79 // pred_region
          %s971 = sand.u32 %s59, 1
          %s972 = scalar_lea.sflag [#allocation18], %s971
          %s973 = sand.u32 %s285, 1
          %s974 = scalar_lea.vmem [#allocation19], %s973
          %s976 = ssub.s32 16, 16
          %977 = vsyncadd %s972, %s976
          %s978 = smul.addr %s66, 16
          %s979 = scalar_lea.hbm %s9, %s978
          %s981 = sshll.u32 %s974, 4
          %s982 = int_to_ptr.vmem [resolvable:$true] %s981
          %984 = dma.hbm_to_vmem [thread:$0]  %s979, 16, %s982, %s972
        $region96: #{tpu_custom_call.1} parent=79 // pred_fallthru
          _
        // Predicated region
        $region97: #{tpu_custom_call.1} parent=79 // pred_check
          %p985 = pneg %p321
        $region98: #{tpu_custom_call.1} parent=79 // pred_check_branch
          %987 = sbr.rel (%p985) target = $region100
        $region99: #{tpu_custom_call.1} parent=79 // pred_region
          %s988 = sand.u32 %s59, 1
          %s989 = scalar_lea.sflag [#allocation21], %s988
          %s990 = sand.u32 %s311, 1
          %s991 = scalar_lea.vmem [#allocation20], %s990
          %s993 = ssub.s32 16, 16
          %994 = vsyncadd %s989, %s993
          %s995 = smul.addr %s66, 16
          %s996 = scalar_lea.hbm %s10, %s995
          %s998 = sshll.u32 %s991, 4
          %s999 = int_to_ptr.vmem [resolvable:$true] %s998
          %1001 = dma.hbm_to_vmem [thread:$0]  %s996, 16, %s999, %s989
        $region100: #{tpu_custom_call.1} parent=79 // pred_fallthru
          _
        // Predicated region
        $region101: #{tpu_custom_call.1} parent=79 // pred_check
          %p1002 = pneg %p347
        $region102: #{tpu_custom_call.1} parent=79 // pred_check_branch
          %1004 = sbr.rel (%p1002) target = $region104
        $region103: #{tpu_custom_call.1} parent=79 // pred_region
          %s1005 = sand.u32 %s59, 1
          %s1006 = scalar_lea.sflag [#allocation21], %s1005
          %s1007 = sand.u32 %s337, 1
          %s1008 = scalar_lea.vmem [#allocation22], %s1007
          %s1010 = ssub.s32 16, 16
          %1011 = vsyncadd %s1006, %s1010
          %s1012 = smul.addr %s66, 16
          %s1013 = scalar_lea.hbm %s11, %s1012
          %s1015 = sshll.u32 %s1008, 4
          %s1016 = int_to_ptr.vmem [resolvable:$true] %s1015
          %1018 = dma.hbm_to_vmem [thread:$0]  %s1013, 16, %s1016, %s1006
        $region104: #{tpu_custom_call.1} parent=79 // pred_fallthru
          _
        // Predicated region
        $region105: #{tpu_custom_call.1} parent=79 // pred_check
          %p1019 = pneg %p373
        $region106: #{tpu_custom_call.1} parent=79 // pred_check_branch
          %1021 = sbr.rel (%p1019) target = $region108
        $region107: #{tpu_custom_call.1} parent=79 // pred_region
          %s1022 = sand.u32 %s59, 1
          %s1023 = scalar_lea.sflag [#allocation24], %s1022
          %s1024 = sand.u32 %s363, 1
          %s1025 = scalar_lea.vmem [#allocation23], %s1024
          %s1027 = ssub.s32 16, 16
          %1028 = vsyncadd %s1023, %s1027
          %s1029 = smul.addr %s66, 16
          %s1030 = scalar_lea.hbm %s12, %s1029
          %s1032 = sshll.u32 %s1025, 4
          %s1033 = int_to_ptr.vmem [resolvable:$true] %s1032
          %1035 = dma.hbm_to_vmem [thread:$0]  %s1030, 16, %s1033, %s1023
        $region108: #{tpu_custom_call.1} parent=79 // pred_fallthru
          _
        // Predicated region
        $region109: #{tpu_custom_call.1} parent=79 // pred_check
          %p1036 = pneg %p399
        $region110: #{tpu_custom_call.1} parent=79 // pred_check_branch
          %1038 = sbr.rel (%p1036) target = $region112
        $region111: #{tpu_custom_call.1} parent=79 // pred_region
          %s1039 = sand.u32 %s59, 1
          %s1040 = scalar_lea.sflag [#allocation24], %s1039
          %s1041 = sand.u32 %s389, 1
          %s1042 = scalar_lea.vmem [#allocation25], %s1041
          %s1044 = ssub.s32 16, 16
          %1045 = vsyncadd %s1040, %s1044
          %s1046 = smul.addr %s66, 16
          %s1047 = scalar_lea.hbm %s13, %s1046
          %s1049 = sshll.u32 %s1042, 4
          %s1050 = int_to_ptr.vmem [resolvable:$true] %s1049
          %1052 = dma.hbm_to_vmem [thread:$0]  %s1047, 16, %s1050, %s1040
        $region112: #{tpu_custom_call.1} parent=79 // pred_fallthru
          _
        // Predicated region
        $region113: #{tpu_custom_call.1} parent=79 // pred_check
          %p1053 = pneg %p425
        $region114: #{tpu_custom_call.1} parent=79 // pred_check_branch
          %1055 = sbr.rel (%p1053) target = $region116
        $region115: #{tpu_custom_call.1} parent=79 // pred_region
          %s1056 = sand.u32 %s59, 1
          %s1057 = scalar_lea.sflag [#allocation27], %s1056
          %s1058 = sand.u32 %s415, 1
          %s1059 = scalar_lea.vmem [#allocation26], %s1058
          %s1061 = ssub.s32 16, 16
          %1062 = vsyncadd %s1057, %s1061
          %s1063 = smul.addr %s66, 16
          %s1064 = scalar_lea.hbm %s14, %s1063
          %s1066 = sshll.u32 %s1059, 4
          %s1067 = int_to_ptr.vmem [resolvable:$true] %s1066
          %1069 = dma.hbm_to_vmem [thread:$0]  %s1064, 16, %s1067, %s1057
        $region116: #{tpu_custom_call.1} parent=79 // pred_fallthru
          _
        // Predicated region
        $region117: #{tpu_custom_call.1} parent=79 // pred_check
          %p1070 = pneg %p453
        $region118: #{tpu_custom_call.1} parent=79 // pred_check_branch
          %1072 = sbr.rel (%p1070) target = $region120
        $region119: #{tpu_custom_call.1} parent=79 // pred_region
          %s1073 = sand.u32 %s59, 1
          %s1074 = scalar_lea.sflag [#allocation27], %s1073
          %s1075 = sand.u32 %s443, 1
          %s1076 = smul.addr %s1075, 256
          %s1077 = scalar_lea.vmem [#allocation28], %s1076
          %s1078 = smul.u32 4, %s67
          %s1080 = ssub.s32 4096, 4096
          %1081 = vsyncadd %s1074, %s1080
          %s1082 = smul.addr %s66, 256
          %s1083 = sadd.s32 %s1078, %s1082
          %s1084 = smul.addr %s1083, 64
          %s1085 = scalar_lea.hbm %s15, %s1084
          %s1086 = sshll.u32 %s1077, 4
          %s1087 = int_to_ptr.vmem [resolvable:$true] %s1086
          %1092 = dma.hbm_to_vmem [thread:$0]  %s1085, 4096, %s1087, %s1074, 1024, 256, 16
        $region120: #{tpu_custom_call.1} parent=79 // pred_fallthru
          _
        // Predicated region
        $region121: #{tpu_custom_call.1} parent=79 // pred_check
          %p1093 = pneg %p481
        $region122: #{tpu_custom_call.1} parent=79 // pred_check_branch
          %1095 = sbr.rel (%p1093) target = $region124
        $region123: #{tpu_custom_call.1} parent=79 // pred_region
          %s1096 = smul.u32 4, %s67
          %p1097 = scmp.lt.s32.totalorder %s66, 1
          %s1098 = scalar_select %p1097, %s66, 1
          %p1099 = scmp.lt.s32.totalorder %s1096, 15
          %s1100 = scalar_select %p1099, %s1096, 15
          %s1101 = smul.addr %s1098, 16
          %s1102 = sadd.s32 %s1100, %s1101
          %s1103 = scalar_lea.vmem %s16, %s1102
          %s1104 = smul.u32 4, %s67
        $region124: #{tpu_custom_call.1} parent=79 // pred_fallthru
          _
        // Predicated region
        $region125: #{tpu_custom_call.1} parent=79 // pred_check
          %p1105 = pneg %p509
        $region126: #{tpu_custom_call.1} parent=79 // pred_check_branch
          %1107 = sbr.rel (%p1105) target = $region128
        $region127: #{tpu_custom_call.1} parent=79 // pred_region
          %s1108 = sand.u32 %s59, 1
          %s1109 = scalar_lea.sflag [#allocation30], %s1108
          %s1110 = sand.u32 %s499, 1
          %s1111 = smul.addr %s1110, 256
          %s1112 = scalar_lea.vmem [#allocation29], %s1111
          %s1113 = smul.u32 64, %s67
          %s1115 = ssub.s32 4096, 4096
          %1116 = vsyncadd %s1109, %s1115
          %s1117 = smul.addr %s66, 256
          %s1118 = sadd.s32 %s1113, %s1117
          %s1119 = smul.addr %s1118, 64
          %s1120 = scalar_lea.hbm %s17, %s1119
          %s1121 = sshll.u32 %s1112, 4
          %s1122 = int_to_ptr.vmem [resolvable:$true] %s1121
          %1127 = dma.hbm_to_vmem [thread:$0]  %s1120, 4096, %s1122, %s1109, 64, 64, 4
        $region128: #{tpu_custom_call.1} parent=79 // pred_fallthru
          _
      $region80: #{tpu_custom_call.1} parent=5 // pred_fallthru
        _
      %p1128 = scmp.le.s32.totalorder 1, %s59
      %p1129 = scmp.lt.s32.totalorder %s59, 9
      %p1130 = pnand %p1128, %p1129
      %p1131 = pneg %p1130
      // Predicated region
      $region129: #{tpu_custom_call.1} parent=5 // pred_check
        _
      $region130: #{tpu_custom_call.1} parent=5 // pred_check_branch
        %1133 = sbr.rel (%p1130) target = $region132
      $region131: #{tpu_custom_call.1} parent=5 // pred_region
        %s1134 = ssub.s32 %s59, 1
        // Predicated region
        $region133: #{tpu_custom_call.1} parent=131 // pred_check
          %p1135 = pneg %p92
        $region134: #{tpu_custom_call.1} parent=131 // pred_check_branch
          %1137 = sbr.rel (%p1135) target = $region136
        $region135: #{tpu_custom_call.1} parent=131 // pred_region
          %1138 = dma.done [#allocation6], 256
        $region136: #{tpu_custom_call.1} parent=131 // pred_fallthru
          _
        // Predicated region
        $region137: #{tpu_custom_call.1} parent=131 // pred_check
          %p1139 = pneg %p113
        $region138: #{tpu_custom_call.1} parent=131 // pred_check_branch
          %1141 = sbr.rel (%p1139) target = $region140
        $region139: #{tpu_custom_call.1} parent=131 // pred_region
          %1142 = dma.done [#allocation9], 256
        $region140: #{tpu_custom_call.1} parent=131 // pred_fallthru
          _
        // Predicated region
        $region141: #{tpu_custom_call.1} parent=131 // pred_check
          %p1143 = pneg %p155
        $region142: #{tpu_custom_call.1} parent=131 // pred_check_branch
          %1145 = sbr.rel (%p1143) target = $region144
        $region143: #{tpu_custom_call.1} parent=131 // pred_region
          %1146 = dma.done [#allocation9], 16
        $region144: #{tpu_custom_call.1} parent=131 // pred_fallthru
          _
        // Predicated region
        $region145: #{tpu_custom_call.1} parent=131 // pred_check
          %p1147 = pneg %p176
        $region146: #{tpu_custom_call.1} parent=131 // pred_check_branch
          %1149 = sbr.rel (%p1147) target = $region148
        $region147: #{tpu_custom_call.1} parent=131 // pred_region
          %1150 = dma.done [#allocation12], 128
        $region148: #{tpu_custom_call.1} parent=131 // pred_fallthru
          _
        // Predicated region
        $region149: #{tpu_custom_call.1} parent=131 // pred_check
          %p1151 = pneg %p197
        $region150: #{tpu_custom_call.1} parent=131 // pred_check_branch
          %1153 = sbr.rel (%p1151) target = $region152
        $region151: #{tpu_custom_call.1} parent=131 // pred_region
          %1154 = dma.done [#allocation12], 16
        $region152: #{tpu_custom_call.1} parent=131 // pred_fallthru
          _
        %s1155 = sand.u32 %s64, 1
        %s1156 = scalar_lea.sflag [#allocation15], %s1155
        %s1157 = sand.u32 %s210, 1
        %s1158 = smul.addr %s1157, 192
        %s1159 = scalar_lea.vmem [#allocation14], %s1158
        // Predicated region
        $region153: #{tpu_custom_call.1} parent=131 // pred_check
          %p1160 = pneg %p223
        $region154: #{tpu_custom_call.1} parent=131 // pred_check_branch
          %1162 = sbr.rel (%p1160) target = $region156
        $region155: #{tpu_custom_call.1} parent=131 // pred_region
          %1163 = dma.done %s1156, 3072
        $region156: #{tpu_custom_call.1} parent=131 // pred_fallthru
          _
        %s1164 = sand.u32 %s64, 1
        %s1165 = scalar_lea.sflag [#allocation15], %s1164
        %s1166 = sand.u32 %s236, 1
        %s1167 = smul.addr %s1166, 3
        %s1168 = scalar_lea.vmem [#allocation16], %s1167
        // Predicated region
        $region157: #{tpu_custom_call.1} parent=131 // pred_check
          %p1169 = pneg %p249
        $region158: #{tpu_custom_call.1} parent=131 // pred_check_branch
          %1171 = sbr.rel (%p1169) target = $region160
        $region159: #{tpu_custom_call.1} parent=131 // pred_region
          %1172 = dma.done %s1165, 48
        $region160: #{tpu_custom_call.1} parent=131 // pred_fallthru
          _
        %s1173 = sand.u32 %s64, 1
        %s1174 = scalar_lea.sflag [#allocation18], %s1173
        %s1175 = sand.u32 %s262, 1
        %s1176 = smul.addr %s1175, 64
        %s1177 = scalar_lea.vmem [#allocation17], %s1176
        // Predicated region
        $region161: #{tpu_custom_call.1} parent=131 // pred_check
          %p1178 = pneg %p275
        $region162: #{tpu_custom_call.1} parent=131 // pred_check_branch
          %1180 = sbr.rel (%p1178) target = $region164
        $region163: #{tpu_custom_call.1} parent=131 // pred_region
          %1181 = dma.done %s1174, 1024
        $region164: #{tpu_custom_call.1} parent=131 // pred_fallthru
          _
        %s1182 = sand.u32 %s64, 1
        %s1183 = scalar_lea.sflag [#allocation18], %s1182
        %s1184 = sand.u32 %s288, 1
        %s1185 = scalar_lea.vmem [#allocation19], %s1184
        // Predicated region
        $region165: #{tpu_custom_call.1} parent=131 // pred_check
          %p1186 = pneg %p301
        $region166: #{tpu_custom_call.1} parent=131 // pred_check_branch
          %1188 = sbr.rel (%p1186) target = $region168
        $region167: #{tpu_custom_call.1} parent=131 // pred_region
          %1189 = dma.done %s1183, 16
        $region168: #{tpu_custom_call.1} parent=131 // pred_fallthru
          _
        %s1190 = sand.u32 %s64, 1
        %s1191 = scalar_lea.sflag [#allocation21], %s1190
        %s1192 = sand.u32 %s314, 1
        %s1193 = scalar_lea.vmem [#allocation20], %s1192
        // Predicated region
        $region169: #{tpu_custom_call.1} parent=131 // pred_check
          %p1194 = pneg %p327
        $region170: #{tpu_custom_call.1} parent=131 // pred_check_branch
          %1196 = sbr.rel (%p1194) target = $region172
        $region171: #{tpu_custom_call.1} parent=131 // pred_region
          %1197 = dma.done %s1191, 16
        $region172: #{tpu_custom_call.1} parent=131 // pred_fallthru
          _
        %s1198 = sand.u32 %s64, 1
        %s1199 = scalar_lea.sflag [#allocation21], %s1198
        %s1200 = sand.u32 %s340, 1
        %s1201 = scalar_lea.vmem [#allocation22], %s1200
        // Predicated region
        $region173: #{tpu_custom_call.1} parent=131 // pred_check
          %p1202 = pneg %p353
        $region174: #{tpu_custom_call.1} parent=131 // pred_check_branch
          %1204 = sbr.rel (%p1202) target = $region176
        $region175: #{tpu_custom_call.1} parent=131 // pred_region
          %1205 = dma.done %s1199, 16
        $region176: #{tpu_custom_call.1} parent=131 // pred_fallthru
          _
        %s1206 = sand.u32 %s64, 1
        %s1207 = scalar_lea.sflag [#allocation24], %s1206
        %s1208 = sand.u32 %s366, 1
        %s1209 = scalar_lea.vmem [#allocation23], %s1208
        // Predicated region
        $region177: #{tpu_custom_call.1} parent=131 // pred_check
          %p1210 = pneg %p379
        $region178: #{tpu_custom_call.1} parent=131 // pred_check_branch
          %1212 = sbr.rel (%p1210) target = $region180
        $region179: #{tpu_custom_call.1} parent=131 // pred_region
          %1213 = dma.done %s1207, 16
        $region180: #{tpu_custom_call.1} parent=131 // pred_fallthru
          _
        %s1214 = sand.u32 %s64, 1
        %s1215 = scalar_lea.sflag [#allocation24], %s1214
        %s1216 = sand.u32 %s392, 1
        %s1217 = scalar_lea.vmem [#allocation25], %s1216
        // Predicated region
        $region181: #{tpu_custom_call.1} parent=131 // pred_check
          %p1218 = pneg %p405
        $region182: #{tpu_custom_call.1} parent=131 // pred_check_branch
          %1220 = sbr.rel (%p1218) target = $region184
        $region183: #{tpu_custom_call.1} parent=131 // pred_region
          %1221 = dma.done %s1215, 16
        $region184: #{tpu_custom_call.1} parent=131 // pred_fallthru
          _
        %s1222 = sand.u32 %s64, 1
        %s1223 = scalar_lea.sflag [#allocation27], %s1222
        %s1224 = sand.u32 %s418, 1
        %s1225 = scalar_lea.vmem [#allocation26], %s1224
        // Predicated region
        $region185: #{tpu_custom_call.1} parent=131 // pred_check
          %p1226 = pneg %p431
        $region186: #{tpu_custom_call.1} parent=131 // pred_check_branch
          %1228 = sbr.rel (%p1226) target = $region188
        $region187: #{tpu_custom_call.1} parent=131 // pred_region
          %1229 = dma.done %s1223, 16
        $region188: #{tpu_custom_call.1} parent=131 // pred_fallthru
          _
        %s1230 = sand.u32 %s64, 1
        %s1231 = scalar_lea.sflag [#allocation27], %s1230
        %s1232 = sand.u32 %s446, 1
        %s1233 = smul.addr %s1232, 256
        %s1234 = scalar_lea.vmem [#allocation28], %s1233
        // Predicated region
        $region189: #{tpu_custom_call.1} parent=131 // pred_check
          %p1235 = pneg %p459
        $region190: #{tpu_custom_call.1} parent=131 // pred_check_branch
          %1237 = sbr.rel (%p1235) target = $region192
        $region191: #{tpu_custom_call.1} parent=131 // pred_region
          %1238 = dma.done %s1231, 4096
        $region192: #{tpu_custom_call.1} parent=131 // pred_fallthru
          _
        %s1239 = sand.u32 %s64, 1
        %s1240 = scalar_lea.sflag [#allocation30], %s1239
        %s1241 = sand.u32 %s502, 1
        %s1242 = smul.addr %s1241, 256
        %s1243 = scalar_lea.vmem [#allocation29], %s1242
        // Predicated region
        $region193: #{tpu_custom_call.1} parent=131 // pred_check
          %p1244 = pneg %p515
        $region194: #{tpu_custom_call.1} parent=131 // pred_check_branch
          %1246 = sbr.rel (%p1244) target = $region196
        $region195: #{tpu_custom_call.1} parent=131 // pred_region
          %1247 = dma.done %s1240, 4096
        $region196: #{tpu_custom_call.1} parent=131 // pred_fallthru
          _
        // Predicated region
        $region197: #{tpu_custom_call.1} parent=131 // pred_check
          %p1248 = pneg %p557
        $region198: #{tpu_custom_call.1} parent=131 // pred_check_branch
          %1250 = sbr.rel (%p1248) target = $region200
        $region199: #{tpu_custom_call.1} parent=131 // pred_region
          %1251 = dma.done [#allocation30], 16
        $region200: #{tpu_custom_call.1} parent=131 // pred_fallthru
          _
        // Predicated region
        $region201: #{tpu_custom_call.1} parent=131 // pred_check
          %p1252 = pneg %p578
        $region202: #{tpu_custom_call.1} parent=131 // pred_check_branch
          %1254 = sbr.rel (%p1252) target = $region204
        $region203: #{tpu_custom_call.1} parent=131 // pred_region
          %1255 = dma.done [#allocation33], 16
        $region204: #{tpu_custom_call.1} parent=131 // pred_fallthru
          _
        // Predicated region
        $region205: #{tpu_custom_call.1} parent=131 // pred_check
          %p1256 = pneg %p599
        $region206: #{tpu_custom_call.1} parent=131 // pred_check_branch
          %1258 = sbr.rel (%p1256) target = $region208
        $region207: #{tpu_custom_call.1} parent=131 // pred_region
          %1259 = dma.done [#allocation33], 16
        $region208: #{tpu_custom_call.1} parent=131 // pred_fallthru
          _
        // Predicated region
        $region209: #{tpu_custom_call.1} parent=131 // pred_check
          %p1260 = pneg %p641
        $region210: #{tpu_custom_call.1} parent=131 // pred_check_branch
          %1262 = sbr.rel (%p1260) target = $region212
        $region211: #{tpu_custom_call.1} parent=131 // pred_region
          %1263 = dma.done [#allocation36], 16
        $region212: #{tpu_custom_call.1} parent=131 // pred_fallthru
          _
        // Predicated region
        $region213: #{tpu_custom_call.1} parent=131 // pred_check
          %p1264 = pneg %p662
        $region214: #{tpu_custom_call.1} parent=131 // pred_check_branch
          %1266 = sbr.rel (%p1264) target = $region216
        $region215: #{tpu_custom_call.1} parent=131 // pred_region
          %1267 = dma.done [#allocation36], 16
        $region216: #{tpu_custom_call.1} parent=131 // pred_fallthru
          _
        // Predicated region
        $region217: #{tpu_custom_call.1} parent=131 // pred_check
          %p1268 = pneg %p683
        $region218: #{tpu_custom_call.1} parent=131 // pred_check_branch
          %1270 = sbr.rel (%p1268) target = $region220
        $region219: #{tpu_custom_call.1} parent=131 // pred_region
          %1271 = dma.done [#allocation39], 16
        $region220: #{tpu_custom_call.1} parent=131 // pred_fallthru
          _
        %p1272 = pneg %p92
        %p1273 = pneg %p89
        %p1274 = pneg %p113
        %p1275 = pneg %p110
        %p1276 = pneg %p134
        %p1277 = pneg %p131
        %p1278 = pneg %p155
        %p1279 = pneg %p152
        %p1280 = pneg %p176
        %p1281 = pneg %p173
        %p1282 = pneg %p197
        %p1283 = pneg %p194
        %s1284 = sand.u32 %s64, 1
        %s1285 = scalar_lea.sflag [#allocation15], %s1284
        %s1286 = sand.u32 %s210, 1
        %s1287 = smul.addr %s1286, 192
        %s1288 = scalar_lea.vmem [#allocation14], %s1287
        %p1289 = pneg %p223
        %p1290 = pneg %p220
        %s1291 = sand.u32 %s64, 1
        %s1292 = scalar_lea.sflag [#allocation15], %s1291
        %s1293 = sand.u32 %s236, 1
        %s1294 = smul.addr %s1293, 3
        %s1295 = scalar_lea.vmem [#allocation16], %s1294
        %p1296 = pneg %p249
        %p1297 = pneg %p246
        %s1298 = sand.u32 %s64, 1
        %s1299 = scalar_lea.sflag [#allocation18], %s1298
        %s1300 = sand.u32 %s262, 1
        %s1301 = smul.addr %s1300, 64
        %s1302 = scalar_lea.vmem [#allocation17], %s1301
        %p1303 = pneg %p275
        %p1304 = pneg %p272
        %s1305 = sand.u32 %s64, 1
        %s1306 = scalar_lea.sflag [#allocation18], %s1305
        %s1307 = sand.u32 %s288, 1
        %s1308 = scalar_lea.vmem [#allocation19], %s1307
        %p1309 = pneg %p301
        %p1310 = pneg %p298
        %s1311 = sand.u32 %s64, 1
        %s1312 = scalar_lea.sflag [#allocation21], %s1311
        %s1313 = sand.u32 %s314, 1
        %s1314 = scalar_lea.vmem [#allocation20], %s1313
        %p1315 = pneg %p327
        %p1316 = pneg %p324
        %s1317 = sand.u32 %s64, 1
        %s1318 = scalar_lea.sflag [#allocation21], %s1317
        %s1319 = sand.u32 %s340, 1
        %s1320 = scalar_lea.vmem [#allocation22], %s1319
        %p1321 = pneg %p353
        %p1322 = pneg %p350
        %s1323 = sand.u32 %s64, 1
        %s1324 = scalar_lea.sflag [#allocation24], %s1323
        %s1325 = sand.u32 %s366, 1
        %s1326 = scalar_lea.vmem [#allocation23], %s1325
        %p1327 = pneg %p379
        %p1328 = pneg %p376
        %s1329 = sand.u32 %s64, 1
        %s1330 = scalar_lea.sflag [#allocation24], %s1329
        %s1331 = sand.u32 %s392, 1
        %s1332 = scalar_lea.vmem [#allocation25], %s1331
        %p1333 = pneg %p405
        %p1334 = pneg %p402
        %s1335 = sand.u32 %s64, 1
        %s1336 = scalar_lea.sflag [#allocation27], %s1335
        %s1337 = sand.u32 %s418, 1
        %s1338 = scalar_lea.vmem [#allocation26], %s1337
        %p1339 = pneg %p431
        %p1340 = pneg %p428
        %s1341 = sand.u32 %s64, 1
        %s1342 = scalar_lea.sflag [#allocation27], %s1341
        %s1343 = sand.u32 %s446, 1
        %s1344 = smul.addr %s1343, 256
        %s1345 = scalar_lea.vmem [#allocation28], %s1344
        %p1346 = pneg %p459
        %p1347 = pneg %p456
        %s1348 = smul.u32 4, %s69
        %p1349 = scmp.lt.s32.totalorder %s68, 1
        %s1350 = scalar_select %p1349, %s68, 1
        %p1351 = scmp.lt.s32.totalorder %s1348, 15
        %s1352 = scalar_select %p1351, %s1348, 15
        %s1353 = smul.addr %s1350, 16
        %s1354 = sadd.s32 %s1352, %s1353
        %s1355 = scalar_lea.vmem %s16, %s1354
        %p1356 = pneg %p487
        %p1357 = pneg %p484
        %s1358 = sand.u32 %s64, 1
        %s1359 = scalar_lea.sflag [#allocation30], %s1358
        %s1360 = sand.u32 %s502, 1
        %s1361 = smul.addr %s1360, 256
        %s1362 = scalar_lea.vmem [#allocation29], %s1361
        %p1363 = pneg %p515
        %p1364 = pneg %p512
        %p1365 = pneg %p536
        %p1366 = pneg %p533
        %p1367 = pneg %p557
        %p1368 = pneg %p554
        %p1369 = pneg %p578
        %p1370 = pneg %p575
        %p1371 = pneg %p599
        %p1372 = pneg %p596
        %p1373 = pneg %p620
        %p1374 = pneg %p617
        %p1375 = pneg %p641
        %p1376 = pneg %p638
        %p1377 = pneg %p662
        %p1378 = pneg %p659
        %p1379 = pneg %p683
        %p1380 = pneg %p680
        %p1381 = pneg %p704
        %p1382 = pneg %p701
        %p1383 = pneg %p725
        %p1384 = pneg %p722
        %p1385 = pneg %p746
        %p1386 = pneg %p743
        %s1387 = smul.u32 4, %s69
        %s1388 = smul.u32 4, %s69
        %p1389 = scmp.lt.s32.totalorder %s68, 1
        %s1390 = scalar_select %p1389, %s68, 1
        %p1391 = scmp.lt.s32.totalorder %s1388, 15
        %s1392 = scalar_select %p1391, %s1388, 15
        %s1393 = smul.addr %s1390, 16
        %s1394 = sadd.s32 %s1392, %s1393
        %s1395 = scalar_lea.vmem %s16, %s1394
        %s1396 = smul.u32 4, %s69
        %s1397 = smul.u32 64, %s69
        %p1399 = scmp.eq.s32.totalorder %s68, 0
        %p1400 = scmp.eq.s32.totalorder %s69, 0
        %p1401 = pnand %p1399, %p1400
        %p1402 = pneg %p1401
        // Predicated region
        $region221: #{tpu_custom_call.1} parent=131 // pred_check
          _
        $region222: #{tpu_custom_call.1} parent=131 // pred_check_branch
          %1404 = sbr.rel (%p1401) target = $region224
        $region223: #{tpu_custom_call.1} parent=131 // pred_region
          %v1405 = vld [vmem:[#allocation5] sm:$0xff]
          %v1406 = vld [vmem:[#allocation5 + $0x8] sm:$0xff]
          %v1407 = vpack.c.bf16 %v1406, %v1405
          %v1408 = vld [vmem:[#allocation11] sm:$0xf]
          %v1409 = vld [vmem:[#allocation11 + $0x4] sm:$0xf]
          %v1410 = vld [vmem:[#allocation13] sm:$0x1]
          %v1412 = vlaneseq
          %v1413 = vshrl.u32 %v1412, 7
          %v1414 = vsub.s32 0, %v1413
          %v1415 = vrot.slane %v1410, %v1414
          %v1419 = vunpack.c.l.b16 %v1408
          %v1420 = vunpack.c.l.b16 %v1409
          %v1421 = vpack.c.b16 %v1420, %v1419
          %vm1423 = vcmask 130048
          %v1425 = vsel %vm1423, %v1407, 0
          %1427 = vmatprep.subr.bf16.mxu0 0
          %1428 = vmatpush1.bf16.msra.mxu0 0
          %1429 = vmatprep.subr.bf16.mxu0 0
          %1430 = vmatpush1.bf16.msra.mxu0 0
          %1431 = vmatprep.subr.bf16.mxu0 0
          %1432 = vmatpush1.bf16.msra.mxu0 0
          %1433 = vmatprep.subr.bf16.mxu0 0
          %1434 = vmatpush1.bf16.msra.mxu0 0
          %1435 = vmatprep.subr.bf16.mxu0 0
          %1436 = vmatpush1.bf16.msra.mxu0 0
          %1437 = vmatprep.subr.bf16.mxu0 0
          %1438 = vmatpush1.bf16.msra.mxu0 0
          %1439 = vmatprep.subr.bf16.mxu0 0
          %1440 = vmatpush1.bf16.msra.mxu0 0
          %1441 = vmatprep.subr.bf16.mxu0 0
          %1442 = vmatpush1.bf16.msra.mxu0 %v1421
          %1443 = vmatprep.subr.bf16.mxu0 0
          %1444 = vmatpush2.bf16.msra.mxu0 0
          %1445 = vmatprep.subr.bf16.mxu0 0
          %1446 = vmatpush2.bf16.msra.mxu0 0
          %1447 = vmatprep.subr.bf16.mxu0 0
          %1448 = vmatpush2.bf16.msra.mxu0 0
          %1449 = vmatprep.subr.bf16.mxu0 0
          %1450 = vmatpush2.bf16.msra.mxu0 0
          %1451 = vmatprep.subr.bf16.mxu0 0
          %1452 = vmatpush2.bf16.msra.mxu0 0
          %1453 = vmatprep.subr.bf16.mxu0 0
          %1454 = vmatpush2.bf16.msra.mxu0 0
          %1455 = vmatprep.subr.bf16.mxu0 0
          %1456 = vmatpush2.bf16.msra.mxu0 0
          %1457 = vmatprep.subr.bf16.mxu0 0
          %1458 = vmatpush2.bf16.msra.mxu0 0
          %1459 = vmatprep.mubr.bf16.mxu0 0
          %1460 = vmatmul.mubr.bf16.gmra.mxu0 %v1425
          %v1461 = vpop.f32.mrf.mxu0
          %v1462 = vadd.f32 %v1415, %v1461
          %v1463 = vpop.f32.mrf.mxu0
          %v1464 = vpop.f32.mrf.mxu0
          %v1465 = vadd.f32 %v1415, %v1464
          %v1466 = vpop.f32.mrf.mxu0
          %1467 = vdwg.mxu0
          %v1468 = vld [vmem:[#allocation8] sm:$0xff]
          %v1469 = vld [vmem:[#allocation8 + $0x8] sm:$0xff]
          %v1470 = vadd.f32 %v1462, %v1468
          %v1471 = vadd.f32 %v1465, %v1469
          %1472 = vst [vmem:[#allocation2] sm:$0xff] %v1470
          %1473 = vst [vmem:[#allocation2 + $0x8] sm:$0xff] %v1471
        $region224: #{tpu_custom_call.1} parent=131 // pred_fallthru
          _
        // Predicated region
        $region225: #{tpu_custom_call.1} parent=131 // pred_check
          %p1474 = pneg %p1400
        $region226: #{tpu_custom_call.1} parent=131 // pred_check_branch
          %1476 = sbr.rel (%p1474) target = $region228
        $region227: #{tpu_custom_call.1} parent=131 // pred_region
          %v1477 = vld [vmem:[#allocation2] sm:$0xff]
          %v1478 = vld [vmem:[#allocation2 + $0x8] sm:$0xff]
          %v1479 = vpack.c.bf16 %v1478, %v1477
          %v1480 = vld [vmem:[%s1159] sm:$0xff]
          %v1481 = vld [vmem:[%s1159 + $0x8] sm:$0xf]
          %v1482 = vld [vmem:[%s1159 + $0xc] sm:$0xff]
          %v1483 = vld [vmem:[%s1159 + $0x14] sm:$0xf]
          %v1484 = vld [vmem:[%s1159 + $0x18] sm:$0xff]
          %v1485 = vld [vmem:[%s1159 + $0x20] sm:$0xf]
          %v1486 = vld [vmem:[%s1159 + $0x24] sm:$0xff]
          %v1487 = vld [vmem:[%s1159 + $0x2c] sm:$0xf]
          %v1488 = vld [vmem:[%s1159 + $0x30] sm:$0xff]
          %v1489 = vld [vmem:[%s1159 + $0x38] sm:$0xf]
          %v1490 = vld [vmem:[%s1159 + $0x3c] sm:$0xff]
          %v1491 = vld [vmem:[%s1159 + $0x44] sm:$0xf]
          %v1492 = vld [vmem:[%s1159 + $0x48] sm:$0xff]
          %v1493 = vld [vmem:[%s1159 + $0x50] sm:$0xf]
          %v1494 = vld [vmem:[%s1159 + $0x54] sm:$0xff]
          %v1495 = vld [vmem:[%s1159 + $0x5c] sm:$0xf]
          %v1496 = vld [vmem:[%s1159 + $0x60] sm:$0xff]
          %v1497 = vld [vmem:[%s1159 + $0x68] sm:$0xf]
          %v1498 = vld [vmem:[%s1159 + $0x6c] sm:$0xff]
          %v1499 = vld [vmem:[%s1159 + $0x74] sm:$0xf]
          %v1500 = vld [vmem:[%s1159 + $0x78] sm:$0xff]
          %v1501 = vld [vmem:[%s1159 + $0x80] sm:$0xf]
          %v1502 = vld [vmem:[%s1159 + $0x84] sm:$0xff]
          %v1503 = vld [vmem:[%s1159 + $0x8c] sm:$0xf]
          %v1504 = vld [vmem:[%s1159 + $0x90] sm:$0xff]
          %v1505 = vld [vmem:[%s1159 + $0x98] sm:$0xf]
          %v1506 = vld [vmem:[%s1159 + $0x9c] sm:$0xff]
          %v1507 = vld [vmem:[%s1159 + $0xa4] sm:$0xf]
          %v1508 = vld [vmem:[%s1159 + $0xa8] sm:$0xff]
          %v1509 = vld [vmem:[%s1159 + $0xb0] sm:$0xf]
          %v1510 = vld [vmem:[%s1159 + $0xb4] sm:$0xff]
          %v1511 = vld [vmem:[%s1159 + $0xbc] sm:$0xf]
          %v1512 = vld [vmem:[%s1168] sm:$0x7]
          %v1514 = vlaneseq
          %v1515 = vshrl.u32 %v1514, 7
          %v1516 = vsub.s32 0, %v1515
          %v1517 = vrot.slane %v1512, %v1516
          %v1518 = vlaneseq
          %v1519 = vshrl.u32 %v1518, 7
          %v1520 = vsub.s32 1, %v1519
          %v1521 = vrot.slane %v1512, %v1520
          %v1522 = vlaneseq
          %v1523 = vshrl.u32 %v1522, 7
          %v1524 = vsub.s32 2, %v1523
          %v1525 = vrot.slane %v1512, %v1524
          %v1561 = vunpack.c.l.b16 %v1480
          %v1562 = vunpack.c.h.b16 %v1480
          %v1563 = vunpack.c.l.b16 %v1481
          %v1564 = vunpack.c.l.b16 %v1482
          %v1565 = vunpack.c.h.b16 %v1482
          %v1566 = vunpack.c.l.b16 %v1483
          %v1567 = vunpack.c.l.b16 %v1484
          %v1568 = vunpack.c.h.b16 %v1484
          %v1569 = vunpack.c.l.b16 %v1485
          %v1570 = vunpack.c.l.b16 %v1486
          %v1571 = vunpack.c.h.b16 %v1486
          %v1572 = vunpack.c.l.b16 %v1487
          %v1573 = vunpack.c.l.b16 %v1488
          %v1574 = vunpack.c.h.b16 %v1488
          %v1575 = vunpack.c.l.b16 %v1489
          %v1576 = vunpack.c.l.b16 %v1490
          %v1577 = vunpack.c.h.b16 %v1490
          %v1578 = vunpack.c.l.b16 %v1491
          %v1579 = vunpack.c.l.b16 %v1492
          %v1580 = vunpack.c.h.b16 %v1492
          %v1581 = vunpack.c.l.b16 %v1493
          %v1582 = vunpack.c.l.b16 %v1494
          %v1583 = vunpack.c.h.b16 %v1494
          %v1584 = vunpack.c.l.b16 %v1495
          %v1585 = vunpack.c.l.b16 %v1496
          %v1586 = vunpack.c.h.b16 %v1496
          %v1587 = vunpack.c.l.b16 %v1497
          %v1588 = vunpack.c.l.b16 %v1498
          %v1589 = vunpack.c.h.b16 %v1498
          %v1590 = vunpack.c.l.b16 %v1499
          %v1591 = vunpack.c.l.b16 %v1500
          %v1592 = vunpack.c.h.b16 %v1500
          %v1593 = vunpack.c.l.b16 %v1501
          %v1594 = vunpack.c.l.b16 %v1502
          %v1595 = vunpack.c.h.b16 %v1502
          %v1596 = vunpack.c.l.b16 %v1503
          %v1597 = vunpack.c.l.b16 %v1504
          %v1598 = vunpack.c.h.b16 %v1504
          %v1599 = vunpack.c.l.b16 %v1505
          %v1600 = vunpack.c.l.b16 %v1506
          %v1601 = vunpack.c.h.b16 %v1506
          %v1602 = vunpack.c.l.b16 %v1507
          %v1603 = vunpack.c.l.b16 %v1508
          %v1604 = vunpack.c.h.b16 %v1508
          %v1605 = vunpack.c.l.b16 %v1509
          %v1606 = vunpack.c.l.b16 %v1510
          %v1607 = vunpack.c.h.b16 %v1510
          %v1608 = vunpack.c.l.b16 %v1511
          %v1609 = vpack.c.b16 %v1564, %v1561
          %v1610 = vpack.c.b16 %v1565, %v1562
          %v1611 = vpack.c.b16 %v1566, %v1563
          %v1612 = vpack.c.b16 %v1570, %v1567
          %v1613 = vpack.c.b16 %v1571, %v1568
          %v1614 = vpack.c.b16 %v1572, %v1569
          %v1615 = vpack.c.b16 %v1576, %v1573
          %v1616 = vpack.c.b16 %v1577, %v1574
          %v1617 = vpack.c.b16 %v1578, %v1575
          %v1618 = vpack.c.b16 %v1582, %v1579
          %v1619 = vpack.c.b16 %v1583, %v1580
          %v1620 = vpack.c.b16 %v1584, %v1581
          %v1621 = vpack.c.b16 %v1588, %v1585
          %v1622 = vpack.c.b16 %v1589, %v1586
          %v1623 = vpack.c.b16 %v1590, %v1587
          %v1624 = vpack.c.b16 %v1594, %v1591
          %v1625 = vpack.c.b16 %v1595, %v1592
          %v1626 = vpack.c.b16 %v1596, %v1593
          %v1627 = vpack.c.b16 %v1600, %v1597
          %v1628 = vpack.c.b16 %v1601, %v1598
          %v1629 = vpack.c.b16 %v1602, %v1599
          %v1630 = vpack.c.b16 %v1606, %v1603
          %v1631 = vpack.c.b16 %v1607, %v1604
          %v1632 = vpack.c.b16 %v1608, %v1605
          %1657 = vmatprep.subr.bf16.mxu0 %v1631
          %1658 = vmatpush1.bf16.msra.mxu0 %v1630
          %1659 = vmatprep.subr.bf16.mxu0 %v1628
          %1660 = vmatpush1.bf16.msra.mxu0 %v1627
          %1661 = vmatprep.subr.bf16.mxu0 %v1625
          %1662 = vmatpush1.bf16.msra.mxu0 %v1624
          %1663 = vmatprep.subr.bf16.mxu0 %v1622
          %1664 = vmatpush1.bf16.msra.mxu0 %v1621
          %1665 = vmatprep.subr.bf16.mxu0 %v1619
          %1666 = vmatpush1.bf16.msra.mxu0 %v1618
          %1667 = vmatprep.subr.bf16.mxu0 %v1616
          %1668 = vmatpush1.bf16.msra.mxu0 %v1615
          %1669 = vmatprep.subr.bf16.mxu0 %v1613
          %1670 = vmatpush1.bf16.msra.mxu0 %v1612
          %1671 = vmatprep.subr.bf16.mxu0 %v1610
          %1672 = vmatpush1.bf16.msra.mxu0 %v1609
          %1673 = vmatprep.subr.bf16.mxu0 0
          %1674 = vmatpush2.bf16.msra.mxu0 0
          %1675 = vmatprep.subr.bf16.mxu0 0
          %1676 = vmatpush2.bf16.msra.mxu0 0
          %1677 = vmatprep.subr.bf16.mxu0 0
          %1678 = vmatpush2.bf16.msra.mxu0 0
          %1679 = vmatprep.subr.bf16.mxu0 0
          %1680 = vmatpush2.bf16.msra.mxu0 0
          %1681 = vmatprep.subr.bf16.mxu0 0
          %1682 = vmatpush2.bf16.msra.mxu0 0
          %1683 = vmatprep.subr.bf16.mxu0 0
          %1684 = vmatpush2.bf16.msra.mxu0 0
          %1685 = vmatprep.subr.bf16.mxu0 0
          %1686 = vmatpush2.bf16.msra.mxu0 0
          %1687 = vmatprep.subr.bf16.mxu0 0
          %1688 = vmatpush2.bf16.msra.mxu0 0
          %1689 = vmatprep.mubr.bf16.mxu0 0
          %1690 = vmatmul.mubr.bf16.gmra.mxu0 %v1479
          %v1691 = vpop.f32.mrf.mxu0
          %v1692 = vadd.f32 %v1517, %v1691
          %v1693 = vpop.f32.mrf.mxu0
          %v1694 = vadd.f32 %v1521, %v1693
          %v1695 = vpop.f32.mrf.mxu0
          %v1696 = vadd.f32 %v1517, %v1695
          %v1697 = vpop.f32.mrf.mxu0
          %v1698 = vadd.f32 %v1521, %v1697
          %1699 = vdwg.mxu0
          %1700 = vmatprep.subr.bf16.mxu0 0
          %1701 = vmatpush1.bf16.msra.mxu0 %v1632
          %1702 = vmatprep.subr.bf16.mxu0 0
          %1703 = vmatpush1.bf16.msra.mxu0 %v1629
          %1704 = vmatprep.subr.bf16.mxu0 0
          %1705 = vmatpush1.bf16.msra.mxu0 %v1626
          %1706 = vmatprep.subr.bf16.mxu0 0
          %1707 = vmatpush1.bf16.msra.mxu0 %v1623
          %1708 = vmatprep.subr.bf16.mxu0 0
          %1709 = vmatpush1.bf16.msra.mxu0 %v1620
          %1710 = vmatprep.subr.bf16.mxu0 0
          %1711 = vmatpush1.bf16.msra.mxu0 %v1617
          %1712 = vmatprep.subr.bf16.mxu0 0
          %1713 = vmatpush1.bf16.msra.mxu0 %v1614
          %1714 = vmatprep.subr.bf16.mxu0 0
          %1715 = vmatpush1.bf16.msra.mxu0 %v1611
          %1716 = vmatprep.subr.bf16.mxu0 0
          %1717 = vmatpush2.bf16.msra.mxu0 0
          %1718 = vmatprep.subr.bf16.mxu0 0
          %1719 = vmatpush2.bf16.msra.mxu0 0
          %1720 = vmatprep.subr.bf16.mxu0 0
          %1721 = vmatpush2.bf16.msra.mxu0 0
          %1722 = vmatprep.subr.bf16.mxu0 0
          %1723 = vmatpush2.bf16.msra.mxu0 0
          %1724 = vmatprep.subr.bf16.mxu0 0
          %1725 = vmatpush2.bf16.msra.mxu0 0
          %1726 = vmatprep.subr.bf16.mxu0 0
          %1727 = vmatpush2.bf16.msra.mxu0 0
          %1728 = vmatprep.subr.bf16.mxu0 0
          %1729 = vmatpush2.bf16.msra.mxu0 0
          %1730 = vmatprep.subr.bf16.mxu0 0
          %1731 = vmatpush2.bf16.msra.mxu0 0
          %1732 = vmatprep.mubr.bf16.mxu0 0
          %1733 = vmatmul.mubr.bf16.gmra.mxu0 %v1479
          %v1734 = vpop.f32.mrf.mxu0
          %v1735 = vadd.f32 %v1525, %v1734
          %v1736 = vpop.f32.mrf.mxu0
          %v1737 = vpop.f32.mrf.mxu0
          %v1738 = vadd.f32 %v1525, %v1737
          %v1739 = vpop.f32.mrf.mxu0
          %1740 = vdwg.mxu0
          %1743 = vrot.lane.b32.xlu0 %v1692, 96
          %v1744 = vpop.permute.xlu0 %1743
          %1745 = vrot.lane.b32.xlu0 %v1696, 96
          %v1746 = vpop.permute.xlu0 %1745
          %1747 = vrot.lane.b32.xlu0 %v1692, 64
          %v1748 = vpop.permute.xlu0 %1747
          %1749 = vrot.lane.b32.xlu0 %v1696, 64
          %v1750 = vpop.permute.xlu0 %1749
          %1751 = vrot.lane.b32.xlu0 %v1692, 32
          %v1752 = vpop.permute.xlu0 %1751
          %1753 = vrot.lane.b32.xlu0 %v1696, 32
          %v1754 = vpop.permute.xlu0 %1753
          %1757 = vrot.lane.b32.xlu0 %v1694, 96
          %v1758 = vpop.permute.xlu0 %1757
          %1759 = vrot.lane.b32.xlu0 %v1698, 96
          %v1760 = vpop.permute.xlu0 %1759
          %1761 = vrot.lane.b32.xlu0 %v1694, 64
          %v1762 = vpop.permute.xlu0 %1761
          %1763 = vrot.lane.b32.xlu0 %v1698, 64
          %v1764 = vpop.permute.xlu0 %1763
          %1765 = vrot.lane.b32.xlu0 %v1694, 32
          %v1766 = vpop.permute.xlu0 %1765
          %1767 = vrot.lane.b32.xlu0 %v1698, 32
          %v1768 = vpop.permute.xlu0 %1767
          %1771 = vrot.lane.b32.xlu0 %v1735, 96
          %v1772 = vpop.permute.xlu0 %1771
          %1773 = vrot.lane.b32.xlu0 %v1738, 96
          %v1774 = vpop.permute.xlu0 %1773
          %1777 = vrot.lane.b32.xlu0 %v1735, 64
          %v1778 = vpop.permute.xlu0 %1777
          %1779 = vrot.lane.b32.xlu0 %v1738, 64
          %v1780 = vpop.permute.xlu0 %1779
          %1783 = vrot.lane.b32.xlu0 %v1735, 32
          %v1784 = vpop.permute.xlu0 %1783
          %1785 = vrot.lane.b32.xlu0 %v1738, 32
          %v1786 = vpop.permute.xlu0 %1785
          %v1789 = vld [vmem:[%s2] sm:$0xff]
          %v1790 = vld [vmem:[%s2 + $0x8] sm:$0xff]
          %v1791 = vld [vmem:[#allocation10] sm:$0x1]
          %1793 = vset.pattern.permute.xlu0 0
          %1794 = vperm.xlu0 %1793, %v1789
          %v1795 = vpop.permute.xlu0 %1794
          %1798 = vset.pattern.permute.xlu0 0
          %1799 = vperm.xlu0 %1798, %v1790
          %v1800 = vpop.permute.xlu0 %1799
          %v1803 = vlaneseq
          %v1804 = vshrl.u32 %v1803, 7
          %v1805 = vsub.s32 0, %v1804
          %v1806 = vrot.slane %v1791, %v1805
          %vm1808 = vcmp.eq.f32.partialorder %v1795, %v1806
          %vm1809 = vcmp.eq.f32.partialorder %v1800, %v1806
          %v1810 = vsel %vm1808, 0.0, -1e+09
          %v1811 = vsel %vm1809, 0.0, -1e+09
          %vm1812 = vcmask 261120
          %v1813 = vsel %vm1812, %v1692, 0
          %v1815 = vsel %vm1812, %v1696, 0
          %v1817 = vsel %vm1812, %v1694, 0
          %v1819 = vsel %vm1812, %v1698, 0
          %1821 = vmatprep.subr.mxu0 0.0
          %1822 = vmatpush1.xpose.msra.mxu0 0.0
          %1823 = vmatprep.subr.mxu0 0.0
          %1824 = vmatpush1.xpose.msra.mxu0 0.0
          %1825 = vmatprep.subr.mxu0 0.0
          %1826 = vmatpush1.xpose.msra.mxu0 0.0
          %1827 = vmatprep.subr.mxu0 0.0
          %1828 = vmatpush1.xpose.msra.mxu0 0.0
          %1829 = vmatprep.subr.mxu0 0.0
          %1830 = vmatpush1.xpose.msra.mxu0 0.0
          %1831 = vmatprep.subr.mxu0 0.0
          %1832 = vmatpush1.xpose.msra.mxu0 0.0
          %1833 = vmatprep.subr.mxu0 0.0
          %1834 = vmatpush1.xpose.msra.mxu0 0.0
          %1835 = vmatprep.subr.mxu0 0.0
          %1836 = vmatpush1.xpose.msra.mxu0 0.0
          %1837 = vmatprep.subr.mxu0 0.0
          %1838 = vmatpush1.xpose.msra.mxu0 0.0
          %1839 = vmatprep.subr.mxu0 0.0
          %1840 = vmatpush1.xpose.msra.mxu0 0.0
          %1841 = vmatprep.subr.mxu0 0.0
          %1842 = vmatpush1.xpose.msra.mxu0 0.0
          %1843 = vmatprep.subr.mxu0 0.0
          %1844 = vmatpush1.xpose.msra.mxu0 0.0
          %1845 = vmatprep.subr.mxu0 0.0
          %1846 = vmatpush1.xpose.msra.mxu0 0.0
          %1847 = vmatprep.subr.mxu0 0.0
          %1848 = vmatpush1.xpose.msra.mxu0 0.0
          %1849 = vmatprep.subr.mxu0 0.0
          %1850 = vmatpush1.xpose.msra.mxu0 %v1819
          %1851 = vmatprep.subr.mxu0 0.0
          %1852 = vmatpush1.xpose.msra.mxu0 %v1817
          %1853 = vmatprep.subr.mxu0 0.0
          %1854 = vmatpush2.xpose.msra.mxu0 0.0
          %1855 = vmatprep.subr.mxu0 0.0
          %1856 = vmatpush2.xpose.msra.mxu0 0.0
          %1857 = vmatprep.subr.mxu0 0.0
          %1858 = vmatpush2.xpose.msra.mxu0 0.0
          %1859 = vmatprep.subr.mxu0 0.0
          %1860 = vmatpush2.xpose.msra.mxu0 0.0
          %1861 = vmatprep.subr.mxu0 0.0
          %1862 = vmatpush2.xpose.msra.mxu0 0.0
          %1863 = vmatprep.subr.mxu0 0.0
          %1864 = vmatpush2.xpose.msra.mxu0 0.0
          %1865 = vmatprep.subr.mxu0 0.0
          %1866 = vmatpush2.xpose.msra.mxu0 0.0
          %1867 = vmatprep.subr.mxu0 0.0
          %1868 = vmatpush2.xpose.msra.mxu0 0.0
          %1869 = vmatprep.subr.mxu0 0.0
          %1870 = vmatpush2.xpose.msra.mxu0 0.0
          %1871 = vmatprep.subr.mxu0 0.0
          %1872 = vmatpush2.xpose.msra.mxu0 0.0
          %1873 = vmatprep.subr.mxu0 0.0
          %1874 = vmatpush2.xpose.msra.mxu0 0.0
          %1875 = vmatprep.subr.mxu0 0.0
          %1876 = vmatpush2.xpose.msra.mxu0 0.0
          %1877 = vmatprep.subr.mxu0 0.0
          %1878 = vmatpush2.xpose.msra.mxu0 0.0
          %1879 = vmatprep.subr.mxu0 0.0
          %1880 = vmatpush2.xpose.msra.mxu0 0.0
          %1881 = vmatprep.subr.mxu0 0.0
          %1882 = vmatpush2.xpose.msra.mxu0 0.0
          %1883 = vmatprep.subr.mxu0 0.0
          %1884 = vmatpush2.xpose.msra.mxu0 0.0
          %1885 = vmatprep.mubr.f32.mxu0 0.0
          %1886 = vmatmul.mubr.f32.gmra.mxu0 %v1813
          %v1887 = vpop.f32.mrf.mxu0
          %v1888 = vadd.f32 %v1810, %v1887
          %v1889 = vpop.f32.mrf.mxu0
          %1890 = vmatprep.mubr.f32.mxu0 0.0
          %1891 = vmatmul.mubr.f32.gmra.mxu0 %v1815
          %v1892 = vpop.f32.mrf.mxu0
          %v1893 = vadd.f32 %v1811, %v1892
          %v1894 = vpop.f32.mrf.mxu0
          %1895 = vdwg.mxu0
          %v1896 = vsel %vm1812, %v1744, 0
          %v1898 = vsel %vm1812, %v1746, 0
          %v1900 = vsel %vm1812, %v1758, 0
          %v1902 = vsel %vm1812, %v1760, 0
          %1904 = vmatprep.subr.mxu0 0.0
          %1905 = vmatpush1.xpose.msra.mxu0 0.0
          %1906 = vmatprep.subr.mxu0 0.0
          %1907 = vmatpush1.xpose.msra.mxu0 0.0
          %1908 = vmatprep.subr.mxu0 0.0
          %1909 = vmatpush1.xpose.msra.mxu0 0.0
          %1910 = vmatprep.subr.mxu0 0.0
          %1911 = vmatpush1.xpose.msra.mxu0 0.0
          %1912 = vmatprep.subr.mxu0 0.0
          %1913 = vmatpush1.xpose.msra.mxu0 0.0
          %1914 = vmatprep.subr.mxu0 0.0
          %1915 = vmatpush1.xpose.msra.mxu0 0.0
          %1916 = vmatprep.subr.mxu0 0.0
          %1917 = vmatpush1.xpose.msra.mxu0 0.0
          %1918 = vmatprep.subr.mxu0 0.0
          %1919 = vmatpush1.xpose.msra.mxu0 0.0
          %1920 = vmatprep.subr.mxu0 0.0
          %1921 = vmatpush1.xpose.msra.mxu0 0.0
          %1922 = vmatprep.subr.mxu0 0.0
          %1923 = vmatpush1.xpose.msra.mxu0 0.0
          %1924 = vmatprep.subr.mxu0 0.0
          %1925 = vmatpush1.xpose.msra.mxu0 0.0
          %1926 = vmatprep.subr.mxu0 0.0
          %1927 = vmatpush1.xpose.msra.mxu0 0.0
          %1928 = vmatprep.subr.mxu0 0.0
          %1929 = vmatpush1.xpose.msra.mxu0 0.0
          %1930 = vmatprep.subr.mxu0 0.0
          %1931 = vmatpush1.xpose.msra.mxu0 0.0
          %1932 = vmatprep.subr.mxu0 0.0
          %1933 = vmatpush1.xpose.msra.mxu0 %v1902
          %1934 = vmatprep.subr.mxu0 0.0
          %1935 = vmatpush1.xpose.msra.mxu0 %v1900
          %1936 = vmatprep.subr.mxu0 0.0
          %1937 = vmatpush2.xpose.msra.mxu0 0.0
          %1938 = vmatprep.subr.mxu0 0.0
          %1939 = vmatpush2.xpose.msra.mxu0 0.0
          %1940 = vmatprep.subr.mxu0 0.0
          %1941 = vmatpush2.xpose.msra.mxu0 0.0
          %1942 = vmatprep.subr.mxu0 0.0
          %1943 = vmatpush2.xpose.msra.mxu0 0.0
          %1944 = vmatprep.subr.mxu0 0.0
          %1945 = vmatpush2.xpose.msra.mxu0 0.0
          %1946 = vmatprep.subr.mxu0 0.0
          %1947 = vmatpush2.xpose.msra.mxu0 0.0
          %1948 = vmatprep.subr.mxu0 0.0
          %1949 = vmatpush2.xpose.msra.mxu0 0.0
          %1950 = vmatprep.subr.mxu0 0.0
          %1951 = vmatpush2.xpose.msra.mxu0 0.0
          %1952 = vmatprep.subr.mxu0 0.0
          %1953 = vmatpush2.xpose.msra.mxu0 0.0
          %1954 = vmatprep.subr.mxu0 0.0
          %1955 = vmatpush2.xpose.msra.mxu0 0.0
          %1956 = vmatprep.subr.mxu0 0.0
          %1957 = vmatpush2.xpose.msra.mxu0 0.0
          %1958 = vmatprep.subr.mxu0 0.0
          %1959 = vmatpush2.xpose.msra.mxu0 0.0
          %1960 = vmatprep.subr.mxu0 0.0
          %1961 = vmatpush2.xpose.msra.mxu0 0.0
          %1962 = vmatprep.subr.mxu0 0.0
          %1963 = vmatpush2.xpose.msra.mxu0 0.0
          %1964 = vmatprep.subr.mxu0 0.0
          %1965 = vmatpush2.xpose.msra.mxu0 0.0
          %1966 = vmatprep.subr.mxu0 0.0
          %1967 = vmatpush2.xpose.msra.mxu0 0.0
          %1968 = vmatprep.mubr.f32.mxu0 0.0
          %1969 = vmatmul.mubr.f32.gmra.mxu0 %v1896
          %v1970 = vpop.f32.mrf.mxu0
          %v1971 = vadd.f32 %v1810, %v1970
          %v1972 = vpop.f32.mrf.mxu0
          %1973 = vmatprep.mubr.f32.mxu0 0.0
          %1974 = vmatmul.mubr.f32.gmra.mxu0 %v1898
          %v1975 = vpop.f32.mrf.mxu0
          %v1976 = vadd.f32 %v1811, %v1975
          %v1977 = vpop.f32.mrf.mxu0
          %1978 = vdwg.mxu0
          %v1979 = vsel %vm1812, %v1748, 0
          %v1981 = vsel %vm1812, %v1750, 0
          %v1983 = vsel %vm1812, %v1762, 0
          %v1985 = vsel %vm1812, %v1764, 0
          %1987 = vmatprep.subr.mxu0 0.0
          %1988 = vmatpush1.xpose.msra.mxu0 0.0
          %1989 = vmatprep.subr.mxu0 0.0
          %1990 = vmatpush1.xpose.msra.mxu0 0.0
          %1991 = vmatprep.subr.mxu0 0.0
          %1992 = vmatpush1.xpose.msra.mxu0 0.0
          %1993 = vmatprep.subr.mxu0 0.0
          %1994 = vmatpush1.xpose.msra.mxu0 0.0
          %1995 = vmatprep.subr.mxu0 0.0
          %1996 = vmatpush1.xpose.msra.mxu0 0.0
          %1997 = vmatprep.subr.mxu0 0.0
          %1998 = vmatpush1.xpose.msra.mxu0 0.0
          %1999 = vmatprep.subr.mxu0 0.0
          %2000 = vmatpush1.xpose.msra.mxu0 0.0
          %2001 = vmatprep.subr.mxu0 0.0
          %2002 = vmatpush1.xpose.msra.mxu0 0.0
          %2003 = vmatprep.subr.mxu0 0.0
          %2004 = vmatpush1.xpose.msra.mxu0 0.0
          %2005 = vmatprep.subr.mxu0 0.0
          %2006 = vmatpush1.xpose.msra.mxu0 0.0
          %2007 = vmatprep.subr.mxu0 0.0
          %2008 = vmatpush1.xpose.msra.mxu0 0.0
          %2009 = vmatprep.subr.mxu0 0.0
          %2010 = vmatpush1.xpose.msra.mxu0 0.0
          %2011 = vmatprep.subr.mxu0 0.0
          %2012 = vmatpush1.xpose.msra.mxu0 0.0
          %2013 = vmatprep.subr.mxu0 0.0
          %2014 = vmatpush1.xpose.msra.mxu0 0.0
          %2015 = vmatprep.subr.mxu0 0.0
          %2016 = vmatpush1.xpose.msra.mxu0 %v1985
          %2017 = vmatprep.subr.mxu0 0.0
          %2018 = vmatpush1.xpose.msra.mxu0 %v1983
          %2019 = vmatprep.subr.mxu0 0.0
          %2020 = vmatpush2.xpose.msra.mxu0 0.0
          %2021 = vmatprep.subr.mxu0 0.0
          %2022 = vmatpush2.xpose.msra.mxu0 0.0
          %2023 = vmatprep.subr.mxu0 0.0
          %2024 = vmatpush2.xpose.msra.mxu0 0.0
          %2025 = vmatprep.subr.mxu0 0.0
          %2026 = vmatpush2.xpose.msra.mxu0 0.0
          %2027 = vmatprep.subr.mxu0 0.0
          %2028 = vmatpush2.xpose.msra.mxu0 0.0
          %2029 = vmatprep.subr.mxu0 0.0
          %2030 = vmatpush2.xpose.msra.mxu0 0.0
          %2031 = vmatprep.subr.mxu0 0.0
          %2032 = vmatpush2.xpose.msra.mxu0 0.0
          %2033 = vmatprep.subr.mxu0 0.0
          %2034 = vmatpush2.xpose.msra.mxu0 0.0
          %2035 = vmatprep.subr.mxu0 0.0
          %2036 = vmatpush2.xpose.msra.mxu0 0.0
          %2037 = vmatprep.subr.mxu0 0.0
          %2038 = vmatpush2.xpose.msra.mxu0 0.0
          %2039 = vmatprep.subr.mxu0 0.0
          %2040 = vmatpush2.xpose.msra.mxu0 0.0
          %2041 = vmatprep.subr.mxu0 0.0
          %2042 = vmatpush2.xpose.msra.mxu0 0.0
          %2043 = vmatprep.subr.mxu0 0.0
          %2044 = vmatpush2.xpose.msra.mxu0 0.0
          %2045 = vmatprep.subr.mxu0 0.0
          %2046 = vmatpush2.xpose.msra.mxu0 0.0
          %2047 = vmatprep.subr.mxu0 0.0
          %2048 = vmatpush2.xpose.msra.mxu0 0.0
          %2049 = vmatprep.subr.mxu0 0.0
          %2050 = vmatpush2.xpose.msra.mxu0 0.0
          %2051 = vmatprep.mubr.f32.mxu0 0.0
          %2052 = vmatmul.mubr.f32.gmra.mxu0 %v1979
          %v2053 = vpop.f32.mrf.mxu0
          %v2054 = vadd.f32 %v1810, %v2053
          %v2055 = vpop.f32.mrf.mxu0
          %2056 = vmatprep.mubr.f32.mxu0 0.0
          %2057 = vmatmul.mubr.f32.gmra.mxu0 %v1981
          %v2058 = vpop.f32.mrf.mxu0
          %v2059 = vadd.f32 %v1811, %v2058
          %v2060 = vpop.f32.mrf.mxu0
          %2061 = vdwg.mxu0
          %v2062 = vsel %vm1812, %v1752, 0
          %v2064 = vsel %vm1812, %v1754, 0
          %v2066 = vsel %vm1812, %v1766, 0
          %v2068 = vsel %vm1812, %v1768, 0
          %2070 = vmatprep.subr.mxu0 0.0
          %2071 = vmatpush1.xpose.msra.mxu0 0.0
          %2072 = vmatprep.subr.mxu0 0.0
          %2073 = vmatpush1.xpose.msra.mxu0 0.0
          %2074 = vmatprep.subr.mxu0 0.0
          %2075 = vmatpush1.xpose.msra.mxu0 0.0
          %2076 = vmatprep.subr.mxu0 0.0
          %2077 = vmatpush1.xpose.msra.mxu0 0.0
          %2078 = vmatprep.subr.mxu0 0.0
          %2079 = vmatpush1.xpose.msra.mxu0 0.0
          %2080 = vmatprep.subr.mxu0 0.0
          %2081 = vmatpush1.xpose.msra.mxu0 0.0
          %2082 = vmatprep.subr.mxu0 0.0
          %2083 = vmatpush1.xpose.msra.mxu0 0.0
          %2084 = vmatprep.subr.mxu0 0.0
          %2085 = vmatpush1.xpose.msra.mxu0 0.0
          %2086 = vmatprep.subr.mxu0 0.0
          %2087 = vmatpush1.xpose.msra.mxu0 0.0
          %2088 = vmatprep.subr.mxu0 0.0
          %2089 = vmatpush1.xpose.msra.mxu0 0.0
          %2090 = vmatprep.subr.mxu0 0.0
          %2091 = vmatpush1.xpose.msra.mxu0 0.0
          %2092 = vmatprep.subr.mxu0 0.0
          %2093 = vmatpush1.xpose.msra.mxu0 0.0
          %2094 = vmatprep.subr.mxu0 0.0
          %2095 = vmatpush1.xpose.msra.mxu0 0.0
          %2096 = vmatprep.subr.mxu0 0.0
          %2097 = vmatpush1.xpose.msra.mxu0 0.0
          %2098 = vmatprep.subr.mxu0 0.0
          %2099 = vmatpush1.xpose.msra.mxu0 %v2068
          %2100 = vmatprep.subr.mxu0 0.0
          %2101 = vmatpush1.xpose.msra.mxu0 %v2066
          %2102 = vmatprep.subr.mxu0 0.0
          %2103 = vmatpush2.xpose.msra.mxu0 0.0
          %2104 = vmatprep.subr.mxu0 0.0
          %2105 = vmatpush2.xpose.msra.mxu0 0.0
          %2106 = vmatprep.subr.mxu0 0.0
          %2107 = vmatpush2.xpose.msra.mxu0 0.0
          %2108 = vmatprep.subr.mxu0 0.0
          %2109 = vmatpush2.xpose.msra.mxu0 0.0
          %2110 = vmatprep.subr.mxu0 0.0
          %2111 = vmatpush2.xpose.msra.mxu0 0.0
          %2112 = vmatprep.subr.mxu0 0.0
          %2113 = vmatpush2.xpose.msra.mxu0 0.0
          %2114 = vmatprep.subr.mxu0 0.0
          %2115 = vmatpush2.xpose.msra.mxu0 0.0
          %2116 = vmatprep.subr.mxu0 0.0
          %2117 = vmatpush2.xpose.msra.mxu0 0.0
          %2118 = vmatprep.subr.mxu0 0.0
          %2119 = vmatpush2.xpose.msra.mxu0 0.0
          %2120 = vmatprep.subr.mxu0 0.0
          %2121 = vmatpush2.xpose.msra.mxu0 0.0
          %2122 = vmatprep.subr.mxu0 0.0
          %2123 = vmatpush2.xpose.msra.mxu0 0.0
          %2124 = vmatprep.subr.mxu0 0.0
          %2125 = vmatpush2.xpose.msra.mxu0 0.0
          %2126 = vmatprep.subr.mxu0 0.0
          %2127 = vmatpush2.xpose.msra.mxu0 0.0
          %2128 = vmatprep.subr.mxu0 0.0
          %2129 = vmatpush2.xpose.msra.mxu0 0.0
          %2130 = vmatprep.subr.mxu0 0.0
          %2131 = vmatpush2.xpose.msra.mxu0 0.0
          %2132 = vmatprep.subr.mxu0 0.0
          %2133 = vmatpush2.xpose.msra.mxu0 0.0
          %2134 = vmatprep.mubr.f32.mxu0 0.0
          %2135 = vmatmul.mubr.f32.gmra.mxu0 %v2062
          %v2136 = vpop.f32.mrf.mxu0
          %v2137 = vadd.f32 %v1810, %v2136
          %v2138 = vpop.f32.mrf.mxu0
          %2139 = vmatprep.mubr.f32.mxu0 0.0
          %2140 = vmatmul.mubr.f32.gmra.mxu0 %v2064
          %v2141 = vpop.f32.mrf.mxu0
          %v2142 = vadd.f32 %v1811, %v2141
          %v2143 = vpop.f32.mrf.mxu0
          %2144 = vdwg.mxu0
          %vm2145 = vcmask 130048
          %v2146 = vsel %vm2145, %v1888, -inf
          %2147 = vmax.xlane.f32.xlu0 %v2146
          %v2148 = vpop.xlane.xlu0 %2147
          %v2149 = vsel %vm2145, %v1893, -inf
          %2150 = vmax.xlane.f32.xlu0 %v2149
          %v2151 = vpop.xlane.xlu0 %2150
          %v2152 = vsel %vm2145, %v1971, -inf
          %2153 = vmax.xlane.f32.xlu0 %v2152
          %v2154 = vpop.xlane.xlu0 %2153
          %v2155 = vsel %vm2145, %v1976, -inf
          %2156 = vmax.xlane.f32.xlu0 %v2155
          %v2157 = vpop.xlane.xlu0 %2156
          %v2158 = vsel %vm2145, %v2054, -inf
          %2159 = vmax.xlane.f32.xlu0 %v2158
          %v2160 = vpop.xlane.xlu0 %2159
          %v2161 = vsel %vm2145, %v2059, -inf
          %2162 = vmax.xlane.f32.xlu0 %v2161
          %v2163 = vpop.xlane.xlu0 %2162
          %v2164 = vsel %vm2145, %v2137, -inf
          %2165 = vmax.xlane.f32.xlu0 %v2164
          %v2166 = vpop.xlane.xlu0 %2165
          %v2167 = vsel %vm2145, %v2142, -inf
          %2168 = vmax.xlane.f32.xlu0 %v2167
          %v2169 = vpop.xlane.xlu0 %2168
          %v2170 = vsub.f32 %v1888, %v2148
          %v2171 = vsub.f32 %v1893, %v2151
          %v2172 = vsub.f32 %v1971, %v2154
          %v2173 = vsub.f32 %v1976, %v2157
          %v2174 = vsub.f32 %v2054, %v2160
          %v2175 = vsub.f32 %v2059, %v2163
          %v2176 = vsub.f32 %v2137, %v2166
          %v2177 = vsub.f32 %v2142, %v2169
          %v2178 = vmul.f32 %v2170, 1.442695
          %v2179 = vpow.pop %v2178
          %v2180 = vmul.f32 %v2171, 1.442695
          %v2181 = vpow.pop %v2180
          %v2182 = vmul.f32 %v2172, 1.442695
          %v2183 = vpow.pop %v2182
          %v2184 = vmul.f32 %v2173, 1.442695
          %v2185 = vpow.pop %v2184
          %v2186 = vmul.f32 %v2174, 1.442695
          %v2187 = vpow.pop %v2186
          %v2188 = vmul.f32 %v2175, 1.442695
          %v2189 = vpow.pop %v2188
          %v2190 = vmul.f32 %v2176, 1.442695
          %v2191 = vpow.pop %v2190
          %v2192 = vmul.f32 %v2177, 1.442695
          %v2193 = vpow.pop %v2192
          %v2194 = vsel %vm2145, %v2179, 0.0
          %2195 = vadd.xlane.f32.xlu0 %v2194
          %v2196 = vpop.xlane.xlu0 %2195
          %v2197 = vsel %vm2145, %v2181, 0.0
          %2198 = vadd.xlane.f32.xlu0 %v2197
          %v2199 = vpop.xlane.xlu0 %2198
          %v2200 = vsel %vm2145, %v2183, 0.0
          %2201 = vadd.xlane.f32.xlu0 %v2200
          %v2202 = vpop.xlane.xlu0 %2201
          %v2203 = vsel %vm2145, %v2185, 0.0
          %2204 = vadd.xlane.f32.xlu0 %v2203
          %v2205 = vpop.xlane.xlu0 %2204
          %v2206 = vsel %vm2145, %v2187, 0.0
          %2207 = vadd.xlane.f32.xlu0 %v2206
          %v2208 = vpop.xlane.xlu0 %2207
          %v2209 = vsel %vm2145, %v2189, 0.0
          %2210 = vadd.xlane.f32.xlu0 %v2209
          %v2211 = vpop.xlane.xlu0 %2210
          %v2212 = vsel %vm2145, %v2191, 0.0
          %2213 = vadd.xlane.f32.xlu0 %v2212
          %v2214 = vpop.xlane.xlu0 %2213
          %v2215 = vsel %vm2145, %v2193, 0.0
          %2216 = vadd.xlane.f32.xlu0 %v2215
          %v2217 = vpop.xlane.xlu0 %2216
          %v2218 = vrcp.pop %v2196
          %v2219 = vrcp.pop %v2199
          %v2220 = vrcp.pop %v2202
          %v2221 = vrcp.pop %v2205
          %v2222 = vrcp.pop %v2208
          %v2223 = vrcp.pop %v2211
          %v2224 = vrcp.pop %v2214
          %v2225 = vrcp.pop %v2217
          %v2226 = vmul.f32 %v2179, %v2218
          %v2227 = vmul.f32 %v2181, %v2219
          %v2228 = vmul.f32 %v2183, %v2220
          %v2229 = vmul.f32 %v2185, %v2221
          %v2230 = vmul.f32 %v2187, %v2222
          %v2231 = vmul.f32 %v2189, %v2223
          %v2232 = vmul.f32 %v2191, %v2224
          %v2233 = vmul.f32 %v2193, %v2225
          %v2235 = vsel %vm2145, %v2226, 0
          %v2238 = vsel %vm2145, %v2227, 0
          %2240 = vmatprep.subr.mxu0 0.0
          %2241 = vmatpush1.msra.mxu0 0.0
          %2242 = vmatprep.subr.mxu0 0.0
          %2243 = vmatpush1.msra.mxu0 0.0
          %2244 = vmatprep.subr.mxu0 0.0
          %2245 = vmatpush1.msra.mxu0 0.0
          %2246 = vmatprep.subr.mxu0 0.0
          %2247 = vmatpush1.msra.mxu0 0.0
          %2248 = vmatprep.subr.mxu0 0.0
          %2249 = vmatpush1.msra.mxu0 0.0
          %2250 = vmatprep.subr.mxu0 0.0
          %2251 = vmatpush1.msra.mxu0 0.0
          %2252 = vmatprep.subr.mxu0 0.0
          %2253 = vmatpush1.msra.mxu0 0.0
          %2254 = vmatprep.subr.mxu0 0.0
          %2255 = vmatpush1.msra.mxu0 0.0
          %2256 = vmatprep.subr.mxu0 0.0
          %2257 = vmatpush1.msra.mxu0 0.0
          %2258 = vmatprep.subr.mxu0 0.0
          %2259 = vmatpush1.msra.mxu0 0.0
          %2260 = vmatprep.subr.mxu0 0.0
          %2261 = vmatpush1.msra.mxu0 0.0
          %2262 = vmatprep.subr.mxu0 0.0
          %2263 = vmatpush1.msra.mxu0 0.0
          %2264 = vmatprep.subr.mxu0 0.0
          %2265 = vmatpush1.msra.mxu0 0.0
          %2266 = vmatprep.subr.mxu0 0.0
          %2267 = vmatpush1.msra.mxu0 0.0
          %2268 = vmatprep.subr.mxu0 0.0
          %2269 = vmatpush1.msra.mxu0 %v1738
          %2270 = vmatprep.subr.mxu0 0.0
          %2271 = vmatpush1.msra.mxu0 %v1735
          %2272 = vmatprep.subr.mxu0 0.0
          %2273 = vmatpush2.msra.mxu0 0.0
          %2274 = vmatprep.subr.mxu0 0.0
          %2275 = vmatpush2.msra.mxu0 0.0
          %2276 = vmatprep.subr.mxu0 0.0
          %2277 = vmatpush2.msra.mxu0 0.0
          %2278 = vmatprep.subr.mxu0 0.0
          %2279 = vmatpush2.msra.mxu0 0.0
          %2280 = vmatprep.subr.mxu0 0.0
          %2281 = vmatpush2.msra.mxu0 0.0
          %2282 = vmatprep.subr.mxu0 0.0
          %2283 = vmatpush2.msra.mxu0 0.0
          %2284 = vmatprep.subr.mxu0 0.0
          %2285 = vmatpush2.msra.mxu0 0.0
          %2286 = vmatprep.subr.mxu0 0.0
          %2287 = vmatpush2.msra.mxu0 0.0
          %2288 = vmatprep.subr.mxu0 0.0
          %2289 = vmatpush2.msra.mxu0 0.0
          %2290 = vmatprep.subr.mxu0 0.0
          %2291 = vmatpush2.msra.mxu0 0.0
          %2292 = vmatprep.subr.mxu0 0.0
          %2293 = vmatpush2.msra.mxu0 0.0
          %2294 = vmatprep.subr.mxu0 0.0
          %2295 = vmatpush2.msra.mxu0 0.0
          %2296 = vmatprep.subr.mxu0 0.0
          %2297 = vmatpush2.msra.mxu0 0.0
          %2298 = vmatprep.subr.mxu0 0.0
          %2299 = vmatpush2.msra.mxu0 0.0
          %2300 = vmatprep.subr.mxu0 0.0
          %2301 = vmatpush2.msra.mxu0 0.0
          %2302 = vmatprep.subr.mxu0 0.0
          %2303 = vmatpush2.msra.mxu0 0.0
          %2304 = vmatprep.mubr.f32.mxu0 0.0
          %2305 = vmatmul.mubr.f32.gmra.mxu0 %v2235
          %v2306 = vpop.f32.mrf.mxu0
          %v2307 = vadd.f32 0.0, %v2306
          %v2308 = vpop.f32.mrf.mxu0
          %2309 = vmatprep.mubr.f32.mxu0 0.0
          %2310 = vmatmul.mubr.f32.gmra.mxu0 %v2238
          %v2311 = vpop.f32.mrf.mxu0
          %v2312 = vadd.f32 0.0, %v2311
          %v2313 = vpop.f32.mrf.mxu0
          %2314 = vdwg.mxu0
          %v2316 = vsel %vm2145, %v2228, 0
          %v2319 = vsel %vm2145, %v2229, 0
          %2321 = vmatprep.subr.mxu0 0.0
          %2322 = vmatpush1.msra.mxu0 0.0
          %2323 = vmatprep.subr.mxu0 0.0
          %2324 = vmatpush1.msra.mxu0 0.0
          %2325 = vmatprep.subr.mxu0 0.0
          %2326 = vmatpush1.msra.mxu0 0.0
          %2327 = vmatprep.subr.mxu0 0.0
          %2328 = vmatpush1.msra.mxu0 0.0
          %2329 = vmatprep.subr.mxu0 0.0
          %2330 = vmatpush1.msra.mxu0 0.0
          %2331 = vmatprep.subr.mxu0 0.0
          %2332 = vmatpush1.msra.mxu0 0.0
          %2333 = vmatprep.subr.mxu0 0.0
          %2334 = vmatpush1.msra.mxu0 0.0
          %2335 = vmatprep.subr.mxu0 0.0
          %2336 = vmatpush1.msra.mxu0 0.0
          %2337 = vmatprep.subr.mxu0 0.0
          %2338 = vmatpush1.msra.mxu0 0.0
          %2339 = vmatprep.subr.mxu0 0.0
          %2340 = vmatpush1.msra.mxu0 0.0
          %2341 = vmatprep.subr.mxu0 0.0
          %2342 = vmatpush1.msra.mxu0 0.0
          %2343 = vmatprep.subr.mxu0 0.0
          %2344 = vmatpush1.msra.mxu0 0.0
          %2345 = vmatprep.subr.mxu0 0.0
          %2346 = vmatpush1.msra.mxu0 0.0
          %2347 = vmatprep.subr.mxu0 0.0
          %2348 = vmatpush1.msra.mxu0 0.0
          %2349 = vmatprep.subr.mxu0 0.0
          %2350 = vmatpush1.msra.mxu0 %v1774
          %2351 = vmatprep.subr.mxu0 0.0
          %2352 = vmatpush1.msra.mxu0 %v1772
          %2353 = vmatprep.subr.mxu0 0.0
          %2354 = vmatpush2.msra.mxu0 0.0
          %2355 = vmatprep.subr.mxu0 0.0
          %2356 = vmatpush2.msra.mxu0 0.0
          %2357 = vmatprep.subr.mxu0 0.0
          %2358 = vmatpush2.msra.mxu0 0.0
          %2359 = vmatprep.subr.mxu0 0.0
          %2360 = vmatpush2.msra.mxu0 0.0
          %2361 = vmatprep.subr.mxu0 0.0
          %2362 = vmatpush2.msra.mxu0 0.0
          %2363 = vmatprep.subr.mxu0 0.0
          %2364 = vmatpush2.msra.mxu0 0.0
          %2365 = vmatprep.subr.mxu0 0.0
          %2366 = vmatpush2.msra.mxu0 0.0
          %2367 = vmatprep.subr.mxu0 0.0
          %2368 = vmatpush2.msra.mxu0 0.0
          %2369 = vmatprep.subr.mxu0 0.0
          %2370 = vmatpush2.msra.mxu0 0.0
          %2371 = vmatprep.subr.mxu0 0.0
          %2372 = vmatpush2.msra.mxu0 0.0
          %2373 = vmatprep.subr.mxu0 0.0
          %2374 = vmatpush2.msra.mxu0 0.0
          %2375 = vmatprep.subr.mxu0 0.0
          %2376 = vmatpush2.msra.mxu0 0.0
          %2377 = vmatprep.subr.mxu0 0.0
          %2378 = vmatpush2.msra.mxu0 0.0
          %2379 = vmatprep.subr.mxu0 0.0
          %2380 = vmatpush2.msra.mxu0 0.0
          %2381 = vmatprep.subr.mxu0 0.0
          %2382 = vmatpush2.msra.mxu0 0.0
          %2383 = vmatprep.subr.mxu0 0.0
          %2384 = vmatpush2.msra.mxu0 0.0
          %2385 = vmatprep.mubr.f32.mxu0 0.0
          %2386 = vmatmul.mubr.f32.gmra.mxu0 %v2316
          %v2387 = vpop.f32.mrf.mxu0
          %v2388 = vadd.f32 0.0, %v2387
          %v2389 = vpop.f32.mrf.mxu0
          %2390 = vmatprep.mubr.f32.mxu0 0.0
          %2391 = vmatmul.mubr.f32.gmra.mxu0 %v2319
          %v2392 = vpop.f32.mrf.mxu0
          %v2393 = vadd.f32 0.0, %v2392
          %v2394 = vpop.f32.mrf.mxu0
          %2395 = vdwg.mxu0
          %v2397 = vsel %vm2145, %v2230, 0
          %v2400 = vsel %vm2145, %v2231, 0
          %2402 = vmatprep.subr.mxu0 0.0
          %2403 = vmatpush1.msra.mxu0 0.0
          %2404 = vmatprep.subr.mxu0 0.0
          %2405 = vmatpush1.msra.mxu0 0.0
          %2406 = vmatprep.subr.mxu0 0.0
          %2407 = vmatpush1.msra.mxu0 0.0
          %2408 = vmatprep.subr.mxu0 0.0
          %2409 = vmatpush1.msra.mxu0 0.0
          %2410 = vmatprep.subr.mxu0 0.0
          %2411 = vmatpush1.msra.mxu0 0.0
          %2412 = vmatprep.subr.mxu0 0.0
          %2413 = vmatpush1.msra.mxu0 0.0
          %2414 = vmatprep.subr.mxu0 0.0
          %2415 = vmatpush1.msra.mxu0 0.0
          %2416 = vmatprep.subr.mxu0 0.0
          %2417 = vmatpush1.msra.mxu0 0.0
          %2418 = vmatprep.subr.mxu0 0.0
          %2419 = vmatpush1.msra.mxu0 0.0
          %2420 = vmatprep.subr.mxu0 0.0
          %2421 = vmatpush1.msra.mxu0 0.0
          %2422 = vmatprep.subr.mxu0 0.0
          %2423 = vmatpush1.msra.mxu0 0.0
          %2424 = vmatprep.subr.mxu0 0.0
          %2425 = vmatpush1.msra.mxu0 0.0
          %2426 = vmatprep.subr.mxu0 0.0
          %2427 = vmatpush1.msra.mxu0 0.0
          %2428 = vmatprep.subr.mxu0 0.0
          %2429 = vmatpush1.msra.mxu0 0.0
          %2430 = vmatprep.subr.mxu0 0.0
          %2431 = vmatpush1.msra.mxu0 %v1780
          %2432 = vmatprep.subr.mxu0 0.0
          %2433 = vmatpush1.msra.mxu0 %v1778
          %2434 = vmatprep.subr.mxu0 0.0
          %2435 = vmatpush2.msra.mxu0 0.0
          %2436 = vmatprep.subr.mxu0 0.0
          %2437 = vmatpush2.msra.mxu0 0.0
          %2438 = vmatprep.subr.mxu0 0.0
          %2439 = vmatpush2.msra.mxu0 0.0
          %2440 = vmatprep.subr.mxu0 0.0
          %2441 = vmatpush2.msra.mxu0 0.0
          %2442 = vmatprep.subr.mxu0 0.0
          %2443 = vmatpush2.msra.mxu0 0.0
          %2444 = vmatprep.subr.mxu0 0.0
          %2445 = vmatpush2.msra.mxu0 0.0
          %2446 = vmatprep.subr.mxu0 0.0
          %2447 = vmatpush2.msra.mxu0 0.0
          %2448 = vmatprep.subr.mxu0 0.0
          %2449 = vmatpush2.msra.mxu0 0.0
          %2450 = vmatprep.subr.mxu0 0.0
          %2451 = vmatpush2.msra.mxu0 0.0
          %2452 = vmatprep.subr.mxu0 0.0
          %2453 = vmatpush2.msra.mxu0 0.0
          %2454 = vmatprep.subr.mxu0 0.0
          %2455 = vmatpush2.msra.mxu0 0.0
          %2456 = vmatprep.subr.mxu0 0.0
          %2457 = vmatpush2.msra.mxu0 0.0
          %2458 = vmatprep.subr.mxu0 0.0
          %2459 = vmatpush2.msra.mxu0 0.0
          %2460 = vmatprep.subr.mxu0 0.0
          %2461 = vmatpush2.msra.mxu0 0.0
          %2462 = vmatprep.subr.mxu0 0.0
          %2463 = vmatpush2.msra.mxu0 0.0
          %2464 = vmatprep.subr.mxu0 0.0
          %2465 = vmatpush2.msra.mxu0 0.0
          %2466 = vmatprep.mubr.f32.mxu0 0.0
          %2467 = vmatmul.mubr.f32.gmra.mxu0 %v2397
          %v2468 = vpop.f32.mrf.mxu0
          %v2469 = vadd.f32 0.0, %v2468
          %v2470 = vpop.f32.mrf.mxu0
          %2471 = vmatprep.mubr.f32.mxu0 0.0
          %2472 = vmatmul.mubr.f32.gmra.mxu0 %v2400
          %v2473 = vpop.f32.mrf.mxu0
          %v2474 = vadd.f32 0.0, %v2473
          %v2475 = vpop.f32.mrf.mxu0
          %2476 = vdwg.mxu0
          %v2478 = vsel %vm2145, %v2232, 0
          %v2481 = vsel %vm2145, %v2233, 0
          %2483 = vmatprep.subr.mxu0 0.0
          %2484 = vmatpush1.msra.mxu0 0.0
          %2485 = vmatprep.subr.mxu0 0.0
          %2486 = vmatpush1.msra.mxu0 0.0
          %2487 = vmatprep.subr.mxu0 0.0
          %2488 = vmatpush1.msra.mxu0 0.0
          %2489 = vmatprep.subr.mxu0 0.0
          %2490 = vmatpush1.msra.mxu0 0.0
          %2491 = vmatprep.subr.mxu0 0.0
          %2492 = vmatpush1.msra.mxu0 0.0
          %2493 = vmatprep.subr.mxu0 0.0
          %2494 = vmatpush1.msra.mxu0 0.0
          %2495 = vmatprep.subr.mxu0 0.0
          %2496 = vmatpush1.msra.mxu0 0.0
          %2497 = vmatprep.subr.mxu0 0.0
          %2498 = vmatpush1.msra.mxu0 0.0
          %2499 = vmatprep.subr.mxu0 0.0
          %2500 = vmatpush1.msra.mxu0 0.0
          %2501 = vmatprep.subr.mxu0 0.0
          %2502 = vmatpush1.msra.mxu0 0.0
          %2503 = vmatprep.subr.mxu0 0.0
          %2504 = vmatpush1.msra.mxu0 0.0
          %2505 = vmatprep.subr.mxu0 0.0
          %2506 = vmatpush1.msra.mxu0 0.0
          %2507 = vmatprep.subr.mxu0 0.0
          %2508 = vmatpush1.msra.mxu0 0.0
          %2509 = vmatprep.subr.mxu0 0.0
          %2510 = vmatpush1.msra.mxu0 0.0
          %2511 = vmatprep.subr.mxu0 0.0
          %2512 = vmatpush1.msra.mxu0 %v1786
          %2513 = vmatprep.subr.mxu0 0.0
          %2514 = vmatpush1.msra.mxu0 %v1784
          %2515 = vmatprep.subr.mxu0 0.0
          %2516 = vmatpush2.msra.mxu0 0.0
          %2517 = vmatprep.subr.mxu0 0.0
          %2518 = vmatpush2.msra.mxu0 0.0
          %2519 = vmatprep.subr.mxu0 0.0
          %2520 = vmatpush2.msra.mxu0 0.0
          %2521 = vmatprep.subr.mxu0 0.0
          %2522 = vmatpush2.msra.mxu0 0.0
          %2523 = vmatprep.subr.mxu0 0.0
          %2524 = vmatpush2.msra.mxu0 0.0
          %2525 = vmatprep.subr.mxu0 0.0
          %2526 = vmatpush2.msra.mxu0 0.0
          %2527 = vmatprep.subr.mxu0 0.0
          %2528 = vmatpush2.msra.mxu0 0.0
          %2529 = vmatprep.subr.mxu0 0.0
          %2530 = vmatpush2.msra.mxu0 0.0
          %2531 = vmatprep.subr.mxu0 0.0
          %2532 = vmatpush2.msra.mxu0 0.0
          %2533 = vmatprep.subr.mxu0 0.0
          %2534 = vmatpush2.msra.mxu0 0.0
          %2535 = vmatprep.subr.mxu0 0.0
          %2536 = vmatpush2.msra.mxu0 0.0
          %2537 = vmatprep.subr.mxu0 0.0
          %2538 = vmatpush2.msra.mxu0 0.0
          %2539 = vmatprep.subr.mxu0 0.0
          %2540 = vmatpush2.msra.mxu0 0.0
          %2541 = vmatprep.subr.mxu0 0.0
          %2542 = vmatpush2.msra.mxu0 0.0
          %2543 = vmatprep.subr.mxu0 0.0
          %2544 = vmatpush2.msra.mxu0 0.0
          %2545 = vmatprep.subr.mxu0 0.0
          %2546 = vmatpush2.msra.mxu0 0.0
          %2547 = vmatprep.mubr.f32.mxu0 0.0
          %2548 = vmatmul.mubr.f32.gmra.mxu0 %v2478
          %v2549 = vpop.f32.mrf.mxu0
          %v2550 = vadd.f32 0.0, %v2549
          %v2551 = vpop.f32.mrf.mxu0
          %2552 = vmatprep.mubr.f32.mxu0 0.0
          %2553 = vmatmul.mubr.f32.gmra.mxu0 %v2481
          %v2554 = vpop.f32.mrf.mxu0
          %v2555 = vadd.f32 0.0, %v2554
          %v2556 = vpop.f32.mrf.mxu0
          %2557 = vdwg.mxu0
          %2560 = vrot.lane.b32.xlu0 %v2388, 32
          %v2561 = vpop.permute.xlu0 %2560
          %2562 = vrot.lane.b32.xlu0 %v2393, 32
          %v2563 = vpop.permute.xlu0 %2562
          %2568 = vrot.lane.b32.xlu0 %v2469, 64
          %v2569 = vpop.permute.xlu0 %2568
          %2570 = vrot.lane.b32.xlu0 %v2474, 64
          %v2571 = vpop.permute.xlu0 %2570
          %2576 = vrot.lane.b32.xlu0 %v2550, 96
          %v2577 = vpop.permute.xlu0 %2576
          %2578 = vrot.lane.b32.xlu0 %v2555, 96
          %v2579 = vpop.permute.xlu0 %2578
          %v2582 = vsel %vm1812, %v2307, %v2561
          %v2583 = vsel %vm1812, %v2312, %v2563
          %vm2584 = vcmask 523264
          %v2585 = vsel %vm2584, %v2582, %v2569
          %v2586 = vsel %vm2584, %v2583, %v2571
          %vm2587 = vcmask 785408
          %v2588 = vsel %vm2587, %v2585, %v2577
          %v2589 = vsel %vm2587, %v2586, %v2579
          %v2590 = vpack.c.bf16 %v2589, %v2588
          %v2591 = vld [vmem:[%s1177] sm:$0xf]
          %v2592 = vld [vmem:[%s1177 + $0x4] sm:$0xf]
          %v2593 = vld [vmem:[%s1177 + $0x8] sm:$0xf]
          %v2594 = vld [vmem:[%s1177 + $0xc] sm:$0xf]
          %v2595 = vld [vmem:[%s1177 + $0x10] sm:$0xf]
          %v2596 = vld [vmem:[%s1177 + $0x14] sm:$0xf]
          %v2597 = vld [vmem:[%s1177 + $0x18] sm:$0xf]
          %v2598 = vld [vmem:[%s1177 + $0x1c] sm:$0xf]
          %v2599 = vld [vmem:[%s1177 + $0x20] sm:$0xf]
          %v2600 = vld [vmem:[%s1177 + $0x24] sm:$0xf]
          %v2601 = vld [vmem:[%s1177 + $0x28] sm:$0xf]
          %v2602 = vld [vmem:[%s1177 + $0x2c] sm:$0xf]
          %v2603 = vld [vmem:[%s1177 + $0x30] sm:$0xf]
          %v2604 = vld [vmem:[%s1177 + $0x34] sm:$0xf]
          %v2605 = vld [vmem:[%s1177 + $0x38] sm:$0xf]
          %v2606 = vld [vmem:[%s1177 + $0x3c] sm:$0xf]
          %v2607 = vld [vmem:[%s1185] sm:$0x1]
          %v2609 = vlaneseq
          %v2610 = vshrl.u32 %v2609, 7
          %v2611 = vsub.s32 0, %v2610
          %v2612 = vrot.slane %v2607, %v2611
          %v2630 = vunpack.c.l.b16 %v2591
          %v2631 = vunpack.c.l.b16 %v2592
          %v2632 = vunpack.c.l.b16 %v2593
          %v2633 = vunpack.c.l.b16 %v2594
          %v2634 = vunpack.c.l.b16 %v2595
          %v2635 = vunpack.c.l.b16 %v2596
          %v2636 = vunpack.c.l.b16 %v2597
          %v2637 = vunpack.c.l.b16 %v2598
          %v2638 = vunpack.c.l.b16 %v2599
          %v2639 = vunpack.c.l.b16 %v2600
          %v2640 = vunpack.c.l.b16 %v2601
          %v2641 = vunpack.c.l.b16 %v2602
          %v2642 = vunpack.c.l.b16 %v2603
          %v2643 = vunpack.c.l.b16 %v2604
          %v2644 = vunpack.c.l.b16 %v2605
          %v2645 = vunpack.c.l.b16 %v2606
          %v2646 = vpack.c.b16 %v2631, %v2630
          %v2647 = vpack.c.b16 %v2633, %v2632
          %v2648 = vpack.c.b16 %v2635, %v2634
          %v2649 = vpack.c.b16 %v2637, %v2636
          %v2650 = vpack.c.b16 %v2639, %v2638
          %v2651 = vpack.c.b16 %v2641, %v2640
          %v2652 = vpack.c.b16 %v2643, %v2642
          %v2653 = vpack.c.b16 %v2645, %v2644
          %2662 = vmatprep.subr.bf16.mxu0 0
          %2663 = vmatpush1.bf16.msra.mxu0 %v2653
          %2664 = vmatprep.subr.bf16.mxu0 0
          %2665 = vmatpush1.bf16.msra.mxu0 %v2652
          %2666 = vmatprep.subr.bf16.mxu0 0
          %2667 = vmatpush1.bf16.msra.mxu0 %v2651
          %2668 = vmatprep.subr.bf16.mxu0 0
          %2669 = vmatpush1.bf16.msra.mxu0 %v2650
          %2670 = vmatprep.subr.bf16.mxu0 0
          %2671 = vmatpush1.bf16.msra.mxu0 %v2649
          %2672 = vmatprep.subr.bf16.mxu0 0
          %2673 = vmatpush1.bf16.msra.mxu0 %v2648
          %2674 = vmatprep.subr.bf16.mxu0 0
          %2675 = vmatpush1.bf16.msra.mxu0 %v2647
          %2676 = vmatprep.subr.bf16.mxu0 0
          %2677 = vmatpush1.bf16.msra.mxu0 %v2646
          %2678 = vmatprep.subr.bf16.mxu0 0
          %2679 = vmatpush2.bf16.msra.mxu0 0
          %2680 = vmatprep.subr.bf16.mxu0 0
          %2681 = vmatpush2.bf16.msra.mxu0 0
          %2682 = vmatprep.subr.bf16.mxu0 0
          %2683 = vmatpush2.bf16.msra.mxu0 0
          %2684 = vmatprep.subr.bf16.mxu0 0
          %2685 = vmatpush2.bf16.msra.mxu0 0
          %2686 = vmatprep.subr.bf16.mxu0 0
          %2687 = vmatpush2.bf16.msra.mxu0 0
          %2688 = vmatprep.subr.bf16.mxu0 0
          %2689 = vmatpush2.bf16.msra.mxu0 0
          %2690 = vmatprep.subr.bf16.mxu0 0
          %2691 = vmatpush2.bf16.msra.mxu0 0
          %2692 = vmatprep.subr.bf16.mxu0 0
          %2693 = vmatpush2.bf16.msra.mxu0 0
          %2694 = vmatprep.mubr.bf16.mxu0 0
          %2695 = vmatmul.mubr.bf16.gmra.mxu0 %v2590
          %v2696 = vpop.f32.mrf.mxu0
          %v2697 = vadd.f32 %v2612, %v2696
          %v2698 = vpop.f32.mrf.mxu0
          %v2699 = vpop.f32.mrf.mxu0
          %v2700 = vadd.f32 %v2612, %v2699
          %v2701 = vpop.f32.mrf.mxu0
          %2702 = vdwg.mxu0
          %v2703 = vadd.f32 %v1477, %v2697
          %v2704 = vadd.f32 %v1478, %v2700
          %v2705 = vld [vmem:[%s1193] sm:$0x1]
          %v2706 = vld [vmem:[%s1201] sm:$0x1]
          %2707 = vadd.xlane.f32.xlu0 %v2703
          %v2708 = vpop.xlane.xlu0 %2707
          %2709 = vadd.xlane.f32.xlu0 %v2704
          %v2710 = vpop.xlane.xlu0 %2709
          %v2711 = vrcp.pop 128.0
          %v2712 = vmul.f32 %v2708, %v2711
          %v2713 = vmul.f32 %v2710, %v2711
          %v2714 = vsub.f32 %v2703, %v2712
          %v2715 = vsub.f32 %v2704, %v2713
          %v2716 = vmul.f32 %v2714, %v2714
          %v2717 = vmul.f32 %v2715, %v2715
          %2718 = vadd.xlane.f32.xlu0 %v2716
          %v2719 = vpop.xlane.xlu0 %2718
          %2720 = vadd.xlane.f32.xlu0 %v2717
          %v2721 = vpop.xlane.xlu0 %2720
          %v2722 = vmul.f32 %v2719, %v2711
          %v2723 = vmul.f32 %v2721, %v2711
          %v2724 = vadd.f32 %v2722, 1e-05
          %v2725 = vadd.f32 %v2723, 1e-05
          %v2726 = vrsqrt.pop %v2724
          %v2727 = vrsqrt.pop %v2725
          %v2728 = vmul.f32 %v2714, %v2726
          %v2729 = vmul.f32 %v2715, %v2727
          %v2731 = vlaneseq
          %v2732 = vshrl.u32 %v2731, 7
          %v2733 = vsub.s32 0, %v2732
          %v2734 = vrot.slane %v2705, %v2733
          %v2736 = vmul.f32 %v2728, %v2734
          %v2737 = vmul.f32 %v2729, %v2734
          %v2739 = vlaneseq
          %v2740 = vshrl.u32 %v2739, 7
          %v2741 = vsub.s32 0, %v2740
          %v2742 = vrot.slane %v2706, %v2741
          %v2744 = vadd.f32 %v2736, %v2742
          %v2745 = vadd.f32 %v2737, %v2742
          %2746 = vst [vmem:[#allocation3] sm:$0xff] %v2744
          %2747 = vst [vmem:[#allocation3 + $0x8] sm:$0xff] %v2745
          %2748 = vst [vmem:[#allocation4] sm:$0xff] 0.0
          %2749 = vst [vmem:[#allocation4 + $0x8] sm:$0xff] 0.0
        $region228: #{tpu_custom_call.1} parent=131 // pred_fallthru
          _
        %v2750 = vld [vmem:[#allocation3] sm:$0xff]
        %v2751 = vld [vmem:[#allocation3 + $0x8] sm:$0xff]
        %v2752 = vpack.c.bf16 %v2751, %v2750
        %v2753 = vld [vmem:[%s1234] sm:$0xff]
        %v2754 = vld [vmem:[%s1234 + $0x8] sm:$0xff]
        %v2755 = vld [vmem:[%s1234 + $0x10] sm:$0xff]
        %v2756 = vld [vmem:[%s1234 + $0x18] sm:$0xff]
        %v2757 = vld [vmem:[%s1234 + $0x20] sm:$0xff]
        %v2758 = vld [vmem:[%s1234 + $0x28] sm:$0xff]
        %v2759 = vld [vmem:[%s1234 + $0x30] sm:$0xff]
        %v2760 = vld [vmem:[%s1234 + $0x38] sm:$0xff]
        %v2761 = vld [vmem:[%s1234 + $0x40] sm:$0xff]
        %v2762 = vld [vmem:[%s1234 + $0x48] sm:$0xff]
        %v2763 = vld [vmem:[%s1234 + $0x50] sm:$0xff]
        %v2764 = vld [vmem:[%s1234 + $0x58] sm:$0xff]
        %v2765 = vld [vmem:[%s1234 + $0x60] sm:$0xff]
        %v2766 = vld [vmem:[%s1234 + $0x68] sm:$0xff]
        %v2767 = vld [vmem:[%s1234 + $0x70] sm:$0xff]
        %v2768 = vld [vmem:[%s1234 + $0x78] sm:$0xff]
        %v2769 = vld [vmem:[%s1234 + $0x80] sm:$0xff]
        %v2770 = vld [vmem:[%s1234 + $0x88] sm:$0xff]
        %v2771 = vld [vmem:[%s1234 + $0x90] sm:$0xff]
        %v2772 = vld [vmem:[%s1234 + $0x98] sm:$0xff]
        %v2773 = vld [vmem:[%s1234 + $0xa0] sm:$0xff]
        %v2774 = vld [vmem:[%s1234 + $0xa8] sm:$0xff]
        %v2775 = vld [vmem:[%s1234 + $0xb0] sm:$0xff]
        %v2776 = vld [vmem:[%s1234 + $0xb8] sm:$0xff]
        %v2777 = vld [vmem:[%s1234 + $0xc0] sm:$0xff]
        %v2778 = vld [vmem:[%s1234 + $0xc8] sm:$0xff]
        %v2779 = vld [vmem:[%s1234 + $0xd0] sm:$0xff]
        %v2780 = vld [vmem:[%s1234 + $0xd8] sm:$0xff]
        %v2781 = vld [vmem:[%s1234 + $0xe0] sm:$0xff]
        %v2782 = vld [vmem:[%s1234 + $0xe8] sm:$0xff]
        %v2783 = vld [vmem:[%s1234 + $0xf0] sm:$0xff]
        %v2784 = vld [vmem:[%s1234 + $0xf8] sm:$0xff]
        %v2785 = vld [vmem:[%s1395] sm:$0xf]
        %v2787 = vlaneseq
        %v2788 = vshrl.u32 %v2787, 7
        %v2789 = vsub.s32 0, %v2788
        %v2790 = vrot.slane %v2785, %v2789
        %v2791 = vlaneseq
        %v2792 = vshrl.u32 %v2791, 7
        %v2793 = vsub.s32 1, %v2792
        %v2794 = vrot.slane %v2785, %v2793
        %v2795 = vlaneseq
        %v2796 = vshrl.u32 %v2795, 7
        %v2797 = vsub.s32 2, %v2796
        %v2798 = vrot.slane %v2785, %v2797
        %v2799 = vlaneseq
        %v2800 = vshrl.u32 %v2799, 7
        %v2801 = vsub.s32 3, %v2800
        %v2802 = vrot.slane %v2785, %v2801
        %v2839 = vunpack.c.l.b16 %v2753
        %v2840 = vunpack.c.h.b16 %v2753
        %v2841 = vunpack.c.l.b16 %v2754
        %v2842 = vunpack.c.h.b16 %v2754
        %v2843 = vunpack.c.l.b16 %v2755
        %v2844 = vunpack.c.h.b16 %v2755
        %v2845 = vunpack.c.l.b16 %v2756
        %v2846 = vunpack.c.h.b16 %v2756
        %v2847 = vunpack.c.l.b16 %v2757
        %v2848 = vunpack.c.h.b16 %v2757
        %v2849 = vunpack.c.l.b16 %v2758
        %v2850 = vunpack.c.h.b16 %v2758
        %v2851 = vunpack.c.l.b16 %v2759
        %v2852 = vunpack.c.h.b16 %v2759
        %v2853 = vunpack.c.l.b16 %v2760
        %v2854 = vunpack.c.h.b16 %v2760
        %v2855 = vunpack.c.l.b16 %v2761
        %v2856 = vunpack.c.h.b16 %v2761
        %v2857 = vunpack.c.l.b16 %v2762
        %v2858 = vunpack.c.h.b16 %v2762
        %v2859 = vunpack.c.l.b16 %v2763
        %v2860 = vunpack.c.h.b16 %v2763
        %v2861 = vunpack.c.l.b16 %v2764
        %v2862 = vunpack.c.h.b16 %v2764
        %v2863 = vunpack.c.l.b16 %v2765
        %v2864 = vunpack.c.h.b16 %v2765
        %v2865 = vunpack.c.l.b16 %v2766
        %v2866 = vunpack.c.h.b16 %v2766
        %v2867 = vunpack.c.l.b16 %v2767
        %v2868 = vunpack.c.h.b16 %v2767
        %v2869 = vunpack.c.l.b16 %v2768
        %v2870 = vunpack.c.h.b16 %v2768
        %v2871 = vunpack.c.l.b16 %v2769
        %v2872 = vunpack.c.h.b16 %v2769
        %v2873 = vunpack.c.l.b16 %v2770
        %v2874 = vunpack.c.h.b16 %v2770
        %v2875 = vunpack.c.l.b16 %v2771
        %v2876 = vunpack.c.h.b16 %v2771
        %v2877 = vunpack.c.l.b16 %v2772
        %v2878 = vunpack.c.h.b16 %v2772
        %v2879 = vunpack.c.l.b16 %v2773
        %v2880 = vunpack.c.h.b16 %v2773
        %v2881 = vunpack.c.l.b16 %v2774
        %v2882 = vunpack.c.h.b16 %v2774
        %v2883 = vunpack.c.l.b16 %v2775
        %v2884 = vunpack.c.h.b16 %v2775
        %v2885 = vunpack.c.l.b16 %v2776
        %v2886 = vunpack.c.h.b16 %v2776
        %v2887 = vunpack.c.l.b16 %v2777
        %v2888 = vunpack.c.h.b16 %v2777
        %v2889 = vunpack.c.l.b16 %v2778
        %v2890 = vunpack.c.h.b16 %v2778
        %v2891 = vunpack.c.l.b16 %v2779
        %v2892 = vunpack.c.h.b16 %v2779
        %v2893 = vunpack.c.l.b16 %v2780
        %v2894 = vunpack.c.h.b16 %v2780
        %v2895 = vunpack.c.l.b16 %v2781
        %v2896 = vunpack.c.h.b16 %v2781
        %v2897 = vunpack.c.l.b16 %v2782
        %v2898 = vunpack.c.h.b16 %v2782
        %v2899 = vunpack.c.l.b16 %v2783
        %v2900 = vunpack.c.h.b16 %v2783
        %v2901 = vunpack.c.l.b16 %v2784
        %v2902 = vunpack.c.h.b16 %v2784
        %v2903 = vpack.c.b16 %v2843, %v2839
        %v2904 = vpack.c.b16 %v2844, %v2840
        %v2905 = vpack.c.b16 %v2845, %v2841
        %v2906 = vpack.c.b16 %v2846, %v2842
        %v2907 = vpack.c.b16 %v2851, %v2847
        %v2908 = vpack.c.b16 %v2852, %v2848
        %v2909 = vpack.c.b16 %v2853, %v2849
        %v2910 = vpack.c.b16 %v2854, %v2850
        %v2911 = vpack.c.b16 %v2859, %v2855
        %v2912 = vpack.c.b16 %v2860, %v2856
        %v2913 = vpack.c.b16 %v2861, %v2857
        %v2914 = vpack.c.b16 %v2862, %v2858
        %v2915 = vpack.c.b16 %v2867, %v2863
        %v2916 = vpack.c.b16 %v2868, %v2864
        %v2917 = vpack.c.b16 %v2869, %v2865
        %v2918 = vpack.c.b16 %v2870, %v2866
        %v2919 = vpack.c.b16 %v2875, %v2871
        %v2920 = vpack.c.b16 %v2876, %v2872
        %v2921 = vpack.c.b16 %v2877, %v2873
        %v2922 = vpack.c.b16 %v2878, %v2874
        %v2923 = vpack.c.b16 %v2883, %v2879
        %v2924 = vpack.c.b16 %v2884, %v2880
        %v2925 = vpack.c.b16 %v2885, %v2881
        %v2926 = vpack.c.b16 %v2886, %v2882
        %v2927 = vpack.c.b16 %v2891, %v2887
        %v2928 = vpack.c.b16 %v2892, %v2888
        %v2929 = vpack.c.b16 %v2893, %v2889
        %v2930 = vpack.c.b16 %v2894, %v2890
        %v2931 = vpack.c.b16 %v2899, %v2895
        %v2932 = vpack.c.b16 %v2900, %v2896
        %v2933 = vpack.c.b16 %v2901, %v2897
        %v2934 = vpack.c.b16 %v2902, %v2898
        %2967 = vmatprep.subr.bf16.mxu0 %v2932
        %2968 = vmatpush1.bf16.msra.mxu0 %v2931
        %2969 = vmatprep.subr.bf16.mxu0 %v2928
        %2970 = vmatpush1.bf16.msra.mxu0 %v2927
        %2971 = vmatprep.subr.bf16.mxu0 %v2924
        %2972 = vmatpush1.bf16.msra.mxu0 %v2923
        %2973 = vmatprep.subr.bf16.mxu0 %v2920
        %2974 = vmatpush1.bf16.msra.mxu0 %v2919
        %2975 = vmatprep.subr.bf16.mxu0 %v2916
        %2976 = vmatpush1.bf16.msra.mxu0 %v2915
        %2977 = vmatprep.subr.bf16.mxu0 %v2912
        %2978 = vmatpush1.bf16.msra.mxu0 %v2911
        %2979 = vmatprep.subr.bf16.mxu0 %v2908
        %2980 = vmatpush1.bf16.msra.mxu0 %v2907
        %2981 = vmatprep.subr.bf16.mxu0 %v2904
        %2982 = vmatpush1.bf16.msra.mxu0 %v2903
        %2983 = vmatprep.subr.bf16.mxu0 0
        %2984 = vmatpush2.bf16.msra.mxu0 0
        %2985 = vmatprep.subr.bf16.mxu0 0
        %2986 = vmatpush2.bf16.msra.mxu0 0
        %2987 = vmatprep.subr.bf16.mxu0 0
        %2988 = vmatpush2.bf16.msra.mxu0 0
        %2989 = vmatprep.subr.bf16.mxu0 0
        %2990 = vmatpush2.bf16.msra.mxu0 0
        %2991 = vmatprep.subr.bf16.mxu0 0
        %2992 = vmatpush2.bf16.msra.mxu0 0
        %2993 = vmatprep.subr.bf16.mxu0 0
        %2994 = vmatpush2.bf16.msra.mxu0 0
        %2995 = vmatprep.subr.bf16.mxu0 0
        %2996 = vmatpush2.bf16.msra.mxu0 0
        %2997 = vmatprep.subr.bf16.mxu0 0
        %2998 = vmatpush2.bf16.msra.mxu0 0
        %2999 = vmatprep.mubr.bf16.mxu0 0
        %3000 = vmatmul.mubr.bf16.gmra.mxu0 %v2752
        %v3001 = vpop.f32.mrf.mxu0
        %v3002 = vadd.f32 %v2790, %v3001
        %v3003 = vpop.f32.mrf.mxu0
        %v3004 = vadd.f32 %v2794, %v3003
        %v3005 = vpop.f32.mrf.mxu0
        %v3006 = vadd.f32 %v2790, %v3005
        %v3007 = vpop.f32.mrf.mxu0
        %v3008 = vadd.f32 %v2794, %v3007
        %3009 = vdwg.mxu0
        %3010 = vmatprep.subr.bf16.mxu0 %v2934
        %3011 = vmatpush1.bf16.msra.mxu0 %v2933
        %3012 = vmatprep.subr.bf16.mxu0 %v2930
        %3013 = vmatpush1.bf16.msra.mxu0 %v2929
        %3014 = vmatprep.subr.bf16.mxu0 %v2926
        %3015 = vmatpush1.bf16.msra.mxu0 %v2925
        %3016 = vmatprep.subr.bf16.mxu0 %v2922
        %3017 = vmatpush1.bf16.msra.mxu0 %v2921
        %3018 = vmatprep.subr.bf16.mxu0 %v2918
        %3019 = vmatpush1.bf16.msra.mxu0 %v2917
        %3020 = vmatprep.subr.bf16.mxu0 %v2914
        %3021 = vmatpush1.bf16.msra.mxu0 %v2913
        %3022 = vmatprep.subr.bf16.mxu0 %v2910
        %3023 = vmatpush1.bf16.msra.mxu0 %v2909
        %3024 = vmatprep.subr.bf16.mxu0 %v2906
        %3025 = vmatpush1.bf16.msra.mxu0 %v2905
        %3026 = vmatprep.subr.bf16.mxu0 0
        %3027 = vmatpush2.bf16.msra.mxu0 0
        %3028 = vmatprep.subr.bf16.mxu0 0
        %3029 = vmatpush2.bf16.msra.mxu0 0
        %3030 = vmatprep.subr.bf16.mxu0 0
        %3031 = vmatpush2.bf16.msra.mxu0 0
        %3032 = vmatprep.subr.bf16.mxu0 0
        %3033 = vmatpush2.bf16.msra.mxu0 0
        %3034 = vmatprep.subr.bf16.mxu0 0
        %3035 = vmatpush2.bf16.msra.mxu0 0
        %3036 = vmatprep.subr.bf16.mxu0 0
        %3037 = vmatpush2.bf16.msra.mxu0 0
        %3038 = vmatprep.subr.bf16.mxu0 0
        %3039 = vmatpush2.bf16.msra.mxu0 0
        %3040 = vmatprep.subr.bf16.mxu0 0
        %3041 = vmatpush2.bf16.msra.mxu0 0
        %3042 = vmatprep.mubr.bf16.mxu0 0
        %3043 = vmatmul.mubr.bf16.gmra.mxu0 %v2752
        %v3044 = vpop.f32.mrf.mxu0
        %v3045 = vadd.f32 %v2798, %v3044
        %v3046 = vpop.f32.mrf.mxu0
        %v3047 = vadd.f32 %v2802, %v3046
        %v3048 = vpop.f32.mrf.mxu0
        %v3049 = vadd.f32 %v2798, %v3048
        %v3050 = vpop.f32.mrf.mxu0
        %v3051 = vadd.f32 %v2802, %v3050
        %3052 = vdwg.mxu0
        %v3053 = vmax.f32 %v3002, 0.0
        %v3054 = vmax.f32 %v3004, 0.0
        %v3055 = vmax.f32 %v3045, 0.0
        %v3056 = vmax.f32 %v3047, 0.0
        %v3057 = vmax.f32 %v3006, 0.0
        %v3058 = vmax.f32 %v3008, 0.0
        %v3059 = vmax.f32 %v3049, 0.0
        %v3060 = vmax.f32 %v3051, 0.0
        %v3061 = vld [vmem:[#allocation4] sm:$0xff]
        %v3062 = vld [vmem:[#allocation4 + $0x8] sm:$0xff]
        %v3063 = vpack.c.bf16 %v3057, %v3053
        %v3064 = vpack.c.bf16 %v3058, %v3054
        %v3065 = vpack.c.bf16 %v3059, %v3055
        %v3066 = vpack.c.bf16 %v3060, %v3056
        %v3067 = vld [vmem:[%s1243] sm:$0xf]
        %v3068 = vld [vmem:[%s1243 + $0x4] sm:$0xf]
        %v3069 = vld [vmem:[%s1243 + $0x8] sm:$0xf]
        %v3070 = vld [vmem:[%s1243 + $0xc] sm:$0xf]
        %v3071 = vld [vmem:[%s1243 + $0x10] sm:$0xf]
        %v3072 = vld [vmem:[%s1243 + $0x14] sm:$0xf]
        %v3073 = vld [vmem:[%s1243 + $0x18] sm:$0xf]
        %v3074 = vld [vmem:[%s1243 + $0x1c] sm:$0xf]
        %v3075 = vld [vmem:[%s1243 + $0x20] sm:$0xf]
        %v3076 = vld [vmem:[%s1243 + $0x24] sm:$0xf]
        %v3077 = vld [vmem:[%s1243 + $0x28] sm:$0xf]
        %v3078 = vld [vmem:[%s1243 + $0x2c] sm:$0xf]
        %v3079 = vld [vmem:[%s1243 + $0x30] sm:$0xf]
        %v3080 = vld [vmem:[%s1243 + $0x34] sm:$0xf]
        %v3081 = vld [vmem:[%s1243 + $0x38] sm:$0xf]
        %v3082 = vld [vmem:[%s1243 + $0x3c] sm:$0xf]
        %v3083 = vld [vmem:[%s1243 + $0x40] sm:$0xf]
        %v3084 = vld [vmem:[%s1243 + $0x44] sm:$0xf]
        %v3085 = vld [vmem:[%s1243 + $0x48] sm:$0xf]
        %v3086 = vld [vmem:[%s1243 + $0x4c] sm:$0xf]
        %v3087 = vld [vmem:[%s1243 + $0x50] sm:$0xf]
        %v3088 = vld [vmem:[%s1243 + $0x54] sm:$0xf]
        %v3089 = vld [vmem:[%s1243 + $0x58] sm:$0xf]
        %v3090 = vld [vmem:[%s1243 + $0x5c] sm:$0xf]
        %v3091 = vld [vmem:[%s1243 + $0x60] sm:$0xf]
        %v3092 = vld [vmem:[%s1243 + $0x64] sm:$0xf]
        %v3093 = vld [vmem:[%s1243 + $0x68] sm:$0xf]
        %v3094 = vld [vmem:[%s1243 + $0x6c] sm:$0xf]
        %v3095 = vld [vmem:[%s1243 + $0x70] sm:$0xf]
        %v3096 = vld [vmem:[%s1243 + $0x74] sm:$0xf]
        %v3097 = vld [vmem:[%s1243 + $0x78] sm:$0xf]
        %v3098 = vld [vmem:[%s1243 + $0x7c] sm:$0xf]
        %v3099 = vld [vmem:[%s1243 + $0x80] sm:$0xf]
        %v3100 = vld [vmem:[%s1243 + $0x84] sm:$0xf]
        %v3101 = vld [vmem:[%s1243 + $0x88] sm:$0xf]
        %v3102 = vld [vmem:[%s1243 + $0x8c] sm:$0xf]
        %v3103 = vld [vmem:[%s1243 + $0x90] sm:$0xf]
        %v3104 = vld [vmem:[%s1243 + $0x94] sm:$0xf]
        %v3105 = vld [vmem:[%s1243 + $0x98] sm:$0xf]
        %v3106 = vld [vmem:[%s1243 + $0x9c] sm:$0xf]
        %v3107 = vld [vmem:[%s1243 + $0xa0] sm:$0xf]
        %v3108 = vld [vmem:[%s1243 + $0xa4] sm:$0xf]
        %v3109 = vld [vmem:[%s1243 + $0xa8] sm:$0xf]
        %v3110 = vld [vmem:[%s1243 + $0xac] sm:$0xf]
        %v3111 = vld [vmem:[%s1243 + $0xb0] sm:$0xf]
        %v3112 = vld [vmem:[%s1243 + $0xb4] sm:$0xf]
        %v3113 = vld [vmem:[%s1243 + $0xb8] sm:$0xf]
        %v3114 = vld [vmem:[%s1243 + $0xbc] sm:$0xf]
        %v3115 = vld [vmem:[%s1243 + $0xc0] sm:$0xf]
        %v3116 = vld [vmem:[%s1243 + $0xc4] sm:$0xf]
        %v3117 = vld [vmem:[%s1243 + $0xc8] sm:$0xf]
        %v3118 = vld [vmem:[%s1243 + $0xcc] sm:$0xf]
        %v3119 = vld [vmem:[%s1243 + $0xd0] sm:$0xf]
        %v3120 = vld [vmem:[%s1243 + $0xd4] sm:$0xf]
        %v3121 = vld [vmem:[%s1243 + $0xd8] sm:$0xf]
        %v3122 = vld [vmem:[%s1243 + $0xdc] sm:$0xf]
        %v3123 = vld [vmem:[%s1243 + $0xe0] sm:$0xf]
        %v3124 = vld [vmem:[%s1243 + $0xe4] sm:$0xf]
        %v3125 = vld [vmem:[%s1243 + $0xe8] sm:$0xf]
        %v3126 = vld [vmem:[%s1243 + $0xec] sm:$0xf]
        %v3127 = vld [vmem:[%s1243 + $0xf0] sm:$0xf]
        %v3128 = vld [vmem:[%s1243 + $0xf4] sm:$0xf]
        %v3129 = vld [vmem:[%s1243 + $0xf8] sm:$0xf]
        %v3130 = vld [vmem:[%s1243 + $0xfc] sm:$0xf]
        %v3195 = vunpack.c.l.b16 %v3067
        %v3196 = vunpack.c.l.b16 %v3068
        %v3197 = vunpack.c.l.b16 %v3069
        %v3198 = vunpack.c.l.b16 %v3070
        %v3199 = vunpack.c.l.b16 %v3071
        %v3200 = vunpack.c.l.b16 %v3072
        %v3201 = vunpack.c.l.b16 %v3073
        %v3202 = vunpack.c.l.b16 %v3074
        %v3203 = vunpack.c.l.b16 %v3075
        %v3204 = vunpack.c.l.b16 %v3076
        %v3205 = vunpack.c.l.b16 %v3077
        %v3206 = vunpack.c.l.b16 %v3078
        %v3207 = vunpack.c.l.b16 %v3079
        %v3208 = vunpack.c.l.b16 %v3080
        %v3209 = vunpack.c.l.b16 %v3081
        %v3210 = vunpack.c.l.b16 %v3082
        %v3211 = vunpack.c.l.b16 %v3083
        %v3212 = vunpack.c.l.b16 %v3084
        %v3213 = vunpack.c.l.b16 %v3085
        %v3214 = vunpack.c.l.b16 %v3086
        %v3215 = vunpack.c.l.b16 %v3087
        %v3216 = vunpack.c.l.b16 %v3088
        %v3217 = vunpack.c.l.b16 %v3089
        %v3218 = vunpack.c.l.b16 %v3090
        %v3219 = vunpack.c.l.b16 %v3091
        %v3220 = vunpack.c.l.b16 %v3092
        %v3221 = vunpack.c.l.b16 %v3093
        %v3222 = vunpack.c.l.b16 %v3094
        %v3223 = vunpack.c.l.b16 %v3095
        %v3224 = vunpack.c.l.b16 %v3096
        %v3225 = vunpack.c.l.b16 %v3097
        %v3226 = vunpack.c.l.b16 %v3098
        %v3227 = vunpack.c.l.b16 %v3099
        %v3228 = vunpack.c.l.b16 %v3100
        %v3229 = vunpack.c.l.b16 %v3101
        %v3230 = vunpack.c.l.b16 %v3102
        %v3231 = vunpack.c.l.b16 %v3103
        %v3232 = vunpack.c.l.b16 %v3104
        %v3233 = vunpack.c.l.b16 %v3105
        %v3234 = vunpack.c.l.b16 %v3106
        %v3235 = vunpack.c.l.b16 %v3107
        %v3236 = vunpack.c.l.b16 %v3108
        %v3237 = vunpack.c.l.b16 %v3109
        %v3238 = vunpack.c.l.b16 %v3110
        %v3239 = vunpack.c.l.b16 %v3111
        %v3240 = vunpack.c.l.b16 %v3112
        %v3241 = vunpack.c.l.b16 %v3113
        %v3242 = vunpack.c.l.b16 %v3114
        %v3243 = vunpack.c.l.b16 %v3115
        %v3244 = vunpack.c.l.b16 %v3116
        %v3245 = vunpack.c.l.b16 %v3117
        %v3246 = vunpack.c.l.b16 %v3118
        %v3247 = vunpack.c.l.b16 %v3119
        %v3248 = vunpack.c.l.b16 %v3120
        %v3249 = vunpack.c.l.b16 %v3121
        %v3250 = vunpack.c.l.b16 %v3122
        %v3251 = vunpack.c.l.b16 %v3123
        %v3252 = vunpack.c.l.b16 %v3124
        %v3253 = vunpack.c.l.b16 %v3125
        %v3254 = vunpack.c.l.b16 %v3126
        %v3255 = vunpack.c.l.b16 %v3127
        %v3256 = vunpack.c.l.b16 %v3128
        %v3257 = vunpack.c.l.b16 %v3129
        %v3258 = vunpack.c.l.b16 %v3130
        %v3259 = vpack.c.b16 %v3196, %v3195
        %v3260 = vpack.c.b16 %v3198, %v3197
        %v3261 = vpack.c.b16 %v3200, %v3199
        %v3262 = vpack.c.b16 %v3202, %v3201
        %v3263 = vpack.c.b16 %v3204, %v3203
        %v3264 = vpack.c.b16 %v3206, %v3205
        %v3265 = vpack.c.b16 %v3208, %v3207
        %v3266 = vpack.c.b16 %v3210, %v3209
        %v3267 = vpack.c.b16 %v3212, %v3211
        %v3268 = vpack.c.b16 %v3214, %v3213
        %v3269 = vpack.c.b16 %v3216, %v3215
        %v3270 = vpack.c.b16 %v3218, %v3217
        %v3271 = vpack.c.b16 %v3220, %v3219
        %v3272 = vpack.c.b16 %v3222, %v3221
        %v3273 = vpack.c.b16 %v3224, %v3223
        %v3274 = vpack.c.b16 %v3226, %v3225
        %v3275 = vpack.c.b16 %v3228, %v3227
        %v3276 = vpack.c.b16 %v3230, %v3229
        %v3277 = vpack.c.b16 %v3232, %v3231
        %v3278 = vpack.c.b16 %v3234, %v3233
        %v3279 = vpack.c.b16 %v3236, %v3235
        %v3280 = vpack.c.b16 %v3238, %v3237
        %v3281 = vpack.c.b16 %v3240, %v3239
        %v3282 = vpack.c.b16 %v3242, %v3241
        %v3283 = vpack.c.b16 %v3244, %v3243
        %v3284 = vpack.c.b16 %v3246, %v3245
        %v3285 = vpack.c.b16 %v3248, %v3247
        %v3286 = vpack.c.b16 %v3250, %v3249
        %v3287 = vpack.c.b16 %v3252, %v3251
        %v3288 = vpack.c.b16 %v3254, %v3253
        %v3289 = vpack.c.b16 %v3256, %v3255
        %v3290 = vpack.c.b16 %v3258, %v3257
        %3323 = vmatprep.subr.bf16.mxu0 0
        %3324 = vmatpush1.bf16.msra.mxu0 %v3266
        %3325 = vmatprep.subr.bf16.mxu0 0
        %3326 = vmatpush1.bf16.msra.mxu0 %v3265
        %3327 = vmatprep.subr.bf16.mxu0 0
        %3328 = vmatpush1.bf16.msra.mxu0 %v3264
        %3329 = vmatprep.subr.bf16.mxu0 0
        %3330 = vmatpush1.bf16.msra.mxu0 %v3263
        %3331 = vmatprep.subr.bf16.mxu0 0
        %3332 = vmatpush1.bf16.msra.mxu0 %v3262
        %3333 = vmatprep.subr.bf16.mxu0 0
        %3334 = vmatpush1.bf16.msra.mxu0 %v3261
        %3335 = vmatprep.subr.bf16.mxu0 0
        %3336 = vmatpush1.bf16.msra.mxu0 %v3260
        %3337 = vmatprep.subr.bf16.mxu0 0
        %3338 = vmatpush1.bf16.msra.mxu0 %v3259
        %3339 = vmatprep.subr.bf16.mxu0 0
        %3340 = vmatpush2.bf16.msra.mxu0 %v3274
        %3341 = vmatprep.subr.bf16.mxu0 0
        %3342 = vmatpush2.bf16.msra.mxu0 %v3273
        %3343 = vmatprep.subr.bf16.mxu0 0
        %3344 = vmatpush2.bf16.msra.mxu0 %v3272
        %3345 = vmatprep.subr.bf16.mxu0 0
        %3346 = vmatpush2.bf16.msra.mxu0 %v3271
        %3347 = vmatprep.subr.bf16.mxu0 0
        %3348 = vmatpush2.bf16.msra.mxu0 %v3270
        %3349 = vmatprep.subr.bf16.mxu0 0
        %3350 = vmatpush2.bf16.msra.mxu0 %v3269
        %3351 = vmatprep.subr.bf16.mxu0 0
        %3352 = vmatpush2.bf16.msra.mxu0 %v3268
        %3353 = vmatprep.subr.bf16.mxu0 0
        %3354 = vmatpush2.bf16.msra.mxu0 %v3267
        %3355 = vmatprep.mubr.bf16.mxu0 %v3064
        %3356 = vmatmul.mubr.bf16.gmra.mxu0 %v3063
        %v3357 = vpop.f32.mrf.mxu0
        %v3358 = vadd.f32 0.0, %v3357
        %v3359 = vpop.f32.mrf.mxu0
        %v3360 = vpop.f32.mrf.mxu0
        %v3361 = vadd.f32 0.0, %v3360
        %v3362 = vpop.f32.mrf.mxu0
        %3363 = vdwg.mxu0
        %3364 = vmatprep.subr.bf16.mxu0 0
        %3365 = vmatpush1.bf16.msra.mxu0 %v3282
        %3366 = vmatprep.subr.bf16.mxu0 0
        %3367 = vmatpush1.bf16.msra.mxu0 %v3281
        %3368 = vmatprep.subr.bf16.mxu0 0
        %3369 = vmatpush1.bf16.msra.mxu0 %v3280
        %3370 = vmatprep.subr.bf16.mxu0 0
        %3371 = vmatpush1.bf16.msra.mxu0 %v3279
        %3372 = vmatprep.subr.bf16.mxu0 0
        %3373 = vmatpush1.bf16.msra.mxu0 %v3278
        %3374 = vmatprep.subr.bf16.mxu0 0
        %3375 = vmatpush1.bf16.msra.mxu0 %v3277
        %3376 = vmatprep.subr.bf16.mxu0 0
        %3377 = vmatpush1.bf16.msra.mxu0 %v3276
        %3378 = vmatprep.subr.bf16.mxu0 0
        %3379 = vmatpush1.bf16.msra.mxu0 %v3275
        %3380 = vmatprep.subr.bf16.mxu0 0
        %3381 = vmatpush2.bf16.msra.mxu0 %v3290
        %3382 = vmatprep.subr.bf16.mxu0 0
        %3383 = vmatpush2.bf16.msra.mxu0 %v3289
        %3384 = vmatprep.subr.bf16.mxu0 0
        %3385 = vmatpush2.bf16.msra.mxu0 %v3288
        %3386 = vmatprep.subr.bf16.mxu0 0
        %3387 = vmatpush2.bf16.msra.mxu0 %v3287
        %3388 = vmatprep.subr.bf16.mxu0 0
        %3389 = vmatpush2.bf16.msra.mxu0 %v3286
        %3390 = vmatprep.subr.bf16.mxu0 0
        %3391 = vmatpush2.bf16.msra.mxu0 %v3285
        %3392 = vmatprep.subr.bf16.mxu0 0
        %3393 = vmatpush2.bf16.msra.mxu0 %v3284
        %3394 = vmatprep.subr.bf16.mxu0 0
        %3395 = vmatpush2.bf16.msra.mxu0 %v3283
        %3396 = vmatprep.mubr.bf16.mxu0 %v3066
        %3397 = vmatmul.mubr.bf16.gmra.mxu0 %v3065
        %v3398 = vpop.f32.mrf.mxu0
        %v3399 = vadd.f32 %v3358, %v3398
        %v3400 = vpop.f32.mrf.mxu0
        %v3401 = vpop.f32.mrf.mxu0
        %v3402 = vadd.f32 %v3361, %v3401
        %v3403 = vpop.f32.mrf.mxu0
        %3404 = vdwg.mxu0
        %v3405 = vadd.f32 %v3061, %v3399
        %v3406 = vadd.f32 %v3062, %v3402
        %3407 = vst [vmem:[#allocation4] sm:$0xff] %v3405
        %3408 = vst [vmem:[#allocation4 + $0x8] sm:$0xff] %v3406
        %p3409 = scmp.eq.s32.totalorder %s69, 3
        // Predicated region
        $region229: #{tpu_custom_call.1} parent=131 // pred_check
          %p3410 = pneg %p3409
        $region230: #{tpu_custom_call.1} parent=131 // pred_check_branch
          %3412 = sbr.rel (%p3410) target = $region232
        $region231: #{tpu_custom_call.1} parent=131 // pred_region
          %v3413 = vld [vmem:[#allocation3] sm:$0xff]
          %v3414 = vld [vmem:[#allocation3 + $0x8] sm:$0xff]
          %v3415 = vld [vmem:[#allocation4] sm:$0xff]
          %v3416 = vld [vmem:[#allocation4 + $0x8] sm:$0xff]
          %v3417 = vadd.f32 %v3413, %v3415
          %v3418 = vadd.f32 %v3414, %v3416
          %v3419 = vld [vmem:[%s1225] sm:$0x1]
          %v3421 = vlaneseq
          %v3422 = vshrl.u32 %v3421, 7
          %v3423 = vsub.s32 0, %v3422
          %v3424 = vrot.slane %v3419, %v3423
          %v3426 = vadd.f32 %v3417, %v3424
          %v3427 = vadd.f32 %v3418, %v3424
          %v3428 = vld [vmem:[%s1209] sm:$0x1]
          %v3429 = vld [vmem:[%s1217] sm:$0x1]
          %3430 = vadd.xlane.f32.xlu0 %v3426
          %v3431 = vpop.xlane.xlu0 %3430
          %3432 = vadd.xlane.f32.xlu0 %v3427
          %v3433 = vpop.xlane.xlu0 %3432
          %v3434 = vrcp.pop 128.0
          %v3435 = vmul.f32 %v3431, %v3434
          %v3436 = vmul.f32 %v3433, %v3434
          %v3437 = vsub.f32 %v3426, %v3435
          %v3438 = vsub.f32 %v3427, %v3436
          %v3439 = vmul.f32 %v3437, %v3437
          %v3440 = vmul.f32 %v3438, %v3438
          %3441 = vadd.xlane.f32.xlu0 %v3439
          %v3442 = vpop.xlane.xlu0 %3441
          %3443 = vadd.xlane.f32.xlu0 %v3440
          %v3444 = vpop.xlane.xlu0 %3443
          %v3445 = vmul.f32 %v3442, %v3434
          %v3446 = vmul.f32 %v3444, %v3434
          %v3447 = vadd.f32 %v3445, 1e-05
          %v3448 = vadd.f32 %v3446, 1e-05
          %v3449 = vrsqrt.pop %v3447
          %v3450 = vrsqrt.pop %v3448
          %v3451 = vmul.f32 %v3437, %v3449
          %v3452 = vmul.f32 %v3438, %v3450
          %v3454 = vlaneseq
          %v3455 = vshrl.u32 %v3454, 7
          %v3456 = vsub.s32 0, %v3455
          %v3457 = vrot.slane %v3428, %v3456
          %v3459 = vmul.f32 %v3451, %v3457
          %v3460 = vmul.f32 %v3452, %v3457
          %v3462 = vlaneseq
          %v3463 = vshrl.u32 %v3462, 7
          %v3464 = vsub.s32 0, %v3463
          %v3465 = vrot.slane %v3429, %v3464
          %v3467 = vadd.f32 %v3459, %v3465
          %v3468 = vadd.f32 %v3460, %v3465
          %3469 = vst [vmem:[#allocation2] sm:$0xff] %v3467
          %3470 = vst [vmem:[#allocation2 + $0x8] sm:$0xff] %v3468
        $region232: #{tpu_custom_call.1} parent=131 // pred_fallthru
          _
        %p3471 = scmp.eq.s32.totalorder %s68, 1
        %p3472 = pnand %p3471, %p3409
        %p3473 = pneg %p3472
        // Predicated region
        $region233: #{tpu_custom_call.1} parent=131 // pred_check
          _
        $region234: #{tpu_custom_call.1} parent=131 // pred_check_branch
          %3475 = sbr.rel (%p3472) target = $region236
        $region235: #{tpu_custom_call.1} parent=131 // pred_region
          %v3476 = vld [vmem:[#allocation2] sm:$0xff]
          %v3477 = vld [vmem:[#allocation2 + $0x8] sm:$0xff]
          %v3478 = vpack.c.bf16 %v3477, %v3476
          %v3479 = vld [vmem:[%s18] sm:$0xf]
          %v3480 = vld [vmem:[%s18 + $0x4] sm:$0xf]
          %v3481 = vld [vmem:[%s18 + $0x8] sm:$0xf]
          %v3482 = vld [vmem:[%s18 + $0xc] sm:$0xf]
          %v3483 = vld [vmem:[%s18 + $0x10] sm:$0xf]
          %v3484 = vld [vmem:[%s18 + $0x14] sm:$0xf]
          %v3485 = vld [vmem:[%s18 + $0x18] sm:$0xf]
          %v3486 = vld [vmem:[%s18 + $0x1c] sm:$0xf]
          %v3487 = vld [vmem:[%s18 + $0x20] sm:$0xf]
          %v3488 = vld [vmem:[%s18 + $0x24] sm:$0xf]
          %v3489 = vld [vmem:[%s18 + $0x28] sm:$0xf]
          %v3490 = vld [vmem:[%s18 + $0x2c] sm:$0xf]
          %v3491 = vld [vmem:[%s18 + $0x30] sm:$0xf]
          %v3492 = vld [vmem:[%s18 + $0x34] sm:$0xf]
          %v3493 = vld [vmem:[%s18 + $0x38] sm:$0xf]
          %v3494 = vld [vmem:[%s18 + $0x3c] sm:$0xf]
          %v3495 = vld [vmem:[#allocation31] sm:$0x1]
          %v3497 = vlaneseq
          %v3498 = vshrl.u32 %v3497, 7
          %v3499 = vsub.s32 0, %v3498
          %v3500 = vrot.slane %v3495, %v3499
          %v3518 = vunpack.c.l.b16 %v3479
          %v3519 = vunpack.c.l.b16 %v3480
          %v3520 = vunpack.c.l.b16 %v3481
          %v3521 = vunpack.c.l.b16 %v3482
          %v3522 = vunpack.c.l.b16 %v3483
          %v3523 = vunpack.c.l.b16 %v3484
          %v3524 = vunpack.c.l.b16 %v3485
          %v3525 = vunpack.c.l.b16 %v3486
          %v3526 = vunpack.c.l.b16 %v3487
          %v3527 = vunpack.c.l.b16 %v3488
          %v3528 = vunpack.c.l.b16 %v3489
          %v3529 = vunpack.c.l.b16 %v3490
          %v3530 = vunpack.c.l.b16 %v3491
          %v3531 = vunpack.c.l.b16 %v3492
          %v3532 = vunpack.c.l.b16 %v3493
          %v3533 = vunpack.c.l.b16 %v3494
          %v3534 = vpack.c.b16 %v3519, %v3518
          %v3535 = vpack.c.b16 %v3521, %v3520
          %v3536 = vpack.c.b16 %v3523, %v3522
          %v3537 = vpack.c.b16 %v3525, %v3524
          %v3538 = vpack.c.b16 %v3527, %v3526
          %v3539 = vpack.c.b16 %v3529, %v3528
          %v3540 = vpack.c.b16 %v3531, %v3530
          %v3541 = vpack.c.b16 %v3533, %v3532
          %3550 = vmatprep.subr.bf16.mxu0 0
          %3551 = vmatpush1.bf16.msra.mxu0 %v3541
          %3552 = vmatprep.subr.bf16.mxu0 0
          %3553 = vmatpush1.bf16.msra.mxu0 %v3540
          %3554 = vmatprep.subr.bf16.mxu0 0
          %3555 = vmatpush1.bf16.msra.mxu0 %v3539
          %3556 = vmatprep.subr.bf16.mxu0 0
          %3557 = vmatpush1.bf16.msra.mxu0 %v3538
          %3558 = vmatprep.subr.bf16.mxu0 0
          %3559 = vmatpush1.bf16.msra.mxu0 %v3537
          %3560 = vmatprep.subr.bf16.mxu0 0
          %3561 = vmatpush1.bf16.msra.mxu0 %v3536
          %3562 = vmatprep.subr.bf16.mxu0 0
          %3563 = vmatpush1.bf16.msra.mxu0 %v3535
          %3564 = vmatprep.subr.bf16.mxu0 0
          %3565 = vmatpush1.bf16.msra.mxu0 %v3534
          %3566 = vmatprep.subr.bf16.mxu0 0
          %3567 = vmatpush2.bf16.msra.mxu0 0
          %3568 = vmatprep.subr.bf16.mxu0 0
          %3569 = vmatpush2.bf16.msra.mxu0 0
          %3570 = vmatprep.subr.bf16.mxu0 0
          %3571 = vmatpush2.bf16.msra.mxu0 0
          %3572 = vmatprep.subr.bf16.mxu0 0
          %3573 = vmatpush2.bf16.msra.mxu0 0
          %3574 = vmatprep.subr.bf16.mxu0 0
          %3575 = vmatpush2.bf16.msra.mxu0 0
          %3576 = vmatprep.subr.bf16.mxu0 0
          %3577 = vmatpush2.bf16.msra.mxu0 0
          %3578 = vmatprep.subr.bf16.mxu0 0
          %3579 = vmatpush2.bf16.msra.mxu0 0
          %3580 = vmatprep.subr.bf16.mxu0 0
          %3581 = vmatpush2.bf16.msra.mxu0 0
          %3582 = vmatprep.mubr.bf16.mxu0 0
          %3583 = vmatmul.mubr.bf16.gmra.mxu0 %v3478
          %v3584 = vpop.f32.mrf.mxu0
          %v3585 = vadd.f32 %v3500, %v3584
          %v3586 = vpop.f32.mrf.mxu0
          %v3587 = vpop.f32.mrf.mxu0
          %v3588 = vadd.f32 %v3500, %v3587
          %v3589 = vpop.f32.mrf.mxu0
          %3590 = vdwg.mxu0
          %v3591 = vld [vmem:[#allocation32] sm:$0x1]
          %v3592 = vld [vmem:[#allocation34] sm:$0x1]
          %3593 = vadd.xlane.f32.xlu0 %v3585
          %v3594 = vpop.xlane.xlu0 %3593
          %3595 = vadd.xlane.f32.xlu0 %v3588
          %v3596 = vpop.xlane.xlu0 %3595
          %v3597 = vrcp.pop 128.0
          %v3598 = vmul.f32 %v3594, %v3597
          %v3599 = vmul.f32 %v3596, %v3597
          %v3600 = vsub.f32 %v3585, %v3598
          %v3601 = vsub.f32 %v3588, %v3599
          %v3602 = vmul.f32 %v3600, %v3600
          %v3603 = vmul.f32 %v3601, %v3601
          %3604 = vadd.xlane.f32.xlu0 %v3602
          %v3605 = vpop.xlane.xlu0 %3604
          %3606 = vadd.xlane.f32.xlu0 %v3603
          %v3607 = vpop.xlane.xlu0 %3606
          %v3608 = vmul.f32 %v3605, %v3597
          %v3609 = vmul.f32 %v3607, %v3597
          %v3610 = vadd.f32 %v3608, 1e-05
          %v3611 = vadd.f32 %v3609, 1e-05
          %v3612 = vrsqrt.pop %v3610
          %v3613 = vrsqrt.pop %v3611
          %v3614 = vmul.f32 %v3600, %v3612
          %v3615 = vmul.f32 %v3601, %v3613
          %v3617 = vlaneseq
          %v3618 = vshrl.u32 %v3617, 7
          %v3619 = vsub.s32 0, %v3618
          %v3620 = vrot.slane %v3591, %v3619
          %v3622 = vmul.f32 %v3614, %v3620
          %v3623 = vmul.f32 %v3615, %v3620
          %v3625 = vlaneseq
          %v3626 = vshrl.u32 %v3625, 7
          %v3627 = vsub.s32 0, %v3626
          %v3628 = vrot.slane %v3592, %v3627
          %v3630 = vadd.f32 %v3622, %v3628
          %v3631 = vadd.f32 %v3623, %v3628
          %vm3632 = vcmp.ge.f32.partialorder %v3630, 0.0
          %vm3633 = vcmp.ge.f32.partialorder %v3631, 0.0
          %v3634 = vmul.f32 %v3630, 0.01
          %v3635 = vmul.f32 %v3631, 0.01
          %v3636 = vsel %vm3632, %v3630, %v3634
          %v3637 = vsel %vm3633, %v3631, %v3635
          %v3638 = vpack.c.bf16 %v3637, %v3636
          %v3639 = vld [vmem:[%s22] sm:$0xf]
          %v3640 = vld [vmem:[%s22 + $0x4] sm:$0xf]
          %v3641 = vld [vmem:[%s22 + $0x8] sm:$0xf]
          %v3642 = vld [vmem:[%s22 + $0xc] sm:$0xf]
          %v3643 = vld [vmem:[%s22 + $0x10] sm:$0xf]
          %v3644 = vld [vmem:[%s22 + $0x14] sm:$0xf]
          %v3645 = vld [vmem:[%s22 + $0x18] sm:$0xf]
          %v3646 = vld [vmem:[%s22 + $0x1c] sm:$0xf]
          %v3647 = vld [vmem:[%s22 + $0x20] sm:$0xf]
          %v3648 = vld [vmem:[%s22 + $0x24] sm:$0xf]
          %v3649 = vld [vmem:[%s22 + $0x28] sm:$0xf]
          %v3650 = vld [vmem:[%s22 + $0x2c] sm:$0xf]
          %v3651 = vld [vmem:[%s22 + $0x30] sm:$0xf]
          %v3652 = vld [vmem:[%s22 + $0x34] sm:$0xf]
          %v3653 = vld [vmem:[%s22 + $0x38] sm:$0xf]
          %v3654 = vld [vmem:[%s22 + $0x3c] sm:$0xf]
          %v3655 = vld [vmem:[#allocation35] sm:$0x1]
          %v3657 = vlaneseq
          %v3658 = vshrl.u32 %v3657, 7
          %v3659 = vsub.s32 0, %v3658
          %v3660 = vrot.slane %v3655, %v3659
          %v3678 = vunpack.c.l.b16 %v3639
          %v3679 = vunpack.c.l.b16 %v3640
          %v3680 = vunpack.c.l.b16 %v3641
          %v3681 = vunpack.c.l.b16 %v3642
          %v3682 = vunpack.c.l.b16 %v3643
          %v3683 = vunpack.c.l.b16 %v3644
          %v3684 = vunpack.c.l.b16 %v3645
          %v3685 = vunpack.c.l.b16 %v3646
          %v3686 = vunpack.c.l.b16 %v3647
          %v3687 = vunpack.c.l.b16 %v3648
          %v3688 = vunpack.c.l.b16 %v3649
          %v3689 = vunpack.c.l.b16 %v3650
          %v3690 = vunpack.c.l.b16 %v3651
          %v3691 = vunpack.c.l.b16 %v3652
          %v3692 = vunpack.c.l.b16 %v3653
          %v3693 = vunpack.c.l.b16 %v3654
          %v3694 = vpack.c.b16 %v3679, %v3678
          %v3695 = vpack.c.b16 %v3681, %v3680
          %v3696 = vpack.c.b16 %v3683, %v3682
          %v3697 = vpack.c.b16 %v3685, %v3684
          %v3698 = vpack.c.b16 %v3687, %v3686
          %v3699 = vpack.c.b16 %v3689, %v3688
          %v3700 = vpack.c.b16 %v3691, %v3690
          %v3701 = vpack.c.b16 %v3693, %v3692
          %3710 = vmatprep.subr.bf16.mxu0 0
          %3711 = vmatpush1.bf16.msra.mxu0 %v3701
          %3712 = vmatprep.subr.bf16.mxu0 0
          %3713 = vmatpush1.bf16.msra.mxu0 %v3700
          %3714 = vmatprep.subr.bf16.mxu0 0
          %3715 = vmatpush1.bf16.msra.mxu0 %v3699
          %3716 = vmatprep.subr.bf16.mxu0 0
          %3717 = vmatpush1.bf16.msra.mxu0 %v3698
          %3718 = vmatprep.subr.bf16.mxu0 0
          %3719 = vmatpush1.bf16.msra.mxu0 %v3697
          %3720 = vmatprep.subr.bf16.mxu0 0
          %3721 = vmatpush1.bf16.msra.mxu0 %v3696
          %3722 = vmatprep.subr.bf16.mxu0 0
          %3723 = vmatpush1.bf16.msra.mxu0 %v3695
          %3724 = vmatprep.subr.bf16.mxu0 0
          %3725 = vmatpush1.bf16.msra.mxu0 %v3694
          %3726 = vmatprep.subr.bf16.mxu0 0
          %3727 = vmatpush2.bf16.msra.mxu0 0
          %3728 = vmatprep.subr.bf16.mxu0 0
          %3729 = vmatpush2.bf16.msra.mxu0 0
          %3730 = vmatprep.subr.bf16.mxu0 0
          %3731 = vmatpush2.bf16.msra.mxu0 0
          %3732 = vmatprep.subr.bf16.mxu0 0
          %3733 = vmatpush2.bf16.msra.mxu0 0
          %3734 = vmatprep.subr.bf16.mxu0 0
          %3735 = vmatpush2.bf16.msra.mxu0 0
          %3736 = vmatprep.subr.bf16.mxu0 0
          %3737 = vmatpush2.bf16.msra.mxu0 0
          %3738 = vmatprep.subr.bf16.mxu0 0
          %3739 = vmatpush2.bf16.msra.mxu0 0
          %3740 = vmatprep.subr.bf16.mxu0 0
          %3741 = vmatpush2.bf16.msra.mxu0 0
          %3742 = vmatprep.mubr.bf16.mxu0 0
          %3743 = vmatmul.mubr.bf16.gmra.mxu0 %v3638
          %v3744 = vpop.f32.mrf.mxu0
          %v3745 = vadd.f32 %v3660, %v3744
          %v3746 = vpop.f32.mrf.mxu0
          %v3747 = vpop.f32.mrf.mxu0
          %v3748 = vadd.f32 %v3660, %v3747
          %v3749 = vpop.f32.mrf.mxu0
          %3750 = vdwg.mxu0
          %v3751 = vld [vmem:[#allocation37] sm:$0x1]
          %v3752 = vld [vmem:[#allocation38] sm:$0x1]
          %vm3753 = vcmask 523264
          %v3754 = vsel %vm3753, %v3745, 0.0
          %3755 = vadd.xlane.f32.xlu0 %v3754
          %v3756 = vpop.xlane.xlu0 %3755
          %v3757 = vsel %vm3753, %v3748, 0.0
          %3758 = vadd.xlane.f32.xlu0 %v3757
          %v3759 = vpop.xlane.xlu0 %3758
          %v3760 = vrcp.pop 64.0
          %v3761 = vmul.f32 %v3756, %v3760
          %v3762 = vmul.f32 %v3759, %v3760
          %v3763 = vsub.f32 %v3745, %v3761
          %v3764 = vsub.f32 %v3748, %v3762
          %v3765 = vmul.f32 %v3763, %v3763
          %v3766 = vmul.f32 %v3764, %v3764
          %v3767 = vsel %vm3753, %v3765, 0.0
          %3768 = vadd.xlane.f32.xlu0 %v3767
          %v3769 = vpop.xlane.xlu0 %3768
          %v3770 = vsel %vm3753, %v3766, 0.0
          %3771 = vadd.xlane.f32.xlu0 %v3770
          %v3772 = vpop.xlane.xlu0 %3771
          %v3773 = vmul.f32 %v3769, %v3760
          %v3774 = vmul.f32 %v3772, %v3760
          %v3775 = vadd.f32 %v3773, 1e-05
          %v3776 = vadd.f32 %v3774, 1e-05
          %v3777 = vrsqrt.pop %v3775
          %v3778 = vrsqrt.pop %v3776
          %v3779 = vmul.f32 %v3763, %v3777
          %v3780 = vmul.f32 %v3764, %v3778
          %v3782 = vlaneseq
          %v3783 = vshrl.u32 %v3782, 7
          %v3784 = vsub.s32 0, %v3783
          %v3785 = vrot.slane %v3751, %v3784
          %v3787 = vmul.f32 %v3779, %v3785
          %v3788 = vmul.f32 %v3780, %v3785
          %v3790 = vlaneseq
          %v3791 = vshrl.u32 %v3790, 7
          %v3792 = vsub.s32 0, %v3791
          %v3793 = vrot.slane %v3752, %v3792
          %v3795 = vadd.f32 %v3787, %v3793
          %v3796 = vadd.f32 %v3788, %v3793
          %vm3797 = vcmp.ge.f32.partialorder %v3795, 0.0
          %vm3798 = vcmp.ge.f32.partialorder %v3796, 0.0
          %v3799 = vmul.f32 %v3795, 0.01
          %v3800 = vmul.f32 %v3796, 0.01
          %v3801 = vsel %vm3797, %v3795, %v3799
          %v3802 = vsel %vm3798, %v3796, %v3800
          %v3803 = vpack.c.bf16 %v3802, %v3801
          %v3804 = vld [vmem:[%s26] sm:$0xf]
          %v3805 = vld [vmem:[%s26 + $0x4] sm:$0xf]
          %v3806 = vld [vmem:[%s26 + $0x8] sm:$0xf]
          %v3807 = vld [vmem:[%s26 + $0xc] sm:$0xf]
          %v3808 = vld [vmem:[%s26 + $0x10] sm:$0xf]
          %v3809 = vld [vmem:[%s26 + $0x14] sm:$0xf]
          %v3810 = vld [vmem:[%s26 + $0x18] sm:$0xf]
          %v3811 = vld [vmem:[%s26 + $0x1c] sm:$0xf]
          %v3812 = vld [vmem:[%s27] sm:$0x1]
          %v3814 = vlaneseq
          %v3815 = vshrl.u32 %v3814, 7
          %v3816 = vsub.s32 0, %v3815
          %v3817 = vrot.slane %v3812, %v3816
          %v3827 = vunpack.c.l.b16 %v3804
          %v3828 = vunpack.c.l.b16 %v3805
          %v3829 = vunpack.c.l.b16 %v3806
          %v3830 = vunpack.c.l.b16 %v3807
          %v3831 = vunpack.c.l.b16 %v3808
          %v3832 = vunpack.c.l.b16 %v3809
          %v3833 = vunpack.c.l.b16 %v3810
          %v3834 = vunpack.c.l.b16 %v3811
          %v3835 = vpack.c.b16 %v3828, %v3827
          %v3836 = vpack.c.b16 %v3830, %v3829
          %v3837 = vpack.c.b16 %v3832, %v3831
          %v3838 = vpack.c.b16 %v3834, %v3833
          %v3844 = vsel %vm3753, %v3803, 0
          %3846 = vmatprep.subr.bf16.mxu0 0
          %3847 = vmatpush1.bf16.msra.mxu0 0
          %3848 = vmatprep.subr.bf16.mxu0 0
          %3849 = vmatpush1.bf16.msra.mxu0 0
          %3850 = vmatprep.subr.bf16.mxu0 0
          %3851 = vmatpush1.bf16.msra.mxu0 0
          %3852 = vmatprep.subr.bf16.mxu0 0
          %3853 = vmatpush1.bf16.msra.mxu0 0
          %3854 = vmatprep.subr.bf16.mxu0 0
          %3855 = vmatpush1.bf16.msra.mxu0 %v3838
          %3856 = vmatprep.subr.bf16.mxu0 0
          %3857 = vmatpush1.bf16.msra.mxu0 %v3837
          %3858 = vmatprep.subr.bf16.mxu0 0
          %3859 = vmatpush1.bf16.msra.mxu0 %v3836
          %3860 = vmatprep.subr.bf16.mxu0 0
          %3861 = vmatpush1.bf16.msra.mxu0 %v3835
          %3862 = vmatprep.subr.bf16.mxu0 0
          %3863 = vmatpush2.bf16.msra.mxu0 0
          %3864 = vmatprep.subr.bf16.mxu0 0
          %3865 = vmatpush2.bf16.msra.mxu0 0
          %3866 = vmatprep.subr.bf16.mxu0 0
          %3867 = vmatpush2.bf16.msra.mxu0 0
          %3868 = vmatprep.subr.bf16.mxu0 0
          %3869 = vmatpush2.bf16.msra.mxu0 0
          %3870 = vmatprep.subr.bf16.mxu0 0
          %3871 = vmatpush2.bf16.msra.mxu0 0
          %3872 = vmatprep.subr.bf16.mxu0 0
          %3873 = vmatpush2.bf16.msra.mxu0 0
          %3874 = vmatprep.subr.bf16.mxu0 0
          %3875 = vmatpush2.bf16.msra.mxu0 0
          %3876 = vmatprep.subr.bf16.mxu0 0
          %3877 = vmatpush2.bf16.msra.mxu0 0
          %3878 = vmatprep.mubr.bf16.mxu0 0
          %3879 = vmatmul.mubr.bf16.gmra.mxu0 %v3844
          %v3880 = vpop.f32.mrf.mxu0
          %v3881 = vadd.f32 %v3817, %v3880
          %v3882 = vpop.f32.mrf.mxu0
          %v3883 = vpop.f32.mrf.mxu0
          %v3884 = vadd.f32 %v3817, %v3883
          %v3885 = vpop.f32.mrf.mxu0
          %3886 = vdwg.mxu0
          %v3887 = vtanh.pop %v3881
          %v3888 = vtanh.pop %v3884
          %3889 = vst [vmem:[#allocation40] sm:$0xff] %v3887
          %3890 = vst [vmem:[#allocation40 + $0x8] sm:$0xff] %v3888
        $region236: #{tpu_custom_call.1} parent=131 // pred_fallthru
          _
        // Predicated region
        $region237: #{tpu_custom_call.1} parent=131 // pred_check
          %p3891 = pneg %p743
        $region238: #{tpu_custom_call.1} parent=131 // pred_check_branch
          %3893 = sbr.rel (%p3891) target = $region240
        $region239: #{tpu_custom_call.1} parent=131 // pred_region
          %s3895 = ssub.s32 256, 256
          %3896 = vsyncadd [#allocation7], %s3895
          %s3897 = sshll.u32 [#allocation40], 4
          %s3898 = int_to_ptr.vmem [resolvable:$true] %s3897
          %3903 = dma.vmem_to_hbm [thread:$0]  %s3898, 256, %s28, [#allocation7], 128, 128, 8
        $region240: #{tpu_custom_call.1} parent=131 // pred_fallthru
          _
        // Predicated region
        $region241: #{tpu_custom_call.1} parent=131 // pred_check
          %p3904 = pneg %p743
        $region242: #{tpu_custom_call.1} parent=131 // pred_check_branch
          %3906 = sbr.rel (%p3904) target = $region244
        $region243: #{tpu_custom_call.1} parent=131 // pred_region
          %3907 = dma.done [#allocation7], 256
        $region244: #{tpu_custom_call.1} parent=131 // pred_fallthru
          _
      $region132: #{tpu_custom_call.1} parent=5 // pred_fallthru
        _
      %p3908 = scmp.le.s32.totalorder 2, %s59
      // Predicated region
      $region245: #{tpu_custom_call.1} parent=5 // pred_check
        %p3909 = pneg %p3908
      $region246: #{tpu_custom_call.1} parent=5 // pred_check_branch
        %3911 = sbr.rel (%p3909) target = $region248
      $region247: #{tpu_custom_call.1} parent=5 // pred_region
        %s3912 = ssub.s32 %s59, 2
      $region248: #{tpu_custom_call.1} parent=5 // pred_fallthru
        _
    $region6: #{tpu_custom_call.1} parent=1 // loop_footer
      %s63 = sadd.s32 1, %s59
    $region7: #{tpu_custom_call.1} parent=1 // loop_footer_branch
      %58 = sbr.rel target = $region3
    $region8: #{tpu_custom_call.1} parent=1 // loop_exit
      _
    %3913 = vsyncpa [#allocation6], 1
    %s3914 = scalar_lea.sflag [#allocation6], 1
    %3915 = vsyncpa %s3914, 1
    %3916 = vsyncpa [#allocation9], 1
    %3917 = vsyncpa [#allocation12], 1
    %3918 = vsyncpa [#allocation15], 1
    %s3919 = scalar_lea.sflag [#allocation15], 1
    %3920 = vsyncpa %s3919, 1
    %3921 = vsyncpa [#allocation18], 1
    %s3922 = scalar_lea.sflag [#allocation18], 1
    %3923 = vsyncpa %s3922, 1
    %3924 = vsyncpa [#allocation21], 1
    %s3925 = scalar_lea.sflag [#allocation21], 1
    %3926 = vsyncpa %s3925, 1
    %3927 = vsyncpa [#allocation24], 1
    %s3928 = scalar_lea.sflag [#allocation24], 1
    %3929 = vsyncpa %s3928, 1
    %3930 = vsyncpa [#allocation27], 1
    %s3931 = scalar_lea.sflag [#allocation27], 1
    %3932 = vsyncpa %s3931, 1
    %3933 = vsyncpa [#allocation30], 1
    %s3934 = scalar_lea.sflag [#allocation30], 1
    %3935 = vsyncpa %s3934, 1
    %3936 = vsyncpa [#allocation33], 1
    %3937 = vsyncpa [#allocation36], 1
    %3938 = vsyncpa [#allocation39], 1
    %3939 = vsyncpa [#allocation7], 1
    %s3940 = scalar_lea.sflag [#allocation7], 1
    %3941 = vsyncpa %s3940, 1

</llo_original>
